<compile_context>
chip_gen: v7x
topology: tpu7x:2x2x1
jax: 0.10.0
libtpu: 0.0.40
codegen_flags: <defaults>
</compile_context>

<pallas_src>
import jax
import jax.numpy as jnp
from jax import lax
from jax.experimental import pallas as pl
from jax.experimental.pallas import tpu as pltpu

_LANES = 128
_SUBLANES = 8
# 2048 rows * 128 lanes * 4 B = 1 MiB per input block. Worst case across 4 fused layer
# pairs with double buffering: 4 layers * 2 inputs * 2 bufs * 1 MiB = 16 MiB, safely
# under the explicit 32 MiB VMEM limit below on v5e / v6e / v7x.
_MAX_BLOCK_ROWS = 2048
_VMEM_LIMIT_BYTES = 32 * 1024 * 1024


def _round_up(x, m):
    return ((x + m - 1) // m) * m


def _plan_layer(shape):
    """Static per-layer tiling plan for one feature-map pair."""
    n = 1
    for d in shape:
        n *= int(d)
    rows = _round_up(pl.cdiv(n, _LANES), _SUBLANES)
    grid = pl.cdiv(rows, _MAX_BLOCK_ROWS)
    block_rows = _round_up(pl.cdiv(rows, grid), _SUBLANES)
    return {
        "n": n,
        "rows": rows,
        "padded_n": rows * _LANES,
        "grid": grid,
        "block_rows": block_rows,
        # Coverage overshoot -> last block has out-of-range (garbage) rows to mask.
        "needs_mask": grid * block_rows != rows,
    }


def style_loss_resnet50(x_features, gt_features, loss_weight=1.0, beta=1.0):
    """Fused Pallas forward of StyleLoss_resnet50.

    Args:
      x_features:  list of feature maps (the module's input `x`).
      gt_features: list of gt feature maps (layer1..layer4 of resnet50(gt/255)).
                   TODO(synk): produced here directly; the pretrained ResNet50
                   extractor itself is not translated.
      loss_weight: python float.
      beta:        SmoothL1 beta (PyTorch default 1.0).
    Returns:
      scalar float32 style loss.
    """
    assert len(x_features) == len(gt_features)
    num_layers = len(x_features)
    beta = float(beta)

    plans = []
    inputs = []
    in_specs = []
    total_steps = 0
    for xf, gf in zip(x_features, gt_features):
        assert xf.shape == gf.shape, (xf.shape, gf.shape)
        p = _plan_layer(xf.shape)
        p["start"] = total_steps
        # mean (1/N) + loss_weight + 1/beta folded into one per-layer scale.
        p["scale"] = float(loss_weight) / (float(p["n"]) * beta)
        total_steps += p["grid"]
        plans.append(p)

        xs = xf.reshape(-1)
        gs = gf.reshape(-1)
        if p["padded_n"] != p["n"]:
            # TODO(synk): rare fallback for element counts not 8*128-aligned (never hit
            # by real ResNet50 feature maps). Zero-pads BOTH operands so the padded
            # tail contributes exactly 0 to the SmoothL1 sum.
            pad = p["padded_n"] - p["n"]
            xs = jnp.pad(xs, (0, pad))
            gs = jnp.pad(gs, (0, pad))
        inputs.append(xs.reshape(p["rows"], _LANES))
        inputs.append(gs.reshape(p["rows"], _LANES))

        def idx_map(i, start=p["start"], nblk=p["grid"]):
            # Clamp to this layer's own block range: outside its range the block index
            # does not change, so Pallas issues no DMA for this input on those steps.
            return (jnp.clip(i - start, 0, nblk - 1), 0)

        spec = pl.BlockSpec((p["block_rows"], _LANES), idx_map)
        in_specs.append(spec)
        in_specs.append(spec)

    def kernel(*refs):
        o_ref = refs[2 * num_layers]
        acc_ref = refs[2 * num_layers + 1]
        i = pl.program_id(0)

        @pl.when(i == 0)
        def _init():
            acc_ref[...] = jnp.zeros_like(acc_ref)

        for li, p in enumerate(plans):
            x_ref = refs[2 * li]
            g_ref = refs[2 * li + 1]
            start = p["start"]
            nblk = p["grid"]
            block_rows = p["block_rows"]
            rows = p["rows"]
            scale = p["scale"]
            needs_mask = p["needs_mask"]

            @pl.when(jnp.logical_and(i >= start, i < start + nblk))
            def _process(x_ref=x_ref, g_ref=g_ref, start=start,
                         block_rows=block_rows, rows=rows, scale=scale,
                         needs_mask=needs_mask):
                # Branch-free Huber (the /beta is folded into `scale`):
                #   m = min(|d|, beta);  elem = m * (|d| - 0.5*m)
                d = x_ref[...].astype(jnp.float32) - g_ref[...].astype(jnp.float32)
                ad = jnp.abs(d)
                m = jnp.minimum(ad, beta)
                elem = m * (ad - 0.5 * m)
                if needs_mask:
                    # The last block of this layer over-covers the array; zero the
                    # out-of-range rows (mask `elem` itself, not just one operand).
                    row_ids = (i - start) * block_rows + lax.broadcasted_iota(
                        jnp.int32, elem.shape, 0)
                    elem = jnp.where(row_ids < rows, elem, 0.0)
                # Sublane-aligned partial reduction into the (8,128) accumulator:
                # plain vreg adds per step, no per-step cross-lane work.
                part = jnp.sum(
                    elem.reshape(block_rows // _SUBLANES, _SUBLANES, _LANES), axis=0)
                acc_ref[...] += scale * part

        @pl.when(i == total_steps - 1)
        def _finalize():
            # Single cross-sublane + cross-lane reduction, once, at the very end.
            o_ref[0] = jnp.sum(acc_ref[...])

    out = pl.pallas_call(
        kernel,
        out_shape=jax.ShapeDtypeStruct((1,), jnp.float32),
        grid_spec=pltpu.PrefetchScalarGridSpec(
            num_scalar_prefetch=0,
            grid=(total_steps,),
            in_specs=in_specs,
            out_specs=pl.BlockSpec(memory_space=pltpu.SMEM),
            scratch_shapes=[pltpu.VMEM((_SUBLANES, _LANES), jnp.float32)],
        ),
        compiler_params=pltpu.CompilerParams(
            dimension_semantics=("arbitrary",),   # single reduction axis
            vmem_limit_bytes=_VMEM_LIMIT_BYTES),
    )(*inputs)
    return out[0]


# ----------------------------- pure-JAX reference -----------------------------

def _reference_smooth_l1(pred, target, beta=1.0):
    d = pred.astype(jnp.float32) - target.astype(jnp.float32)
    ad = jnp.abs(d)
    e = jnp.where(ad < beta, 0.5 * d * d / beta, ad - 0.5 * beta)
    return jnp.mean(e)


def _reference_style_loss(x_features, gt_features, loss_weight=1.0, beta=1.0):
    total = jnp.float32(0.0)
    for xf, gf in zip(x_features, gt_features):
        total = total + _reference_smooth_l1(xf, gf, beta) * loss_weight
    return total


if __name__ == "__main__":
    key = jax.random.PRNGKey(0)

    # ResNet50 layer1..layer4 feature shapes for a small (2, 3, 64, 64) input.
    feat_shapes = [
        (2, 256, 16, 16),   # layer1
        (2, 512, 8, 8),     # layer2
        (2, 1024, 4, 4),    # layer3
        (2, 2048, 2, 2),    # layer4
    ]

    keys = jax.random.split(key, 2 * len(feat_shapes))
    x_feats = [jax.random.normal(keys[2 * i], s, dtype=jnp.float32)
               for i, s in enumerate(feat_shapes)]
    gt_feats = [jax.random.normal(keys[2 * i + 1], s, dtype=jnp.float32)
                for i, s in enumerate(feat_shapes)]

    loss = style_loss_resnet50(x_feats, gt_feats, loss_weight=1.0)
    loss = jax.block_until_ready(loss)
    ref = jax.block_until_ready(
        _reference_style_loss(x_feats, gt_feats, loss_weight=1.0))
    assert jnp.allclose(loss, ref, rtol=1e-5, atol=1e-5), (loss, ref)

    # Extra check: exercise the multi-block + in-kernel tail-mask path (rows not an
    # exact multiple of the near-equal 8-aligned split) and the non-aligned pad fallback.
    kk = jax.random.split(keys[-1], 4)
    x2 = [jax.random.normal(kk[0], (1, 8, 514, 64), dtype=jnp.float32),
          jax.random.normal(kk[1], (2, 3, 5, 7), dtype=jnp.float32)]
    g2 = [jax.random.normal(kk[2], (1, 8, 514, 64), dtype=jnp.float32),
          jax.random.normal(kk[3], (2, 3, 5, 7), dtype=jnp.float32)]
    loss2 = jax.block_until_ready(style_loss_resnet50(x2, g2, loss_weight=0.5))
    ref2 = jax.block_until_ready(_reference_style_loss(x2, g2, loss_weight=0.5))
    assert jnp.allclose(loss2, ref2, rtol=1e-5, atol=1e-5), (loss2, ref2)

    print("KERNEL_OK")
</pallas_src>

<mosaic_0001>
module attributes {stable_mosaic.version = 11 : i64} {
  func.func @kernel(%arg0: i32, %arg1: memref<1024x128xf32, #tpu.memory_space<vmem>>, %arg2: memref<1024x128xf32, #tpu.memory_space<vmem>>, %arg3: memref<512x128xf32, #tpu.memory_space<vmem>>, %arg4: memref<512x128xf32, #tpu.memory_space<vmem>>, %arg5: memref<256x128xf32, #tpu.memory_space<vmem>>, %arg6: memref<256x128xf32, #tpu.memory_space<vmem>>, %arg7: memref<128x128xf32, #tpu.memory_space<vmem>>, %arg8: memref<128x128xf32, #tpu.memory_space<vmem>>, %arg9: memref<1xf32, #tpu.memory_space<smem>>, %arg10: memref<8x128xf32, #tpu.memory_space<vmem>>) attributes {dimension_semantics = [#tpu.dimension_semantics<arbitrary>], iteration_bounds = array<i64: 4>, scalar_prefetch = 0 : i64, scratch_operands = 1 : i64, tpu.core_type = #tpu.core_type<tc>, window_params = [{transform_indices = @transform_0, window_bounds = array<i64: 1024, 128>}, {transform_indices = @transform_1, window_bounds = array<i64: 1024, 128>}, {transform_indices = @transform_2, window_bounds = array<i64: 512, 128>}, {transform_indices = @transform_3, window_bounds = array<i64: 512, 128>}, {transform_indices = @transform_4, window_bounds = array<i64: 256, 128>}, {transform_indices = @transform_5, window_bounds = array<i64: 256, 128>}, {transform_indices = @transform_6, window_bounds = array<i64: 128, 128>}, {transform_indices = @transform_7, window_bounds = array<i64: 128, 128>}, {transform_indices = @transform_8, window_bounds = array<i64: 1>}]} {
    %c0_i32 = arith.constant 0 : i32
    %0 = arith.cmpi eq, %arg0, %c0_i32 : i32
    %1 = arith.extui %0 : i1 to i32
    %c0_i32_0 = arith.constant 0 : i32
    %2 = arith.cmpi ne, %1, %c0_i32_0 : i32
    scf.if %2 {
      %cst = arith.constant 0.000000e+00 : f32
      %26 = vector.broadcast %cst : f32 to vector<8x128xf32>
      %c0 = arith.constant 0 : index
      %c0_11 = arith.constant 0 : index
      %27 = vector.load %arg10[%c0, %c0_11] : memref<8x128xf32, #tpu.memory_space<vmem>>, vector<8x128xf32>
      tpu.vector_store %arg10[%c0, %c0_11], %26 {strides = array<i32>} : memref<8x128xf32, #tpu.memory_space<vmem>>, vector<8x128xf32>,
    } else {
    }
    %c0_i32_1 = arith.constant 0 : i32
    %3 = arith.cmpi sge, %arg0, %c0_i32_1 : i32
    %c1_i32 = arith.constant 1 : i32
    %4 = arith.cmpi slt, %arg0, %c1_i32 : i32
    %5 = arith.andi %3, %4 : i1
    %6 = arith.extui %5 : i1 to i32
    %c0_i32_2 = arith.constant 0 : i32
    %7 = arith.cmpi ne, %6, %c0_i32_2 : i32
    scf.if %7 {
      %c0 = arith.constant 0 : index
      %c0_11 = arith.constant 0 : index
      %26 = vector.load %arg1[%c0, %c0_11] : memref<1024x128xf32, #tpu.memory_space<vmem>>, vector<1024x128xf32>
      %c0_12 = arith.constant 0 : index
      %c0_13 = arith.constant 0 : index
      %27 = vector.load %arg2[%c0_12, %c0_13] : memref<1024x128xf32, #tpu.memory_space<vmem>>, vector<1024x128xf32>
      %28 = arith.subf %26, %27 : vector<1024x128xf32>
      %29 = math.absf %28 : vector<1024x128xf32>
      %cst = arith.constant 1.000000e+00 : f32
      %30 = vector.broadcast %cst : f32 to vector<1024x128xf32>
      %31 = arith.minimumf %29, %30 : vector<1024x128xf32>
      %cst_14 = arith.constant 5.000000e-01 : f32
      %32 = vector.broadcast %cst_14 : f32 to vector<1024x128xf32>
      %33 = arith.mulf %32, %31 : vector<1024x128xf32>
      %34 = arith.subf %29, %33 : vector<1024x128xf32>
      %35 = arith.mulf %31, %34 : vector<1024x128xf32>
      %36 = vector.shape_cast %35 : vector<1024x128xf32> to vector<128x8x128xf32>
      %cst_15 = arith.constant dense<0.000000e+00> : vector<8x128xf32>
      %37 = vector.multi_reduction <add>, %36, %cst_15 [0] : vector<128x8x128xf32> to vector<8x128xf32>
      %c0_16 = arith.constant 0 : index
      %c0_17 = arith.constant 0 : index
      %38 = vector.load %arg10[%c0_16, %c0_17] : memref<8x128xf32, #tpu.memory_space<vmem>>, vector<8x128xf32>
      %cst_18 = arith.constant 7.62939453E-6 : f32
      %39 = vector.broadcast %cst_18 : f32 to vector<8x128xf32>
      %40 = arith.mulf %39, %37 : vector<8x128xf32>
      %41 = arith.addf %38, %40 : vector<8x128xf32>
      %c0_19 = arith.constant 0 : index
      %c0_20 = arith.constant 0 : index
      %42 = vector.load %arg10[%c0_19, %c0_20] : memref<8x128xf32, #tpu.memory_space<vmem>>, vector<8x128xf32>
      tpu.vector_store %arg10[%c0_19, %c0_20], %41 {strides = array<i32>} : memref<8x128xf32, #tpu.memory_space<vmem>>, vector<8x128xf32>,
    } else {
    }
    %c1_i32_3 = arith.constant 1 : i32
    %8 = arith.cmpi sge, %arg0, %c1_i32_3 : i32
    %c2_i32 = arith.constant 2 : i32
    %9 = arith.cmpi slt, %arg0, %c2_i32 : i32
    %10 = arith.andi %8, %9 : i1
    %11 = arith.extui %10 : i1 to i32
    %c0_i32_4 = arith.constant 0 : i32
    %12 = arith.cmpi ne, %11, %c0_i32_4 : i32
    scf.if %12 {
      %c0 = arith.constant 0 : index
      %c0_11 = arith.constant 0 : index
      %26 = vector.load %arg3[%c0, %c0_11] : memref<512x128xf32, #tpu.memory_space<vmem>>, vector<512x128xf32>
      %c0_12 = arith.constant 0 : index
      %c0_13 = arith.constant 0 : index
      %27 = vector.load %arg4[%c0_12, %c0_13] : memref<512x128xf32, #tpu.memory_space<vmem>>, vector<512x128xf32>
      %28 = arith.subf %26, %27 : vector<512x128xf32>
      %29 = math.absf %28 : vector<512x128xf32>
      %cst = arith.constant 1.000000e+00 : f32
      %30 = vector.broadcast %cst : f32 to vector<512x128xf32>
      %31 = arith.minimumf %29, %30 : vector<512x128xf32>
      %cst_14 = arith.constant 5.000000e-01 : f32
      %32 = vector.broadcast %cst_14 : f32 to vector<512x128xf32>
      %33 = arith.mulf %32, %31 : vector<512x128xf32>
      %34 = arith.subf %29, %33 : vector<512x128xf32>
      %35 = arith.mulf %31, %34 : vector<512x128xf32>
      %36 = vector.shape_cast %35 : vector<512x128xf32> to vector<64x8x128xf32>
      %cst_15 = arith.constant dense<0.000000e+00> : vector<8x128xf32>
      %37 = vector.multi_reduction <add>, %36, %cst_15 [0] : vector<64x8x128xf32> to vector<8x128xf32>
      %c0_16 = arith.constant 0 : index
      %c0_17 = arith.constant 0 : index
      %38 = vector.load %arg10[%c0_16, %c0_17] : memref<8x128xf32, #tpu.memory_space<vmem>>, vector<8x128xf32>
      %cst_18 = arith.constant 1.52587891E-5 : f32
      %39 = vector.broadcast %cst_18 : f32 to vector<8x128xf32>
      %40 = arith.mulf %39, %37 : vector<8x128xf32>
      %41 = arith.addf %38, %40 : vector<8x128xf32>
      %c0_19 = arith.constant 0 : index
      %c0_20 = arith.constant 0 : index
      %42 = vector.load %arg10[%c0_19, %c0_20] : memref<8x128xf32, #tpu.memory_space<vmem>>, vector<8x128xf32>
      tpu.vector_store %arg10[%c0_19, %c0_20], %41 {strides = array<i32>} : memref<8x128xf32, #tpu.memory_space<vmem>>, vector<8x128xf32>,
    } else {
    }
    %c2_i32_5 = arith.constant 2 : i32
    %13 = arith.cmpi sge, %arg0, %c2_i32_5 : i32
    %c3_i32 = arith.constant 3 : i32
    %14 = arith.cmpi slt, %arg0, %c3_i32 : i32
    %15 = arith.andi %13, %14 : i1
    %16 = arith.extui %15 : i1 to i32
    %c0_i32_6 = arith.constant 0 : i32
    %17 = arith.cmpi ne, %16, %c0_i32_6 : i32
    scf.if %17 {
      %c0 = arith.constant 0 : index
      %c0_11 = arith.constant 0 : index
      %26 = vector.load %arg5[%c0, %c0_11] : memref<256x128xf32, #tpu.memory_space<vmem>>, vector<256x128xf32>
      %c0_12 = arith.constant 0 : index
      %c0_13 = arith.constant 0 : index
      %27 = vector.load %arg6[%c0_12, %c0_13] : memref<256x128xf32, #tpu.memory_space<vmem>>, vector<256x128xf32>
      %28 = arith.subf %26, %27 : vector<256x128xf32>
      %29 = math.absf %28 : vector<256x128xf32>
      %cst = arith.constant 1.000000e+00 : f32
      %30 = vector.broadcast %cst : f32 to vector<256x128xf32>
      %31 = arith.minimumf %29, %30 : vector<256x128xf32>
      %cst_14 = arith.constant 5.000000e-01 : f32
      %32 = vector.broadcast %cst_14 : f32 to vector<256x128xf32>
      %33 = arith.mulf %32, %31 : vector<256x128xf32>
      %34 = arith.subf %29, %33 : vector<256x128xf32>
      %35 = arith.mulf %31, %34 : vector<256x128xf32>
      %36 = vector.shape_cast %35 : vector<256x128xf32> to vector<32x8x128xf32>
      %cst_15 = arith.constant dense<0.000000e+00> : vector<8x128xf32>
      %37 = vector.multi_reduction <add>, %36, %cst_15 [0] : vector<32x8x128xf32> to vector<8x128xf32>
      %c0_16 = arith.constant 0 : index
      %c0_17 = arith.constant 0 : index
      %38 = vector.load %arg10[%c0_16, %c0_17] : memref<8x128xf32, #tpu.memory_space<vmem>>, vector<8x128xf32>
      %cst_18 = arith.constant 3.05175781E-5 : f32
      %39 = vector.broadcast %cst_18 : f32 to vector<8x128xf32>
      %40 = arith.mulf %39, %37 : vector<8x128xf32>
      %41 = arith.addf %38, %40 : vector<8x128xf32>
      %c0_19 = arith.constant 0 : index
      %c0_20 = arith.constant 0 : index
      %42 = vector.load %arg10[%c0_19, %c0_20] : memref<8x128xf32, #tpu.memory_space<vmem>>, vector<8x128xf32>
      tpu.vector_store %arg10[%c0_19, %c0_20], %41 {strides = array<i32>} : memref<8x128xf32, #tpu.memory_space<vmem>>, vector<8x128xf32>,
    } else {
    }
    %c3_i32_7 = arith.constant 3 : i32
    %18 = arith.cmpi sge, %arg0, %c3_i32_7 : i32
    %c4_i32 = arith.constant 4 : i32
    %19 = arith.cmpi slt, %arg0, %c4_i32 : i32
    %20 = arith.andi %18, %19 : i1
    %21 = arith.extui %20 : i1 to i32
    %c0_i32_8 = arith.constant 0 : i32
    %22 = arith.cmpi ne, %21, %c0_i32_8 : i32
    scf.if %22 {
      %c0 = arith.constant 0 : index
      %c0_11 = arith.constant 0 : index
      %26 = vector.load %arg7[%c0, %c0_11] : memref<128x128xf32, #tpu.memory_space<vmem>>, vector<128x128xf32>
      %c0_12 = arith.constant 0 : index
      %c0_13 = arith.constant 0 : index
      %27 = vector.load %arg8[%c0_12, %c0_13] : memref<128x128xf32, #tpu.memory_space<vmem>>, vector<128x128xf32>
      %28 = arith.subf %26, %27 : vector<128x128xf32>
      %29 = math.absf %28 : vector<128x128xf32>
      %cst = arith.constant 1.000000e+00 : f32
      %30 = vector.broadcast %cst : f32 to vector<128x128xf32>
      %31 = arith.minimumf %29, %30 : vector<128x128xf32>
      %cst_14 = arith.constant 5.000000e-01 : f32
      %32 = vector.broadcast %cst_14 : f32 to vector<128x128xf32>
      %33 = arith.mulf %32, %31 : vector<128x128xf32>
      %34 = arith.subf %29, %33 : vector<128x128xf32>
      %35 = arith.mulf %31, %34 : vector<128x128xf32>
      %36 = vector.shape_cast %35 : vector<128x128xf32> to vector<16x8x128xf32>
      %cst_15 = arith.constant dense<0.000000e+00> : vector<8x128xf32>
      %37 = vector.multi_reduction <add>, %36, %cst_15 [0] : vector<16x8x128xf32> to vector<8x128xf32>
      %c0_16 = arith.constant 0 : index
      %c0_17 = arith.constant 0 : index
      %38 = vector.load %arg10[%c0_16, %c0_17] : memref<8x128xf32, #tpu.memory_space<vmem>>, vector<8x128xf32>
      %cst_18 = arith.constant 6.10351563E-5 : f32
      %39 = vector.broadcast %cst_18 : f32 to vector<8x128xf32>
      %40 = arith.mulf %39, %37 : vector<8x128xf32>
      %41 = arith.addf %38, %40 : vector<8x128xf32>
      %c0_19 = arith.constant 0 : index
      %c0_20 = arith.constant 0 : index
      %42 = vector.load %arg10[%c0_19, %c0_20] : memref<8x128xf32, #tpu.memory_space<vmem>>, vector<8x128xf32>
      tpu.vector_store %arg10[%c0_19, %c0_20], %41 {strides = array<i32>} : memref<8x128xf32, #tpu.memory_space<vmem>>, vector<8x128xf32>,
    } else {
    }
    %c3_i32_9 = arith.constant 3 : i32
    %23 = arith.cmpi eq, %arg0, %c3_i32_9 : i32
    %24 = arith.extui %23 : i1 to i32
    %c0_i32_10 = arith.constant 0 : i32
    %25 = arith.cmpi ne, %24, %c0_i32_10 : i32
    scf.if %25 {
      %c0 = arith.constant 0 : index
      %c0_11 = arith.constant 0 : index
      %26 = vector.load %arg10[%c0, %c0_11] : memref<8x128xf32, #tpu.memory_space<vmem>>, vector<8x128xf32>
      %27 = vector.shape_cast %26 : vector<8x128xf32> to vector<1x8x128xf32>
      %cst = arith.constant dense<0.000000e+00> : vector<1xf32>
      %28 = vector.multi_reduction <add>, %27, %cst [1, 2] : vector<1x8x128xf32> to vector<1xf32>
      %29 = vector.shape_cast %28 : vector<1xf32> to vector<1x1x1xf32>
      %30 = vector.extract %29[0, 0, 0] : f32 from vector<1x1x1xf32>
      %c0_12 = arith.constant 0 : index
      %31 = memref.load %arg9[%c0_12] : memref<1xf32, #tpu.memory_space<smem>>
      memref.store %30, %arg9[%c0_12] : memref<1xf32, #tpu.memory_space<smem>>
    } else {
    }
    return
  }
  func.func @transform_0(%arg0: i32) -> (i32, i32) {
    %c0_i32 = arith.constant 0 : i32
    %0 = arith.subi %arg0, %c0_i32 : i32
    %c0_i32_0 = arith.constant 0 : i32
    %c0_i32_1 = arith.constant 0 : i32
    %1 = arith.maxsi %c0_i32_0, %0 : i32
    %2 = arith.minsi %c0_i32_1, %1 : i32
    %c0_i32_2 = arith.constant 0 : i32
    %c0_i32_3 = arith.constant 0 : i32
    return %2, %c0_i32_2 : i32, i32
  }
  func.func @transform_1(%arg0: i32) -> (i32, i32) {
    %c0_i32 = arith.constant 0 : i32
    %0 = arith.subi %arg0, %c0_i32 : i32
    %c0_i32_0 = arith.constant 0 : i32
    %c0_i32_1 = arith.constant 0 : i32
    %1 = arith.maxsi %c0_i32_0, %0 : i32
    %2 = arith.minsi %c0_i32_1, %1 : i32
    %c0_i32_2 = arith.constant 0 : i32
    %c0_i32_3 = arith.constant 0 : i32
    return %2, %c0_i32_2 : i32, i32
  }
  func.func @transform_2(%arg0: i32) -> (i32, i32) {
    %c1_i32 = arith.constant 1 : i32
    %0 = arith.subi %arg0, %c1_i32 : i32
    %c0_i32 = arith.constant 0 : i32
    %c0_i32_0 = arith.constant 0 : i32
    %1 = arith.maxsi %c0_i32, %0 : i32
    %2 = arith.minsi %c0_i32_0, %1 : i32
    %c0_i32_1 = arith.constant 0 : i32
    %c0_i32_2 = arith.constant 0 : i32
    return %2, %c0_i32_1 : i32, i32
  }
  func.func @transform_3(%arg0: i32) -> (i32, i32) {
    %c1_i32 = arith.constant 1 : i32
    %0 = arith.subi %arg0, %c1_i32 : i32
    %c0_i32 = arith.constant 0 : i32
    %c0_i32_0 = arith.constant 0 : i32
    %1 = arith.maxsi %c0_i32, %0 : i32
    %2 = arith.minsi %c0_i32_0, %1 : i32
    %c0_i32_1 = arith.constant 0 : i32
    %c0_i32_2 = arith.constant 0 : i32
    return %2, %c0_i32_1 : i32, i32
  }
  func.func @transform_4(%arg0: i32) -> (i32, i32) {
    %c2_i32 = arith.constant 2 : i32
    %0 = arith.subi %arg0, %c2_i32 : i32
    %c0_i32 = arith.constant 0 : i32
    %c0_i32_0 = arith.constant 0 : i32
    %1 = arith.maxsi %c0_i32, %0 : i32
    %2 = arith.minsi %c0_i32_0, %1 : i32
    %c0_i32_1 = arith.constant 0 : i32
    %c0_i32_2 = arith.constant 0 : i32
    return %2, %c0_i32_1 : i32, i32
  }
  func.func @transform_5(%arg0: i32) -> (i32, i32) {
    %c2_i32 = arith.constant 2 : i32
    %0 = arith.subi %arg0, %c2_i32 : i32
    %c0_i32 = arith.constant 0 : i32
    %c0_i32_0 = arith.constant 0 : i32
    %1 = arith.maxsi %c0_i32, %0 : i32
    %2 = arith.minsi %c0_i32_0, %1 : i32
    %c0_i32_1 = arith.constant 0 : i32
    %c0_i32_2 = arith.constant 0 : i32
    return %2, %c0_i32_1 : i32, i32
  }
  func.func @transform_6(%arg0: i32) -> (i32, i32) {
    %c3_i32 = arith.constant 3 : i32
    %0 = arith.subi %arg0, %c3_i32 : i32
    %c0_i32 = arith.constant 0 : i32
    %c0_i32_0 = arith.constant 0 : i32
    %1 = arith.maxsi %c0_i32, %0 : i32
    %2 = arith.minsi %c0_i32_0, %1 : i32
    %c0_i32_1 = arith.constant 0 : i32
    %c0_i32_2 = arith.constant 0 : i32
    return %2, %c0_i32_1 : i32, i32
  }
  func.func @transform_7(%arg0: i32) -> (i32, i32) {
    %c3_i32 = arith.constant 3 : i32
    %0 = arith.subi %arg0, %c3_i32 : i32
    %c0_i32 = arith.constant 0 : i32
    %c0_i32_0 = arith.constant 0 : i32
    %1 = arith.maxsi %c0_i32, %0 : i32
    %2 = arith.minsi %c0_i32_0, %1 : i32
    %c0_i32_1 = arith.constant 0 : i32
    %c0_i32_2 = arith.constant 0 : i32
    return %2, %c0_i32_1 : i32, i32
  }
  func.func @transform_8(%arg0: i32) -> i32 {
    %c0_i32 = arith.constant 0 : i32
    %c0_i32_0 = arith.constant 0 : i32
    return %c0_i32 : i32
  }
}

</mosaic_0001>

<llo_original>
// kernel: tpu_custom_call.1
$region0: #{tpu_custom_call.1}
  #allocation0 [shape = 'u32[]', space=smem, size = 0x4, offset = 0x4, fixed_abs, tag = 'smem constant byte address 0x4 - core index']
  #allocation1 [shape = 'u32[144,128]{1,0:T(1,128)}', space=vmem, size = 0x12000, scoped, tag = 'internal scratch']
  #allocation2 [shape = 'f32[8,128]{1,0:T(8,128)}', space=vmem, size = 0x1000, scoped, tag = 'scratch operand']
  %s0 = inlined_call_operand.hbm [shape: f32[1024,128], index: 0, kind: input, shape index: {}]
  %s1 = inlined_call_operand.hbm [shape: f32[1024,128], index: 1, kind: input, shape index: {}]
  %s2 = inlined_call_operand.hbm [shape: f32[512,128], index: 2, kind: input, shape index: {}]
  %s3 = inlined_call_operand.hbm [shape: f32[512,128], index: 3, kind: input, shape index: {}]
  %s4 = inlined_call_operand.hbm [shape: f32[256,128], index: 4, kind: input, shape index: {}]
  %s5 = inlined_call_operand.hbm [shape: f32[256,128], index: 5, kind: input, shape index: {}]
  %s6 = inlined_call_operand.hbm [shape: f32[128,128], index: 6, kind: input, shape index: {}]
  %s7 = inlined_call_operand.hbm [shape: f32[128,128], index: 7, kind: input, shape index: {}]
  %s8 = inlined_call_operand.hbm [shape: f32[1], index: 8, kind: output, shape index: {}]
  %s9 = sld [smem:[#allocation0]]
  $region121: #{tpu_custom_call.1} parent=0
    _
  %s11 = ssub.s32 1, %s9
  %s12 = scalar_select 0, %s11, %s9
  $region1: #{tpu_custom_call.1} parent=0
    #allocation3 [shape = 'u8[1048576]{0}', space=vmem, size = 0x100000, scoped, tag = 'input window, operand 0']
    #allocation4 [shape = 's32[2]{0}', space=sflag, size = 0x8, scoped, tag = 'scoped memory for tpu_custom_call.1']
    #allocation5 [shape = 's32[2]{0}', space=sflag, size = 0x8, scoped, tag = 'scoped memory for tpu_custom_call.1']
    #allocation6 [shape = 'u8[1048576]{0}', space=vmem, size = 0x100000, scoped, tag = 'input window, operand 1']
    #allocation7 [shape = 's32[2]{0}', space=sflag, size = 0x8, scoped, tag = 'scoped memory for tpu_custom_call.1']
    #allocation8 [shape = 'u8[524288]{0}', space=vmem, size = 0x80000, scoped, tag = 'input window, operand 2']
    #allocation9 [shape = 'u8[524288]{0}', space=vmem, size = 0x80000, scoped, tag = 'input window, operand 3']
    #allocation10 [shape = 's32[2]{0}', space=sflag, size = 0x8, scoped, tag = 'scoped memory for tpu_custom_call.1']
    #allocation11 [shape = 'u8[262144]{0}', space=vmem, size = 0x40000, scoped, tag = 'input window, operand 4']
    #allocation12 [shape = 'u8[262144]{0}', space=vmem, size = 0x40000, scoped, tag = 'input window, operand 5']
    #allocation13 [shape = 's32[2]{0}', space=sflag, size = 0x8, scoped, tag = 'scoped memory for tpu_custom_call.1']
    #allocation14 [shape = 'u8[131072]{0}', space=vmem, size = 0x20000, scoped, tag = 'input window, operand 6']
    #allocation15 [shape = 'u8[131072]{0}', space=vmem, size = 0x20000, scoped, tag = 'input window, operand 7']
    #allocation16 [shape = 's32[2]{0}', space=sflag, size = 0x8, scoped, tag = 'scoped memory for tpu_custom_call.1']
    #allocation17 [shape = 'u8[512]{0}', space=smem, size = 0x200, scoped, tag = 'output window, operand 0, single buffered']
    %13 = vsyncpa [#allocation4], 0
    %s14 = scalar_lea.sflag [#allocation4], 1
    %15 = vsyncpa %s14, 0
    %16 = vsyncpa [#allocation7], 0
    %s17 = scalar_lea.sflag [#allocation7], 1
    %18 = vsyncpa %s17, 0
    %19 = vsyncpa [#allocation10], 0
    %s20 = scalar_lea.sflag [#allocation10], 1
    %21 = vsyncpa %s20, 0
    %22 = vsyncpa [#allocation13], 0
    %s23 = scalar_lea.sflag [#allocation13], 1
    %24 = vsyncpa %s23, 0
    %25 = vsyncpa [#allocation16], 0
    %s26 = scalar_lea.sflag [#allocation16], 1
    %27 = vsyncpa %s26, 0
    %28 = vsyncpa [#allocation5], 0
    loop: start=0, step=1, limit=6
    $region2: #{tpu_custom_call.1} parent=1 // loop_pre_header
      _
    $region3: #{tpu_custom_call.1} parent=1 // loop_header
      %s30 = sphi 0, %s34
      %p31 = scmp.ge.s32.totalorder %s30, 6
      %s48 = sphi 0, %s50
      %s51 = sphi 0, %s48
      %s52 = sphi 0, %s51
      %s68 = sphi 0, %s52
      %s82 = sphi 0, %s84
      %s85 = sphi 0, %s82
      %s86 = sphi 0, %s85
      %s102 = sphi 0, %s86
      %s118 = sphi 0, %s120
      %s121 = sphi 0, %s118
      %s122 = sphi 0, %s121
      %s138 = sphi 0, %s122
      %s154 = sphi 0, %s156
      %s157 = sphi 0, %s154
      %s158 = sphi 0, %s157
      %s174 = sphi 0, %s158
      %s190 = sphi 0, %s192
      %s193 = sphi 0, %s190
      %s194 = sphi 0, %s193
      %s210 = sphi 0, %s194
      %s226 = sphi 0, %s228
      %s229 = sphi 0, %s226
      %s230 = sphi 0, %s229
      %s246 = sphi 0, %s230
      %s262 = sphi 0, %s264
      %s265 = sphi 0, %s262
      %s266 = sphi 0, %s265
      %s282 = sphi 0, %s266
      %s298 = sphi 0, %s300
      %s301 = sphi 0, %s298
      %s302 = sphi 0, %s301
      %s318 = sphi 0, %s302
      %s322 = sphi 0, %s322
      %s324 = sphi 0, %s322
      %s325 = sphi 0, %s324
      %s339 = sphi 0, %s325
    $region4: #{tpu_custom_call.1} parent=1 // loop_header_branch
      %33 = sbr.rel (%p31) target = $region8
    $region5: #{tpu_custom_call.1} parent=1 // loop_body
      %s35 = ssub.s32 %s30, 1
      %s36 = ssub.s32 %s30, 2
      %s37 = sadd.s32 %s30, 1
      %p38 = scmp.gt.s32.totalorder %s30, 0
      %s39 = scalar_select %p38, %s30, 0
      %p40 = scmp.lt.s32.totalorder %s39, 0
      %s41 = scalar_select %p40, %s39, 0
      %p42 = scmp.gt.s32.totalorder %s37, 0
      %s43 = scalar_select %p42, %s37, 0
      %p44 = scmp.lt.s32.totalorder %s43, 0
      %s45 = scalar_select %p44, %s43, 0
      %s46 = ssub.s32 %s41, %s45
      %p47 = scmp.eq.s32.totalorder %s46, 0
      %s49 = sadd.s32 %s48, 1
      %s50 = scalar_select %p47, %s48, %s49
      %p53 = pneg %p47
      %p54 = scmp.eq.s32.totalorder %s30, 3
      %p55 = por %p53, %p54
      %p56 = scmp.ne.s32.totalorder %s48, %s51
      %p57 = scmp.eq.s32.totalorder %s30, 0
      %p58 = por %p56, %p57
      %p59 = scmp.ne.s32.totalorder %s48, %s51
      %p60 = scmp.eq.s32.totalorder %s35, 3
      %p61 = por %p59, %p60
      %p62 = scmp.ne.s32.totalorder %s51, %s52
      %p63 = scmp.eq.s32.totalorder %s35, 0
      %p64 = por %p62, %p63
      %p65 = scmp.ne.s32.totalorder %s51, %s52
      %p66 = scmp.eq.s32.totalorder %s36, 3
      %p67 = por %p65, %p66
      %p69 = scmp.ne.s32.totalorder %s52, %s68
      %p70 = scmp.eq.s32.totalorder %s36, 0
      %p71 = por %p69, %p70
      %p72 = scmp.gt.s32.totalorder %s30, 0
      %s73 = scalar_select %p72, %s30, 0
      %p74 = scmp.lt.s32.totalorder %s73, 0
      %s75 = scalar_select %p74, %s73, 0
      %p76 = scmp.gt.s32.totalorder %s37, 0
      %s77 = scalar_select %p76, %s37, 0
      %p78 = scmp.lt.s32.totalorder %s77, 0
      %s79 = scalar_select %p78, %s77, 0
      %s80 = ssub.s32 %s75, %s79
      %p81 = scmp.eq.s32.totalorder %s80, 0
      %s83 = sadd.s32 %s82, 1
      %s84 = scalar_select %p81, %s82, %s83
      %p87 = pneg %p81
      %p88 = scmp.eq.s32.totalorder %s30, 3
      %p89 = por %p87, %p88
      %p90 = scmp.ne.s32.totalorder %s82, %s85
      %p91 = scmp.eq.s32.totalorder %s30, 0
      %p92 = por %p90, %p91
      %p93 = scmp.ne.s32.totalorder %s82, %s85
      %p94 = scmp.eq.s32.totalorder %s35, 3
      %p95 = por %p93, %p94
      %p96 = scmp.ne.s32.totalorder %s85, %s86
      %p97 = scmp.eq.s32.totalorder %s35, 0
      %p98 = por %p96, %p97
      %p99 = scmp.ne.s32.totalorder %s85, %s86
      %p100 = scmp.eq.s32.totalorder %s36, 3
      %p101 = por %p99, %p100
      %p103 = scmp.ne.s32.totalorder %s86, %s102
      %p104 = scmp.eq.s32.totalorder %s36, 0
      %p105 = por %p103, %p104
      %s106 = ssub.s32 %s30, 1
      %p107 = scmp.gt.s32.totalorder %s106, 0
      %s108 = scalar_select %p107, %s106, 0
      %p109 = scmp.lt.s32.totalorder %s108, 0
      %s110 = scalar_select %p109, %s108, 0
      %s111 = ssub.s32 %s37, 1
      %p112 = scmp.gt.s32.totalorder %s111, 0
      %s113 = scalar_select %p112, %s111, 0
      %p114 = scmp.lt.s32.totalorder %s113, 0
      %s115 = scalar_select %p114, %s113, 0
      %s116 = ssub.s32 %s110, %s115
      %p117 = scmp.eq.s32.totalorder %s116, 0
      %s119 = sadd.s32 %s118, 1
      %s120 = scalar_select %p117, %s118, %s119
      %p123 = pneg %p117
      %p124 = scmp.eq.s32.totalorder %s30, 3
      %p125 = por %p123, %p124
      %p126 = scmp.ne.s32.totalorder %s118, %s121
      %p127 = scmp.eq.s32.totalorder %s30, 0
      %p128 = por %p126, %p127
      %p129 = scmp.ne.s32.totalorder %s118, %s121
      %p130 = scmp.eq.s32.totalorder %s35, 3
      %p131 = por %p129, %p130
      %p132 = scmp.ne.s32.totalorder %s121, %s122
      %p133 = scmp.eq.s32.totalorder %s35, 0
      %p134 = por %p132, %p133
      %p135 = scmp.ne.s32.totalorder %s121, %s122
      %p136 = scmp.eq.s32.totalorder %s36, 3
      %p137 = por %p135, %p136
      %p139 = scmp.ne.s32.totalorder %s122, %s138
      %p140 = scmp.eq.s32.totalorder %s36, 0
      %p141 = por %p139, %p140
      %s142 = ssub.s32 %s30, 1
      %p143 = scmp.gt.s32.totalorder %s142, 0
      %s144 = scalar_select %p143, %s142, 0
      %p145 = scmp.lt.s32.totalorder %s144, 0
      %s146 = scalar_select %p145, %s144, 0
      %s147 = ssub.s32 %s37, 1
      %p148 = scmp.gt.s32.totalorder %s147, 0
      %s149 = scalar_select %p148, %s147, 0
      %p150 = scmp.lt.s32.totalorder %s149, 0
      %s151 = scalar_select %p150, %s149, 0
      %s152 = ssub.s32 %s146, %s151
      %p153 = scmp.eq.s32.totalorder %s152, 0
      %s155 = sadd.s32 %s154, 1
      %s156 = scalar_select %p153, %s154, %s155
      %p159 = pneg %p153
      %p160 = scmp.eq.s32.totalorder %s30, 3
      %p161 = por %p159, %p160
      %p162 = scmp.ne.s32.totalorder %s154, %s157
      %p163 = scmp.eq.s32.totalorder %s30, 0
      %p164 = por %p162, %p163
      %p165 = scmp.ne.s32.totalorder %s154, %s157
      %p166 = scmp.eq.s32.totalorder %s35, 3
      %p167 = por %p165, %p166
      %p168 = scmp.ne.s32.totalorder %s157, %s158
      %p169 = scmp.eq.s32.totalorder %s35, 0
      %p170 = por %p168, %p169
      %p171 = scmp.ne.s32.totalorder %s157, %s158
      %p172 = scmp.eq.s32.totalorder %s36, 3
      %p173 = por %p171, %p172
      %p175 = scmp.ne.s32.totalorder %s158, %s174
      %p176 = scmp.eq.s32.totalorder %s36, 0
      %p177 = por %p175, %p176
      %s178 = ssub.s32 %s30, 2
      %p179 = scmp.gt.s32.totalorder %s178, 0
      %s180 = scalar_select %p179, %s178, 0
      %p181 = scmp.lt.s32.totalorder %s180, 0
      %s182 = scalar_select %p181, %s180, 0
      %s183 = ssub.s32 %s37, 2
      %p184 = scmp.gt.s32.totalorder %s183, 0
      %s185 = scalar_select %p184, %s183, 0
      %p186 = scmp.lt.s32.totalorder %s185, 0
      %s187 = scalar_select %p186, %s185, 0
      %s188 = ssub.s32 %s182, %s187
      %p189 = scmp.eq.s32.totalorder %s188, 0
      %s191 = sadd.s32 %s190, 1
      %s192 = scalar_select %p189, %s190, %s191
      %p195 = pneg %p189
      %p196 = scmp.eq.s32.totalorder %s30, 3
      %p197 = por %p195, %p196
      %p198 = scmp.ne.s32.totalorder %s190, %s193
      %p199 = scmp.eq.s32.totalorder %s30, 0
      %p200 = por %p198, %p199
      %p201 = scmp.ne.s32.totalorder %s190, %s193
      %p202 = scmp.eq.s32.totalorder %s35, 3
      %p203 = por %p201, %p202
      %p204 = scmp.ne.s32.totalorder %s193, %s194
      %p205 = scmp.eq.s32.totalorder %s35, 0
      %p206 = por %p204, %p205
      %p207 = scmp.ne.s32.totalorder %s193, %s194
      %p208 = scmp.eq.s32.totalorder %s36, 3
      %p209 = por %p207, %p208
      %p211 = scmp.ne.s32.totalorder %s194, %s210
      %p212 = scmp.eq.s32.totalorder %s36, 0
      %p213 = por %p211, %p212
      %s214 = ssub.s32 %s30, 2
      %p215 = scmp.gt.s32.totalorder %s214, 0
      %s216 = scalar_select %p215, %s214, 0
      %p217 = scmp.lt.s32.totalorder %s216, 0
      %s218 = scalar_select %p217, %s216, 0
      %s219 = ssub.s32 %s37, 2
      %p220 = scmp.gt.s32.totalorder %s219, 0
      %s221 = scalar_select %p220, %s219, 0
      %p222 = scmp.lt.s32.totalorder %s221, 0
      %s223 = scalar_select %p222, %s221, 0
      %s224 = ssub.s32 %s218, %s223
      %p225 = scmp.eq.s32.totalorder %s224, 0
      %s227 = sadd.s32 %s226, 1
      %s228 = scalar_select %p225, %s226, %s227
      %p231 = pneg %p225
      %p232 = scmp.eq.s32.totalorder %s30, 3
      %p233 = por %p231, %p232
      %p234 = scmp.ne.s32.totalorder %s226, %s229
      %p235 = scmp.eq.s32.totalorder %s30, 0
      %p236 = por %p234, %p235
      %p237 = scmp.ne.s32.totalorder %s226, %s229
      %p238 = scmp.eq.s32.totalorder %s35, 3
      %p239 = por %p237, %p238
      %p240 = scmp.ne.s32.totalorder %s229, %s230
      %p241 = scmp.eq.s32.totalorder %s35, 0
      %p242 = por %p240, %p241
      %p243 = scmp.ne.s32.totalorder %s229, %s230
      %p244 = scmp.eq.s32.totalorder %s36, 3
      %p245 = por %p243, %p244
      %p247 = scmp.ne.s32.totalorder %s230, %s246
      %p248 = scmp.eq.s32.totalorder %s36, 0
      %p249 = por %p247, %p248
      %s250 = ssub.s32 %s30, 3
      %p251 = scmp.gt.s32.totalorder %s250, 0
      %s252 = scalar_select %p251, %s250, 0
      %p253 = scmp.lt.s32.totalorder %s252, 0
      %s254 = scalar_select %p253, %s252, 0
      %s255 = ssub.s32 %s37, 3
      %p256 = scmp.gt.s32.totalorder %s255, 0
      %s257 = scalar_select %p256, %s255, 0
      %p258 = scmp.lt.s32.totalorder %s257, 0
      %s259 = scalar_select %p258, %s257, 0
      %s260 = ssub.s32 %s254, %s259
      %p261 = scmp.eq.s32.totalorder %s260, 0
      %s263 = sadd.s32 %s262, 1
      %s264 = scalar_select %p261, %s262, %s263
      %p267 = pneg %p261
      %p268 = scmp.eq.s32.totalorder %s30, 3
      %p269 = por %p267, %p268
      %p270 = scmp.ne.s32.totalorder %s262, %s265
      %p271 = scmp.eq.s32.totalorder %s30, 0
      %p272 = por %p270, %p271
      %p273 = scmp.ne.s32.totalorder %s262, %s265
      %p274 = scmp.eq.s32.totalorder %s35, 3
      %p275 = por %p273, %p274
      %p276 = scmp.ne.s32.totalorder %s265, %s266
      %p277 = scmp.eq.s32.totalorder %s35, 0
      %p278 = por %p276, %p277
      %p279 = scmp.ne.s32.totalorder %s265, %s266
      %p280 = scmp.eq.s32.totalorder %s36, 3
      %p281 = por %p279, %p280
      %p283 = scmp.ne.s32.totalorder %s266, %s282
      %p284 = scmp.eq.s32.totalorder %s36, 0
      %p285 = por %p283, %p284
      %s286 = ssub.s32 %s30, 3
      %p287 = scmp.gt.s32.totalorder %s286, 0
      %s288 = scalar_select %p287, %s286, 0
      %p289 = scmp.lt.s32.totalorder %s288, 0
      %s290 = scalar_select %p289, %s288, 0
      %s291 = ssub.s32 %s37, 3
      %p292 = scmp.gt.s32.totalorder %s291, 0
      %s293 = scalar_select %p292, %s291, 0
      %p294 = scmp.lt.s32.totalorder %s293, 0
      %s295 = scalar_select %p294, %s293, 0
      %s296 = ssub.s32 %s290, %s295
      %p297 = scmp.eq.s32.totalorder %s296, 0
      %s299 = sadd.s32 %s298, 1
      %s300 = scalar_select %p297, %s298, %s299
      %p303 = pneg %p297
      %p304 = scmp.eq.s32.totalorder %s30, 3
      %p305 = por %p303, %p304
      %p306 = scmp.ne.s32.totalorder %s298, %s301
      %p307 = scmp.eq.s32.totalorder %s30, 0
      %p308 = por %p306, %p307
      %p309 = scmp.ne.s32.totalorder %s298, %s301
      %p310 = scmp.eq.s32.totalorder %s35, 3
      %p311 = por %p309, %p310
      %p312 = scmp.ne.s32.totalorder %s301, %s302
      %p313 = scmp.eq.s32.totalorder %s35, 0
      %p314 = por %p312, %p313
      %p315 = scmp.ne.s32.totalorder %s301, %s302
      %p316 = scmp.eq.s32.totalorder %s36, 3
      %p317 = por %p315, %p316
      %p319 = scmp.ne.s32.totalorder %s302, %s318
      %p320 = scmp.eq.s32.totalorder %s36, 0
      %p321 = por %p319, %p320
      %s323 = sadd.s32 %s322, 1
      %p326 = scmp.eq.s32.totalorder %s30, 3
      %p327 = scmp.ne.s32.totalorder %s322, %s324
      %p328 = scmp.eq.s32.totalorder %s30, 0
      %p329 = por %p327, %p328
      %p330 = scmp.ne.s32.totalorder %s322, %s324
      %p331 = scmp.eq.s32.totalorder %s35, 3
      %p332 = por %p330, %p331
      %p333 = scmp.ne.s32.totalorder %s324, %s325
      %p334 = scmp.eq.s32.totalorder %s35, 0
      %p335 = por %p333, %p334
      %p336 = scmp.ne.s32.totalorder %s324, %s325
      %p337 = scmp.eq.s32.totalorder %s36, 3
      %p338 = por %p336, %p337
      %p340 = scmp.ne.s32.totalorder %s325, %s339
      %p341 = scmp.eq.s32.totalorder %s36, 0
      %p342 = por %p340, %p341
      %p343 = scmp.le.s32.totalorder 1, %s30
      %p344 = scmp.lt.s32.totalorder %s30, 5
      %p345 = pnand %p343, %p344
      %p346 = pneg %p345
      // Predicated region
      $region9: #{tpu_custom_call.1} parent=5 // pred_check
        _
      $region10: #{tpu_custom_call.1} parent=5 // pred_check_branch
        %348 = sbr.rel (%p345) target = $region12
      $region11: #{tpu_custom_call.1} parent=5 // pred_region
        %s349 = ssub.s32 %s30, 1
      $region12: #{tpu_custom_call.1} parent=5 // pred_fallthru
        _
      %p350 = scmp.lt.s32.totalorder %s30, 4
      // Predicated region
      $region13: #{tpu_custom_call.1} parent=5 // pred_check
        %p351 = pneg %p350
      $region14: #{tpu_custom_call.1} parent=5 // pred_check_branch
        %353 = sbr.rel (%p351) target = $region16
      $region15: #{tpu_custom_call.1} parent=5 // pred_region
        // Predicated region
        $region17: #{tpu_custom_call.1} parent=15 // pred_check
          %p354 = pneg %p58
        $region18: #{tpu_custom_call.1} parent=15 // pred_check_branch
          %356 = sbr.rel (%p354) target = $region20
        $region19: #{tpu_custom_call.1} parent=15 // pred_region
          %s357 = sand.u32 %s48, 1
          %s358 = scalar_lea.sflag [#allocation4], %s357
          %s359 = sand.u32 %s48, 1
          %s360 = smul.addr %s359, 1024
          %s361 = scalar_lea.vmem [#allocation3], %s360
          %p362 = scmp.gt.s32.totalorder %s30, 0
          %s363 = scalar_select %p362, %s30, 0
          %p364 = scmp.lt.s32.totalorder %s363, 0
          %s365 = scalar_select %p364, %s363, 0
          %s366 = smul.u32 128, %s365
          %s368 = ssub.s32 16384, 16384
          %369 = vsyncadd %s358, %s368
          %s370 = smul.addr %s366, 128
          %s371 = scalar_lea.hbm %s0, %s370
          %s372 = sshll.u32 %s361, 4
          %s373 = int_to_ptr.vmem [resolvable:$true] %s372
          %378 = dma.hbm_to_vmem [thread:$0]  %s371, 16384, %s373, %s358, 128, 128, 8
        $region20: #{tpu_custom_call.1} parent=15 // pred_fallthru
          _
        // Predicated region
        $region21: #{tpu_custom_call.1} parent=15 // pred_check
          %p379 = pneg %p92
        $region22: #{tpu_custom_call.1} parent=15 // pred_check_branch
          %381 = sbr.rel (%p379) target = $region24
        $region23: #{tpu_custom_call.1} parent=15 // pred_region
          %s382 = sand.u32 %s30, 1
          %s383 = scalar_lea.sflag [#allocation7], %s382
          %s384 = sand.u32 %s82, 1
          %s385 = smul.addr %s384, 1024
          %s386 = scalar_lea.vmem [#allocation6], %s385
          %p387 = scmp.gt.s32.totalorder %s30, 0
          %s388 = scalar_select %p387, %s30, 0
          %p389 = scmp.lt.s32.totalorder %s388, 0
          %s390 = scalar_select %p389, %s388, 0
          %s391 = smul.u32 128, %s390
          %s393 = ssub.s32 16384, 16384
          %394 = vsyncadd %s383, %s393
          %s395 = smul.addr %s391, 128
          %s396 = scalar_lea.hbm %s1, %s395
          %s397 = sshll.u32 %s386, 4
          %s398 = int_to_ptr.vmem [resolvable:$true] %s397
          %403 = dma.hbm_to_vmem [thread:$0]  %s396, 16384, %s398, %s383, 128, 128, 8
        $region24: #{tpu_custom_call.1} parent=15 // pred_fallthru
          _
        // Predicated region
        $region25: #{tpu_custom_call.1} parent=15 // pred_check
          %p404 = pneg %p128
        $region26: #{tpu_custom_call.1} parent=15 // pred_check_branch
          %406 = sbr.rel (%p404) target = $region28
        $region27: #{tpu_custom_call.1} parent=15 // pred_region
          %s407 = sand.u32 %s30, 1
          %s408 = scalar_lea.sflag [#allocation7], %s407
          %s409 = sand.u32 %s118, 1
          %s410 = smul.addr %s409, 512
          %s411 = scalar_lea.vmem [#allocation8], %s410
          %s412 = ssub.s32 %s30, 1
          %p413 = scmp.gt.s32.totalorder %s412, 0
          %s414 = scalar_select %p413, %s412, 0
          %p415 = scmp.lt.s32.totalorder %s414, 0
          %s416 = scalar_select %p415, %s414, 0
          %s417 = smul.u32 64, %s416
          %s419 = ssub.s32 8192, 8192
          %420 = vsyncadd %s408, %s419
          %s421 = smul.addr %s417, 128
          %s422 = scalar_lea.hbm %s2, %s421
          %s423 = sshll.u32 %s411, 4
          %s424 = int_to_ptr.vmem [resolvable:$true] %s423
          %429 = dma.hbm_to_vmem [thread:$0]  %s422, 8192, %s424, %s408, 128, 128, 8
        $region28: #{tpu_custom_call.1} parent=15 // pred_fallthru
          _
        // Predicated region
        $region29: #{tpu_custom_call.1} parent=15 // pred_check
          %p430 = pneg %p164
        $region30: #{tpu_custom_call.1} parent=15 // pred_check_branch
          %432 = sbr.rel (%p430) target = $region32
        $region31: #{tpu_custom_call.1} parent=15 // pred_region
          %s433 = sand.u32 %s30, 1
          %s434 = scalar_lea.sflag [#allocation10], %s433
          %s435 = sand.u32 %s154, 1
          %s436 = smul.addr %s435, 512
          %s437 = scalar_lea.vmem [#allocation9], %s436
          %s438 = ssub.s32 %s30, 1
          %p439 = scmp.gt.s32.totalorder %s438, 0
          %s440 = scalar_select %p439, %s438, 0
          %p441 = scmp.lt.s32.totalorder %s440, 0
          %s442 = scalar_select %p441, %s440, 0
          %s443 = smul.u32 64, %s442
          %s445 = ssub.s32 8192, 8192
          %446 = vsyncadd %s434, %s445
          %s447 = smul.addr %s443, 128
          %s448 = scalar_lea.hbm %s3, %s447
          %s449 = sshll.u32 %s437, 4
          %s450 = int_to_ptr.vmem [resolvable:$true] %s449
          %455 = dma.hbm_to_vmem [thread:$0]  %s448, 8192, %s450, %s434, 128, 128, 8
        $region32: #{tpu_custom_call.1} parent=15 // pred_fallthru
          _
        // Predicated region
        $region33: #{tpu_custom_call.1} parent=15 // pred_check
          %p456 = pneg %p200
        $region34: #{tpu_custom_call.1} parent=15 // pred_check_branch
          %458 = sbr.rel (%p456) target = $region36
        $region35: #{tpu_custom_call.1} parent=15 // pred_region
          %s459 = sand.u32 %s30, 1
          %s460 = scalar_lea.sflag [#allocation10], %s459
          %s461 = sand.u32 %s190, 1
          %s462 = smul.addr %s461, 256
          %s463 = scalar_lea.vmem [#allocation11], %s462
          %s464 = ssub.s32 %s30, 2
          %p465 = scmp.gt.s32.totalorder %s464, 0
          %s466 = scalar_select %p465, %s464, 0
          %p467 = scmp.lt.s32.totalorder %s466, 0
          %s468 = scalar_select %p467, %s466, 0
          %s469 = smul.u32 32, %s468
          %s471 = ssub.s32 4096, 4096
          %472 = vsyncadd %s460, %s471
          %s473 = smul.addr %s469, 128
          %s474 = scalar_lea.hbm %s4, %s473
          %s475 = sshll.u32 %s463, 4
          %s476 = int_to_ptr.vmem [resolvable:$true] %s475
          %481 = dma.hbm_to_vmem [thread:$0]  %s474, 4096, %s476, %s460, 128, 128, 8
        $region36: #{tpu_custom_call.1} parent=15 // pred_fallthru
          _
        // Predicated region
        $region37: #{tpu_custom_call.1} parent=15 // pred_check
          %p482 = pneg %p236
        $region38: #{tpu_custom_call.1} parent=15 // pred_check_branch
          %484 = sbr.rel (%p482) target = $region40
        $region39: #{tpu_custom_call.1} parent=15 // pred_region
          %s485 = sand.u32 %s30, 1
          %s486 = scalar_lea.sflag [#allocation13], %s485
          %s487 = sand.u32 %s226, 1
          %s488 = smul.addr %s487, 256
          %s489 = scalar_lea.vmem [#allocation12], %s488
          %s490 = ssub.s32 %s30, 2
          %p491 = scmp.gt.s32.totalorder %s490, 0
          %s492 = scalar_select %p491, %s490, 0
          %p493 = scmp.lt.s32.totalorder %s492, 0
          %s494 = scalar_select %p493, %s492, 0
          %s495 = smul.u32 32, %s494
          %s497 = ssub.s32 4096, 4096
          %498 = vsyncadd %s486, %s497
          %s499 = smul.addr %s495, 128
          %s500 = scalar_lea.hbm %s5, %s499
          %s501 = sshll.u32 %s489, 4
          %s502 = int_to_ptr.vmem [resolvable:$true] %s501
          %507 = dma.hbm_to_vmem [thread:$0]  %s500, 4096, %s502, %s486, 128, 128, 8
        $region40: #{tpu_custom_call.1} parent=15 // pred_fallthru
          _
        // Predicated region
        $region41: #{tpu_custom_call.1} parent=15 // pred_check
          %p508 = pneg %p272
        $region42: #{tpu_custom_call.1} parent=15 // pred_check_branch
          %510 = sbr.rel (%p508) target = $region44
        $region43: #{tpu_custom_call.1} parent=15 // pred_region
          %s511 = sand.u32 %s30, 1
          %s512 = scalar_lea.sflag [#allocation13], %s511
          %s513 = sand.u32 %s262, 1
          %s514 = smul.addr %s513, 128
          %s515 = scalar_lea.vmem [#allocation14], %s514
          %s516 = ssub.s32 %s30, 3
          %p517 = scmp.gt.s32.totalorder %s516, 0
          %s518 = scalar_select %p517, %s516, 0
          %p519 = scmp.lt.s32.totalorder %s518, 0
          %s520 = scalar_select %p519, %s518, 0
          %s521 = smul.u32 16, %s520
          %s523 = ssub.s32 2048, 2048
          %524 = vsyncadd %s512, %s523
          %s525 = smul.addr %s521, 128
          %s526 = scalar_lea.hbm %s6, %s525
          %s527 = sshll.u32 %s515, 4
          %s528 = int_to_ptr.vmem [resolvable:$true] %s527
          %533 = dma.hbm_to_vmem [thread:$0]  %s526, 2048, %s528, %s512, 128, 128, 8
        $region44: #{tpu_custom_call.1} parent=15 // pred_fallthru
          _
        // Predicated region
        $region45: #{tpu_custom_call.1} parent=15 // pred_check
          %p534 = pneg %p308
        $region46: #{tpu_custom_call.1} parent=15 // pred_check_branch
          %536 = sbr.rel (%p534) target = $region48
        $region47: #{tpu_custom_call.1} parent=15 // pred_region
          %s537 = sand.u32 %s298, 1
          %s538 = scalar_lea.sflag [#allocation16], %s537
          %s539 = sand.u32 %s298, 1
          %s540 = smul.addr %s539, 128
          %s541 = scalar_lea.vmem [#allocation15], %s540
          %s542 = ssub.s32 %s30, 3
          %p543 = scmp.gt.s32.totalorder %s542, 0
          %s544 = scalar_select %p543, %s542, 0
          %p545 = scmp.lt.s32.totalorder %s544, 0
          %s546 = scalar_select %p545, %s544, 0
          %s547 = smul.u32 16, %s546
          %s549 = ssub.s32 2048, 2048
          %550 = vsyncadd %s538, %s549
          %s551 = smul.addr %s547, 128
          %s552 = scalar_lea.hbm %s7, %s551
          %s553 = sshll.u32 %s541, 4
          %s554 = int_to_ptr.vmem [resolvable:$true] %s553
          %559 = dma.hbm_to_vmem [thread:$0]  %s552, 2048, %s554, %s538, 128, 128, 8
        $region48: #{tpu_custom_call.1} parent=15 // pred_fallthru
          _
      $region16: #{tpu_custom_call.1} parent=5 // pred_fallthru
        _
      %p560 = scmp.le.s32.totalorder 1, %s30
      %p561 = scmp.lt.s32.totalorder %s30, 5
      %p562 = pnand %p560, %p561
      %p563 = pneg %p562
      // Predicated region
      $region49: #{tpu_custom_call.1} parent=5 // pred_check
        _
      $region50: #{tpu_custom_call.1} parent=5 // pred_check_branch
        %565 = sbr.rel (%p562) target = $region52
      $region51: #{tpu_custom_call.1} parent=5 // pred_region
        %s566 = ssub.s32 %s30, 1
        %s567 = sand.u32 %s51, 1
        %s568 = scalar_lea.sflag [#allocation4], %s567
        %s569 = sand.u32 %s51, 1
        %s570 = smul.addr %s569, 1024
        %s571 = scalar_lea.vmem [#allocation3], %s570
        // Predicated region
        $region53: #{tpu_custom_call.1} parent=51 // pred_check
          %p572 = pneg %p64
        $region54: #{tpu_custom_call.1} parent=51 // pred_check_branch
          %574 = sbr.rel (%p572) target = $region56
        $region55: #{tpu_custom_call.1} parent=51 // pred_region
          %575 = dma.done %s568, 16384
        $region56: #{tpu_custom_call.1} parent=51 // pred_fallthru
          _
        %s576 = sand.u32 %s35, 1
        %s577 = scalar_lea.sflag [#allocation7], %s576
        %s578 = sand.u32 %s85, 1
        %s579 = smul.addr %s578, 1024
        %s580 = scalar_lea.vmem [#allocation6], %s579
        // Predicated region
        $region57: #{tpu_custom_call.1} parent=51 // pred_check
          %p581 = pneg %p98
        $region58: #{tpu_custom_call.1} parent=51 // pred_check_branch
          %583 = sbr.rel (%p581) target = $region60
        $region59: #{tpu_custom_call.1} parent=51 // pred_region
          %584 = dma.done %s577, 16384
        $region60: #{tpu_custom_call.1} parent=51 // pred_fallthru
          _
        %s585 = sand.u32 %s35, 1
        %s586 = scalar_lea.sflag [#allocation7], %s585
        %s587 = sand.u32 %s121, 1
        %s588 = smul.addr %s587, 512
        %s589 = scalar_lea.vmem [#allocation8], %s588
        // Predicated region
        $region61: #{tpu_custom_call.1} parent=51 // pred_check
          %p590 = pneg %p134
        $region62: #{tpu_custom_call.1} parent=51 // pred_check_branch
          %592 = sbr.rel (%p590) target = $region64
        $region63: #{tpu_custom_call.1} parent=51 // pred_region
          %593 = dma.done %s586, 8192
        $region64: #{tpu_custom_call.1} parent=51 // pred_fallthru
          _
        %s594 = sand.u32 %s35, 1
        %s595 = scalar_lea.sflag [#allocation10], %s594
        %s596 = sand.u32 %s157, 1
        %s597 = smul.addr %s596, 512
        %s598 = scalar_lea.vmem [#allocation9], %s597
        // Predicated region
        $region65: #{tpu_custom_call.1} parent=51 // pred_check
          %p599 = pneg %p170
        $region66: #{tpu_custom_call.1} parent=51 // pred_check_branch
          %601 = sbr.rel (%p599) target = $region68
        $region67: #{tpu_custom_call.1} parent=51 // pred_region
          %602 = dma.done %s595, 8192
        $region68: #{tpu_custom_call.1} parent=51 // pred_fallthru
          _
        %s603 = sand.u32 %s35, 1
        %s604 = scalar_lea.sflag [#allocation10], %s603
        %s605 = sand.u32 %s193, 1
        %s606 = smul.addr %s605, 256
        %s607 = scalar_lea.vmem [#allocation11], %s606
        // Predicated region
        $region69: #{tpu_custom_call.1} parent=51 // pred_check
          %p608 = pneg %p206
        $region70: #{tpu_custom_call.1} parent=51 // pred_check_branch
          %610 = sbr.rel (%p608) target = $region72
        $region71: #{tpu_custom_call.1} parent=51 // pred_region
          %611 = dma.done %s604, 4096
        $region72: #{tpu_custom_call.1} parent=51 // pred_fallthru
          _
        %s612 = sand.u32 %s35, 1
        %s613 = scalar_lea.sflag [#allocation13], %s612
        %s614 = sand.u32 %s229, 1
        %s615 = smul.addr %s614, 256
        %s616 = scalar_lea.vmem [#allocation12], %s615
        // Predicated region
        $region73: #{tpu_custom_call.1} parent=51 // pred_check
          %p617 = pneg %p242
        $region74: #{tpu_custom_call.1} parent=51 // pred_check_branch
          %619 = sbr.rel (%p617) target = $region76
        $region75: #{tpu_custom_call.1} parent=51 // pred_region
          %620 = dma.done %s613, 4096
        $region76: #{tpu_custom_call.1} parent=51 // pred_fallthru
          _
        %s621 = sand.u32 %s35, 1
        %s622 = scalar_lea.sflag [#allocation13], %s621
        %s623 = sand.u32 %s265, 1
        %s624 = smul.addr %s623, 128
        %s625 = scalar_lea.vmem [#allocation14], %s624
        // Predicated region
        $region77: #{tpu_custom_call.1} parent=51 // pred_check
          %p626 = pneg %p278
        $region78: #{tpu_custom_call.1} parent=51 // pred_check_branch
          %628 = sbr.rel (%p626) target = $region80
        $region79: #{tpu_custom_call.1} parent=51 // pred_region
          %629 = dma.done %s622, 2048
        $region80: #{tpu_custom_call.1} parent=51 // pred_fallthru
          _
        %s630 = sand.u32 %s301, 1
        %s631 = scalar_lea.sflag [#allocation16], %s630
        %s632 = sand.u32 %s301, 1
        %s633 = smul.addr %s632, 128
        %s634 = scalar_lea.vmem [#allocation15], %s633
        // Predicated region
        $region81: #{tpu_custom_call.1} parent=51 // pred_check
          %p635 = pneg %p314
        $region82: #{tpu_custom_call.1} parent=51 // pred_check_branch
          %637 = sbr.rel (%p635) target = $region84
        $region83: #{tpu_custom_call.1} parent=51 // pred_region
          %638 = dma.done %s631, 2048
        $region84: #{tpu_custom_call.1} parent=51 // pred_fallthru
          _
        %s639 = sand.u32 %s51, 1
        %s640 = scalar_lea.sflag [#allocation4], %s639
        %s641 = sand.u32 %s51, 1
        %s642 = smul.addr %s641, 1024
        %s643 = scalar_lea.vmem [#allocation3], %s642
        %p644 = pneg %p64
        %p645 = pneg %p61
        %s646 = sand.u32 %s35, 1
        %s647 = scalar_lea.sflag [#allocation7], %s646
        %s648 = sand.u32 %s85, 1
        %s649 = smul.addr %s648, 1024
        %s650 = scalar_lea.vmem [#allocation6], %s649
        %p651 = pneg %p98
        %p652 = pneg %p95
        %s653 = sand.u32 %s35, 1
        %s654 = scalar_lea.sflag [#allocation7], %s653
        %s655 = sand.u32 %s121, 1
        %s656 = smul.addr %s655, 512
        %s657 = scalar_lea.vmem [#allocation8], %s656
        %p658 = pneg %p134
        %p659 = pneg %p131
        %s660 = sand.u32 %s35, 1
        %s661 = scalar_lea.sflag [#allocation10], %s660
        %s662 = sand.u32 %s157, 1
        %s663 = smul.addr %s662, 512
        %s664 = scalar_lea.vmem [#allocation9], %s663
        %p665 = pneg %p170
        %p666 = pneg %p167
        %s667 = sand.u32 %s35, 1
        %s668 = scalar_lea.sflag [#allocation10], %s667
        %s669 = sand.u32 %s193, 1
        %s670 = smul.addr %s669, 256
        %s671 = scalar_lea.vmem [#allocation11], %s670
        %p672 = pneg %p206
        %p673 = pneg %p203
        %s674 = sand.u32 %s35, 1
        %s675 = scalar_lea.sflag [#allocation13], %s674
        %s676 = sand.u32 %s229, 1
        %s677 = smul.addr %s676, 256
        %s678 = scalar_lea.vmem [#allocation12], %s677
        %p679 = pneg %p242
        %p680 = pneg %p239
        %s681 = sand.u32 %s35, 1
        %s682 = scalar_lea.sflag [#allocation13], %s681
        %s683 = sand.u32 %s265, 1
        %s684 = smul.addr %s683, 128
        %s685 = scalar_lea.vmem [#allocation14], %s684
        %p686 = pneg %p278
        %p687 = pneg %p275
        %s688 = sand.u32 %s301, 1
        %s689 = scalar_lea.sflag [#allocation16], %s688
        %s690 = sand.u32 %s301, 1
        %s691 = smul.addr %s690, 128
        %s692 = scalar_lea.vmem [#allocation15], %s691
        %p693 = pneg %p314
        %p694 = pneg %p311
        %p695 = pneg %p335
        %p696 = pneg %p332
        %p697 = scmp.gt.s32.totalorder %s35, 0
        %s698 = scalar_select %p697, %s35, 0
        %p699 = scmp.lt.s32.totalorder %s698, 0
        %s700 = scalar_select %p699, %s698, 0
        %s701 = smul.u32 128, %s700
        %p702 = scmp.gt.s32.totalorder %s35, 0
        %s703 = scalar_select %p702, %s35, 0
        %p704 = scmp.lt.s32.totalorder %s703, 0
        %s705 = scalar_select %p704, %s703, 0
        %s706 = smul.u32 128, %s705
        %s707 = ssub.s32 %s35, 1
        %p708 = scmp.gt.s32.totalorder %s707, 0
        %s709 = scalar_select %p708, %s707, 0
        %p710 = scmp.lt.s32.totalorder %s709, 0
        %s711 = scalar_select %p710, %s709, 0
        %s712 = smul.u32 64, %s711
        %s713 = ssub.s32 %s35, 1
        %p714 = scmp.gt.s32.totalorder %s713, 0
        %s715 = scalar_select %p714, %s713, 0
        %p716 = scmp.lt.s32.totalorder %s715, 0
        %s717 = scalar_select %p716, %s715, 0
        %s718 = smul.u32 64, %s717
        %s719 = ssub.s32 %s35, 2
        %p720 = scmp.gt.s32.totalorder %s719, 0
        %s721 = scalar_select %p720, %s719, 0
        %p722 = scmp.lt.s32.totalorder %s721, 0
        %s723 = scalar_select %p722, %s721, 0
        %s724 = smul.u32 32, %s723
        %s725 = ssub.s32 %s35, 2
        %p726 = scmp.gt.s32.totalorder %s725, 0
        %s727 = scalar_select %p726, %s725, 0
        %p728 = scmp.lt.s32.totalorder %s727, 0
        %s729 = scalar_select %p728, %s727, 0
        %s730 = smul.u32 32, %s729
        %s731 = ssub.s32 %s35, 3
        %p732 = scmp.gt.s32.totalorder %s731, 0
        %s733 = scalar_select %p732, %s731, 0
        %p734 = scmp.lt.s32.totalorder %s733, 0
        %s735 = scalar_select %p734, %s733, 0
        %s736 = smul.u32 16, %s735
        %s737 = ssub.s32 %s35, 3
        %p738 = scmp.gt.s32.totalorder %s737, 0
        %s739 = scalar_select %p738, %s737, 0
        %p740 = scmp.lt.s32.totalorder %s739, 0
        %s741 = scalar_select %p740, %s739, 0
        %s742 = smul.u32 16, %s741
        %p743 = scmp.eq.s32.totalorder %s35, 0
        // Predicated region
        $region85: #{tpu_custom_call.1} parent=51 // pred_check
          %p744 = pneg %p743
        $region86: #{tpu_custom_call.1} parent=51 // pred_check_branch
          %746 = sbr.rel (%p744) target = $region88
        $region87: #{tpu_custom_call.1} parent=51 // pred_region
          %747 = vst [vmem:[#allocation2] sm:$0xff] 0.0
        $region88: #{tpu_custom_call.1} parent=51 // pred_fallthru
          _
        %p748 = scmp.ge.s32.totalorder %s35, 0
        %p749 = scmp.lt.s32.totalorder %s35, 1
        %p750 = pnand %p748, %p749
        %p751 = pneg %p750
        // Predicated region
        $region89: #{tpu_custom_call.1} parent=51 // pred_check
          _
        $region90: #{tpu_custom_call.1} parent=51 // pred_check_branch
          %753 = sbr.rel (%p750) target = $region92
        $region91: #{tpu_custom_call.1} parent=51 // pred_region
          %v754 = vld [vmem:[%s571] sm:$0xff]
          %v755 = vld [vmem:[%s571 + $0x8] sm:$0xff]
          %v756 = vld [vmem:[%s571 + $0x10] sm:$0xff]
          %v757 = vld [vmem:[%s571 + $0x18] sm:$0xff]
          %v758 = vld [vmem:[%s571 + $0x20] sm:$0xff]
          %v759 = vld [vmem:[%s571 + $0x28] sm:$0xff]
          %v760 = vld [vmem:[%s571 + $0x30] sm:$0xff]
          %v761 = vld [vmem:[%s571 + $0x38] sm:$0xff]
          %v762 = vld [vmem:[%s571 + $0x40] sm:$0xff]
          %v763 = vld [vmem:[%s571 + $0x48] sm:$0xff]
          %v764 = vld [vmem:[%s571 + $0x50] sm:$0xff]
          %v765 = vld [vmem:[%s571 + $0x58] sm:$0xff]
          %v766 = vld [vmem:[%s571 + $0x60] sm:$0xff]
          %v767 = vld [vmem:[%s571 + $0x68] sm:$0xff]
          %v768 = vld [vmem:[%s571 + $0x70] sm:$0xff]
          %v769 = vld [vmem:[%s571 + $0x78] sm:$0xff]
          %v770 = vld [vmem:[%s571 + $0x80] sm:$0xff]
          %v771 = vld [vmem:[%s571 + $0x88] sm:$0xff]
          %v772 = vld [vmem:[%s571 + $0x90] sm:$0xff]
          %v773 = vld [vmem:[%s571 + $0x98] sm:$0xff]
          %v774 = vld [vmem:[%s571 + $0xa0] sm:$0xff]
          %v775 = vld [vmem:[%s571 + $0xa8] sm:$0xff]
          %v776 = vld [vmem:[%s571 + $0xb0] sm:$0xff]
          %v777 = vld [vmem:[%s571 + $0xb8] sm:$0xff]
          %v778 = vld [vmem:[%s571 + $0xc0] sm:$0xff]
          %v779 = vld [vmem:[%s571 + $0xc8] sm:$0xff]
          %v780 = vld [vmem:[%s571 + $0xd0] sm:$0xff]
          %v781 = vld [vmem:[%s571 + $0xd8] sm:$0xff]
          %v782 = vld [vmem:[%s571 + $0xe0] sm:$0xff]
          %v783 = vld [vmem:[%s571 + $0xe8] sm:$0xff]
          %v784 = vld [vmem:[%s571 + $0xf0] sm:$0xff]
          %v785 = vld [vmem:[%s571 + $0xf8] sm:$0xff]
          %v786 = vld [vmem:[%s571 + $0x100] sm:$0xff]
          %v787 = vld [vmem:[%s571 + $0x108] sm:$0xff]
          %v788 = vld [vmem:[%s571 + $0x110] sm:$0xff]
          %v789 = vld [vmem:[%s571 + $0x118] sm:$0xff]
          %v790 = vld [vmem:[%s571 + $0x120] sm:$0xff]
          %v791 = vld [vmem:[%s571 + $0x128] sm:$0xff]
          %v792 = vld [vmem:[%s571 + $0x130] sm:$0xff]
          %v793 = vld [vmem:[%s571 + $0x138] sm:$0xff]
          %v794 = vld [vmem:[%s571 + $0x140] sm:$0xff]
          %v795 = vld [vmem:[%s571 + $0x148] sm:$0xff]
          %v796 = vld [vmem:[%s571 + $0x150] sm:$0xff]
          %v797 = vld [vmem:[%s571 + $0x158] sm:$0xff]
          %v798 = vld [vmem:[%s571 + $0x160] sm:$0xff]
          %v799 = vld [vmem:[%s571 + $0x168] sm:$0xff]
          %v800 = vld [vmem:[%s571 + $0x170] sm:$0xff]
          %v801 = vld [vmem:[%s571 + $0x178] sm:$0xff]
          %v802 = vld [vmem:[%s571 + $0x180] sm:$0xff]
          %v803 = vld [vmem:[%s571 + $0x188] sm:$0xff]
          %v804 = vld [vmem:[%s571 + $0x190] sm:$0xff]
          %v805 = vld [vmem:[%s571 + $0x198] sm:$0xff]
          %v806 = vld [vmem:[%s571 + $0x1a0] sm:$0xff]
          %v807 = vld [vmem:[%s571 + $0x1a8] sm:$0xff]
          %v808 = vld [vmem:[%s571 + $0x1b0] sm:$0xff]
          %v809 = vld [vmem:[%s571 + $0x1b8] sm:$0xff]
          %v810 = vld [vmem:[%s571 + $0x1c0] sm:$0xff]
          %v811 = vld [vmem:[%s571 + $0x1c8] sm:$0xff]
          %v812 = vld [vmem:[%s571 + $0x1d0] sm:$0xff]
          %v813 = vld [vmem:[%s571 + $0x1d8] sm:$0xff]
          %v814 = vld [vmem:[%s571 + $0x1e0] sm:$0xff]
          %v815 = vld [vmem:[%s571 + $0x1e8] sm:$0xff]
          %v816 = vld [vmem:[%s571 + $0x1f0] sm:$0xff]
          %v817 = vld [vmem:[%s571 + $0x1f8] sm:$0xff]
          %v818 = vld [vmem:[%s571 + $0x200] sm:$0xff]
          %v819 = vld [vmem:[%s571 + $0x208] sm:$0xff]
          %v820 = vld [vmem:[%s571 + $0x210] sm:$0xff]
          %v821 = vld [vmem:[%s571 + $0x218] sm:$0xff]
          %v822 = vld [vmem:[%s571 + $0x220] sm:$0xff]
          %v823 = vld [vmem:[%s571 + $0x228] sm:$0xff]
          %v824 = vld [vmem:[%s571 + $0x230] sm:$0xff]
          %v825 = vld [vmem:[%s571 + $0x238] sm:$0xff]
          %v826 = vld [vmem:[%s571 + $0x240] sm:$0xff]
          %v827 = vld [vmem:[%s571 + $0x248] sm:$0xff]
          %v828 = vld [vmem:[%s571 + $0x250] sm:$0xff]
          %v829 = vld [vmem:[%s571 + $0x258] sm:$0xff]
          %v830 = vld [vmem:[%s571 + $0x260] sm:$0xff]
          %v831 = vld [vmem:[%s571 + $0x268] sm:$0xff]
          %v832 = vld [vmem:[%s571 + $0x270] sm:$0xff]
          %v833 = vld [vmem:[%s571 + $0x278] sm:$0xff]
          %v834 = vld [vmem:[%s571 + $0x280] sm:$0xff]
          %v835 = vld [vmem:[%s571 + $0x288] sm:$0xff]
          %v836 = vld [vmem:[%s571 + $0x290] sm:$0xff]
          %v837 = vld [vmem:[%s571 + $0x298] sm:$0xff]
          %v838 = vld [vmem:[%s571 + $0x2a0] sm:$0xff]
          %v839 = vld [vmem:[%s571 + $0x2a8] sm:$0xff]
          %v840 = vld [vmem:[%s571 + $0x2b0] sm:$0xff]
          %v841 = vld [vmem:[%s571 + $0x2b8] sm:$0xff]
          %v842 = vld [vmem:[%s571 + $0x2c0] sm:$0xff]
          %v843 = vld [vmem:[%s571 + $0x2c8] sm:$0xff]
          %v844 = vld [vmem:[%s571 + $0x2d0] sm:$0xff]
          %v845 = vld [vmem:[%s571 + $0x2d8] sm:$0xff]
          %v846 = vld [vmem:[%s571 + $0x2e0] sm:$0xff]
          %v847 = vld [vmem:[%s571 + $0x2e8] sm:$0xff]
          %v848 = vld [vmem:[%s571 + $0x2f0] sm:$0xff]
          %v849 = vld [vmem:[%s571 + $0x2f8] sm:$0xff]
          %v850 = vld [vmem:[%s571 + $0x300] sm:$0xff]
          %v851 = vld [vmem:[%s571 + $0x308] sm:$0xff]
          %v852 = vld [vmem:[%s571 + $0x310] sm:$0xff]
          %v853 = vld [vmem:[%s571 + $0x318] sm:$0xff]
          %v854 = vld [vmem:[%s571 + $0x320] sm:$0xff]
          %v855 = vld [vmem:[%s571 + $0x328] sm:$0xff]
          %v856 = vld [vmem:[%s571 + $0x330] sm:$0xff]
          %v857 = vld [vmem:[%s571 + $0x338] sm:$0xff]
          %v858 = vld [vmem:[%s571 + $0x340] sm:$0xff]
          %v859 = vld [vmem:[%s571 + $0x348] sm:$0xff]
          %v860 = vld [vmem:[%s571 + $0x350] sm:$0xff]
          %v861 = vld [vmem:[%s571 + $0x358] sm:$0xff]
          %v862 = vld [vmem:[%s571 + $0x360] sm:$0xff]
          %v863 = vld [vmem:[%s571 + $0x368] sm:$0xff]
          %v864 = vld [vmem:[%s571 + $0x370] sm:$0xff]
          %v865 = vld [vmem:[%s571 + $0x378] sm:$0xff]
          %v866 = vld [vmem:[%s571 + $0x380] sm:$0xff]
          %v867 = vld [vmem:[%s571 + $0x388] sm:$0xff]
          %v868 = vld [vmem:[%s571 + $0x390] sm:$0xff]
          %v869 = vld [vmem:[%s571 + $0x398] sm:$0xff]
          %v870 = vld [vmem:[%s571 + $0x3a0] sm:$0xff]
          %v871 = vld [vmem:[%s571 + $0x3a8] sm:$0xff]
          %v872 = vld [vmem:[%s571 + $0x3b0] sm:$0xff]
          %v873 = vld [vmem:[%s571 + $0x3b8] sm:$0xff]
          %v874 = vld [vmem:[%s571 + $0x3c0] sm:$0xff]
          %v875 = vld [vmem:[%s571 + $0x3c8] sm:$0xff]
          %v876 = vld [vmem:[%s571 + $0x3d0] sm:$0xff]
          %v877 = vld [vmem:[%s571 + $0x3d8] sm:$0xff]
          %v878 = vld [vmem:[%s571 + $0x3e0] sm:$0xff]
          %v879 = vld [vmem:[%s571 + $0x3e8] sm:$0xff]
          %v880 = vld [vmem:[%s571 + $0x3f0] sm:$0xff]
          %v881 = vld [vmem:[%s571 + $0x3f8] sm:$0xff]
          %v882 = vld [vmem:[%s580] sm:$0xff]
          %v883 = vld [vmem:[%s580 + $0x8] sm:$0xff]
          %v884 = vld [vmem:[%s580 + $0x10] sm:$0xff]
          %v885 = vld [vmem:[%s580 + $0x18] sm:$0xff]
          %v886 = vld [vmem:[%s580 + $0x20] sm:$0xff]
          %v887 = vld [vmem:[%s580 + $0x28] sm:$0xff]
          %v888 = vld [vmem:[%s580 + $0x30] sm:$0xff]
          %v889 = vld [vmem:[%s580 + $0x38] sm:$0xff]
          %v890 = vld [vmem:[%s580 + $0x40] sm:$0xff]
          %v891 = vld [vmem:[%s580 + $0x48] sm:$0xff]
          %v892 = vld [vmem:[%s580 + $0x50] sm:$0xff]
          %v893 = vld [vmem:[%s580 + $0x58] sm:$0xff]
          %v894 = vld [vmem:[%s580 + $0x60] sm:$0xff]
          %v895 = vld [vmem:[%s580 + $0x68] sm:$0xff]
          %v896 = vld [vmem:[%s580 + $0x70] sm:$0xff]
          %v897 = vld [vmem:[%s580 + $0x78] sm:$0xff]
          %v898 = vld [vmem:[%s580 + $0x80] sm:$0xff]
          %v899 = vld [vmem:[%s580 + $0x88] sm:$0xff]
          %v900 = vld [vmem:[%s580 + $0x90] sm:$0xff]
          %v901 = vld [vmem:[%s580 + $0x98] sm:$0xff]
          %v902 = vld [vmem:[%s580 + $0xa0] sm:$0xff]
          %v903 = vld [vmem:[%s580 + $0xa8] sm:$0xff]
          %v904 = vld [vmem:[%s580 + $0xb0] sm:$0xff]
          %v905 = vld [vmem:[%s580 + $0xb8] sm:$0xff]
          %v906 = vld [vmem:[%s580 + $0xc0] sm:$0xff]
          %v907 = vld [vmem:[%s580 + $0xc8] sm:$0xff]
          %v908 = vld [vmem:[%s580 + $0xd0] sm:$0xff]
          %v909 = vld [vmem:[%s580 + $0xd8] sm:$0xff]
          %v910 = vld [vmem:[%s580 + $0xe0] sm:$0xff]
          %v911 = vld [vmem:[%s580 + $0xe8] sm:$0xff]
          %v912 = vld [vmem:[%s580 + $0xf0] sm:$0xff]
          %v913 = vld [vmem:[%s580 + $0xf8] sm:$0xff]
          %v914 = vld [vmem:[%s580 + $0x100] sm:$0xff]
          %v915 = vld [vmem:[%s580 + $0x108] sm:$0xff]
          %v916 = vld [vmem:[%s580 + $0x110] sm:$0xff]
          %v917 = vld [vmem:[%s580 + $0x118] sm:$0xff]
          %v918 = vld [vmem:[%s580 + $0x120] sm:$0xff]
          %v919 = vld [vmem:[%s580 + $0x128] sm:$0xff]
          %v920 = vld [vmem:[%s580 + $0x130] sm:$0xff]
          %v921 = vld [vmem:[%s580 + $0x138] sm:$0xff]
          %v922 = vld [vmem:[%s580 + $0x140] sm:$0xff]
          %v923 = vld [vmem:[%s580 + $0x148] sm:$0xff]
          %v924 = vld [vmem:[%s580 + $0x150] sm:$0xff]
          %v925 = vld [vmem:[%s580 + $0x158] sm:$0xff]
          %v926 = vld [vmem:[%s580 + $0x160] sm:$0xff]
          %v927 = vld [vmem:[%s580 + $0x168] sm:$0xff]
          %v928 = vld [vmem:[%s580 + $0x170] sm:$0xff]
          %v929 = vld [vmem:[%s580 + $0x178] sm:$0xff]
          %v930 = vld [vmem:[%s580 + $0x180] sm:$0xff]
          %v931 = vld [vmem:[%s580 + $0x188] sm:$0xff]
          %v932 = vld [vmem:[%s580 + $0x190] sm:$0xff]
          %v933 = vld [vmem:[%s580 + $0x198] sm:$0xff]
          %v934 = vld [vmem:[%s580 + $0x1a0] sm:$0xff]
          %v935 = vld [vmem:[%s580 + $0x1a8] sm:$0xff]
          %v936 = vld [vmem:[%s580 + $0x1b0] sm:$0xff]
          %v937 = vld [vmem:[%s580 + $0x1b8] sm:$0xff]
          %v938 = vld [vmem:[%s580 + $0x1c0] sm:$0xff]
          %v939 = vld [vmem:[%s580 + $0x1c8] sm:$0xff]
          %v940 = vld [vmem:[%s580 + $0x1d0] sm:$0xff]
          %v941 = vld [vmem:[%s580 + $0x1d8] sm:$0xff]
          %v942 = vld [vmem:[%s580 + $0x1e0] sm:$0xff]
          %v943 = vld [vmem:[%s580 + $0x1e8] sm:$0xff]
          %v944 = vld [vmem:[%s580 + $0x1f0] sm:$0xff]
          %v945 = vld [vmem:[%s580 + $0x1f8] sm:$0xff]
          %v946 = vld [vmem:[%s580 + $0x200] sm:$0xff]
          %v947 = vld [vmem:[%s580 + $0x208] sm:$0xff]
          %v948 = vld [vmem:[%s580 + $0x210] sm:$0xff]
          %v949 = vld [vmem:[%s580 + $0x218] sm:$0xff]
          %v950 = vld [vmem:[%s580 + $0x220] sm:$0xff]
          %v951 = vld [vmem:[%s580 + $0x228] sm:$0xff]
          %v952 = vld [vmem:[%s580 + $0x230] sm:$0xff]
          %v953 = vld [vmem:[%s580 + $0x238] sm:$0xff]
          %v954 = vld [vmem:[%s580 + $0x240] sm:$0xff]
          %v955 = vld [vmem:[%s580 + $0x248] sm:$0xff]
          %v956 = vld [vmem:[%s580 + $0x250] sm:$0xff]
          %v957 = vld [vmem:[%s580 + $0x258] sm:$0xff]
          %v958 = vld [vmem:[%s580 + $0x260] sm:$0xff]
          %v959 = vld [vmem:[%s580 + $0x268] sm:$0xff]
          %v960 = vld [vmem:[%s580 + $0x270] sm:$0xff]
          %v961 = vld [vmem:[%s580 + $0x278] sm:$0xff]
          %v962 = vld [vmem:[%s580 + $0x280] sm:$0xff]
          %v963 = vld [vmem:[%s580 + $0x288] sm:$0xff]
          %v964 = vld [vmem:[%s580 + $0x290] sm:$0xff]
          %v965 = vld [vmem:[%s580 + $0x298] sm:$0xff]
          %v966 = vld [vmem:[%s580 + $0x2a0] sm:$0xff]
          %v967 = vld [vmem:[%s580 + $0x2a8] sm:$0xff]
          %v968 = vld [vmem:[%s580 + $0x2b0] sm:$0xff]
          %v969 = vld [vmem:[%s580 + $0x2b8] sm:$0xff]
          %v970 = vld [vmem:[%s580 + $0x2c0] sm:$0xff]
          %v971 = vld [vmem:[%s580 + $0x2c8] sm:$0xff]
          %v972 = vld [vmem:[%s580 + $0x2d0] sm:$0xff]
          %v973 = vld [vmem:[%s580 + $0x2d8] sm:$0xff]
          %v974 = vld [vmem:[%s580 + $0x2e0] sm:$0xff]
          %v975 = vld [vmem:[%s580 + $0x2e8] sm:$0xff]
          %v976 = vld [vmem:[%s580 + $0x2f0] sm:$0xff]
          %v977 = vld [vmem:[%s580 + $0x2f8] sm:$0xff]
          %v978 = vld [vmem:[%s580 + $0x300] sm:$0xff]
          %v979 = vld [vmem:[%s580 + $0x308] sm:$0xff]
          %v980 = vld [vmem:[%s580 + $0x310] sm:$0xff]
          %v981 = vld [vmem:[%s580 + $0x318] sm:$0xff]
          %v982 = vld [vmem:[%s580 + $0x320] sm:$0xff]
          %v983 = vld [vmem:[%s580 + $0x328] sm:$0xff]
          %v984 = vld [vmem:[%s580 + $0x330] sm:$0xff]
          %v985 = vld [vmem:[%s580 + $0x338] sm:$0xff]
          %v986 = vld [vmem:[%s580 + $0x340] sm:$0xff]
          %v987 = vld [vmem:[%s580 + $0x348] sm:$0xff]
          %v988 = vld [vmem:[%s580 + $0x350] sm:$0xff]
          %v989 = vld [vmem:[%s580 + $0x358] sm:$0xff]
          %v990 = vld [vmem:[%s580 + $0x360] sm:$0xff]
          %v991 = vld [vmem:[%s580 + $0x368] sm:$0xff]
          %v992 = vld [vmem:[%s580 + $0x370] sm:$0xff]
          %v993 = vld [vmem:[%s580 + $0x378] sm:$0xff]
          %v994 = vld [vmem:[%s580 + $0x380] sm:$0xff]
          %v995 = vld [vmem:[%s580 + $0x388] sm:$0xff]
          %v996 = vld [vmem:[%s580 + $0x390] sm:$0xff]
          %v997 = vld [vmem:[%s580 + $0x398] sm:$0xff]
          %v998 = vld [vmem:[%s580 + $0x3a0] sm:$0xff]
          %v999 = vld [vmem:[%s580 + $0x3a8] sm:$0xff]
          %v1000 = vld [vmem:[%s580 + $0x3b0] sm:$0xff]
          %v1001 = vld [vmem:[%s580 + $0x3b8] sm:$0xff]
          %v1002 = vld [vmem:[%s580 + $0x3c0] sm:$0xff]
          %v1003 = vld [vmem:[%s580 + $0x3c8] sm:$0xff]
          %v1004 = vld [vmem:[%s580 + $0x3d0] sm:$0xff]
          %v1005 = vld [vmem:[%s580 + $0x3d8] sm:$0xff]
          %v1006 = vld [vmem:[%s580 + $0x3e0] sm:$0xff]
          %v1007 = vld [vmem:[%s580 + $0x3e8] sm:$0xff]
          %v1008 = vld [vmem:[%s580 + $0x3f0] sm:$0xff]
          %v1009 = vld [vmem:[%s580 + $0x3f8] sm:$0xff]
          %v1010 = vsub.f32 %v754, %v882
          %v1011 = vsub.f32 %v755, %v883
          %v1012 = vsub.f32 %v756, %v884
          %v1013 = vsub.f32 %v757, %v885
          %v1014 = vsub.f32 %v758, %v886
          %v1015 = vsub.f32 %v759, %v887
          %v1016 = vsub.f32 %v760, %v888
          %v1017 = vsub.f32 %v761, %v889
          %v1018 = vsub.f32 %v762, %v890
          %v1019 = vsub.f32 %v763, %v891
          %v1020 = vsub.f32 %v764, %v892
          %v1021 = vsub.f32 %v765, %v893
          %v1022 = vsub.f32 %v766, %v894
          %v1023 = vsub.f32 %v767, %v895
          %v1024 = vsub.f32 %v768, %v896
          %v1025 = vsub.f32 %v769, %v897
          %v1026 = vsub.f32 %v770, %v898
          %v1027 = vsub.f32 %v771, %v899
          %v1028 = vsub.f32 %v772, %v900
          %v1029 = vsub.f32 %v773, %v901
          %v1030 = vsub.f32 %v774, %v902
          %v1031 = vsub.f32 %v775, %v903
          %v1032 = vsub.f32 %v776, %v904
          %v1033 = vsub.f32 %v777, %v905
          %v1034 = vsub.f32 %v778, %v906
          %v1035 = vsub.f32 %v779, %v907
          %v1036 = vsub.f32 %v780, %v908
          %v1037 = vsub.f32 %v781, %v909
          %v1038 = vsub.f32 %v782, %v910
          %v1039 = vsub.f32 %v783, %v911
          %v1040 = vsub.f32 %v784, %v912
          %v1041 = vsub.f32 %v785, %v913
          %v1042 = vsub.f32 %v786, %v914
          %v1043 = vsub.f32 %v787, %v915
          %v1044 = vsub.f32 %v788, %v916
          %v1045 = vsub.f32 %v789, %v917
          %v1046 = vsub.f32 %v790, %v918
          %v1047 = vsub.f32 %v791, %v919
          %v1048 = vsub.f32 %v792, %v920
          %v1049 = vsub.f32 %v793, %v921
          %v1050 = vsub.f32 %v794, %v922
          %v1051 = vsub.f32 %v795, %v923
          %v1052 = vsub.f32 %v796, %v924
          %v1053 = vsub.f32 %v797, %v925
          %v1054 = vsub.f32 %v798, %v926
          %v1055 = vsub.f32 %v799, %v927
          %v1056 = vsub.f32 %v800, %v928
          %v1057 = vsub.f32 %v801, %v929
          %v1058 = vsub.f32 %v802, %v930
          %v1059 = vsub.f32 %v803, %v931
          %v1060 = vsub.f32 %v804, %v932
          %v1061 = vsub.f32 %v805, %v933
          %v1062 = vsub.f32 %v806, %v934
          %v1063 = vsub.f32 %v807, %v935
          %v1064 = vsub.f32 %v808, %v936
          %v1065 = vsub.f32 %v809, %v937
          %v1066 = vsub.f32 %v810, %v938
          %v1067 = vsub.f32 %v811, %v939
          %v1068 = vsub.f32 %v812, %v940
          %v1069 = vsub.f32 %v813, %v941
          %v1070 = vsub.f32 %v814, %v942
          %v1071 = vsub.f32 %v815, %v943
          %v1072 = vsub.f32 %v816, %v944
          %v1073 = vsub.f32 %v817, %v945
          %v1074 = vsub.f32 %v818, %v946
          %v1075 = vsub.f32 %v819, %v947
          %v1076 = vsub.f32 %v820, %v948
          %v1077 = vsub.f32 %v821, %v949
          %v1078 = vsub.f32 %v822, %v950
          %v1079 = vsub.f32 %v823, %v951
          %v1080 = vsub.f32 %v824, %v952
          %v1081 = vsub.f32 %v825, %v953
          %v1082 = vsub.f32 %v826, %v954
          %v1083 = vsub.f32 %v827, %v955
          %v1084 = vsub.f32 %v828, %v956
          %v1085 = vsub.f32 %v829, %v957
          %v1086 = vsub.f32 %v830, %v958
          %v1087 = vsub.f32 %v831, %v959
          %v1088 = vsub.f32 %v832, %v960
          %v1089 = vsub.f32 %v833, %v961
          %v1090 = vsub.f32 %v834, %v962
          %v1091 = vsub.f32 %v835, %v963
          %v1092 = vsub.f32 %v836, %v964
          %v1093 = vsub.f32 %v837, %v965
          %v1094 = vsub.f32 %v838, %v966
          %v1095 = vsub.f32 %v839, %v967
          %v1096 = vsub.f32 %v840, %v968
          %v1097 = vsub.f32 %v841, %v969
          %v1098 = vsub.f32 %v842, %v970
          %v1099 = vsub.f32 %v843, %v971
          %v1100 = vsub.f32 %v844, %v972
          %v1101 = vsub.f32 %v845, %v973
          %v1102 = vsub.f32 %v846, %v974
          %v1103 = vsub.f32 %v847, %v975
          %v1104 = vsub.f32 %v848, %v976
          %v1105 = vsub.f32 %v849, %v977
          %v1106 = vsub.f32 %v850, %v978
          %v1107 = vsub.f32 %v851, %v979
          %v1108 = vsub.f32 %v852, %v980
          %v1109 = vsub.f32 %v853, %v981
          %v1110 = vsub.f32 %v854, %v982
          %v1111 = vsub.f32 %v855, %v983
          %v1112 = vsub.f32 %v856, %v984
          %v1113 = vsub.f32 %v857, %v985
          %v1114 = vsub.f32 %v858, %v986
          %v1115 = vsub.f32 %v859, %v987
          %v1116 = vsub.f32 %v860, %v988
          %v1117 = vsub.f32 %v861, %v989
          %v1118 = vsub.f32 %v862, %v990
          %v1119 = vsub.f32 %v863, %v991
          %v1120 = vsub.f32 %v864, %v992
          %v1121 = vsub.f32 %v865, %v993
          %v1122 = vsub.f32 %v866, %v994
          %v1123 = vsub.f32 %v867, %v995
          %v1124 = vsub.f32 %v868, %v996
          %v1125 = vsub.f32 %v869, %v997
          %v1126 = vsub.f32 %v870, %v998
          %v1127 = vsub.f32 %v871, %v999
          %v1128 = vsub.f32 %v872, %v1000
          %v1129 = vsub.f32 %v873, %v1001
          %v1130 = vsub.f32 %v874, %v1002
          %v1131 = vsub.f32 %v875, %v1003
          %v1132 = vsub.f32 %v876, %v1004
          %v1133 = vsub.f32 %v877, %v1005
          %v1134 = vsub.f32 %v878, %v1006
          %v1135 = vsub.f32 %v879, %v1007
          %v1136 = vsub.f32 %v880, %v1008
          %v1137 = vsub.f32 %v881, %v1009
          %v1138 = vand.u32 2147483647, %v1010
          %v1139 = vand.u32 2147483647, %v1011
          %v1140 = vand.u32 2147483647, %v1012
          %v1141 = vand.u32 2147483647, %v1013
          %v1142 = vand.u32 2147483647, %v1014
          %v1143 = vand.u32 2147483647, %v1015
          %v1144 = vand.u32 2147483647, %v1016
          %v1145 = vand.u32 2147483647, %v1017
          %v1146 = vand.u32 2147483647, %v1018
          %v1147 = vand.u32 2147483647, %v1019
          %v1148 = vand.u32 2147483647, %v1020
          %v1149 = vand.u32 2147483647, %v1021
          %v1150 = vand.u32 2147483647, %v1022
          %v1151 = vand.u32 2147483647, %v1023
          %v1152 = vand.u32 2147483647, %v1024
          %v1153 = vand.u32 2147483647, %v1025
          %v1154 = vand.u32 2147483647, %v1026
          %v1155 = vand.u32 2147483647, %v1027
          %v1156 = vand.u32 2147483647, %v1028
          %v1157 = vand.u32 2147483647, %v1029
          %v1158 = vand.u32 2147483647, %v1030
          %v1159 = vand.u32 2147483647, %v1031
          %v1160 = vand.u32 2147483647, %v1032
          %v1161 = vand.u32 2147483647, %v1033
          %v1162 = vand.u32 2147483647, %v1034
          %v1163 = vand.u32 2147483647, %v1035
          %v1164 = vand.u32 2147483647, %v1036
          %v1165 = vand.u32 2147483647, %v1037
          %v1166 = vand.u32 2147483647, %v1038
          %v1167 = vand.u32 2147483647, %v1039
          %v1168 = vand.u32 2147483647, %v1040
          %v1169 = vand.u32 2147483647, %v1041
          %v1170 = vand.u32 2147483647, %v1042
          %v1171 = vand.u32 2147483647, %v1043
          %v1172 = vand.u32 2147483647, %v1044
          %v1173 = vand.u32 2147483647, %v1045
          %v1174 = vand.u32 2147483647, %v1046
          %v1175 = vand.u32 2147483647, %v1047
          %v1176 = vand.u32 2147483647, %v1048
          %v1177 = vand.u32 2147483647, %v1049
          %v1178 = vand.u32 2147483647, %v1050
          %v1179 = vand.u32 2147483647, %v1051
          %v1180 = vand.u32 2147483647, %v1052
          %v1181 = vand.u32 2147483647, %v1053
          %v1182 = vand.u32 2147483647, %v1054
          %v1183 = vand.u32 2147483647, %v1055
          %v1184 = vand.u32 2147483647, %v1056
          %v1185 = vand.u32 2147483647, %v1057
          %v1186 = vand.u32 2147483647, %v1058
          %v1187 = vand.u32 2147483647, %v1059
          %v1188 = vand.u32 2147483647, %v1060
          %v1189 = vand.u32 2147483647, %v1061
          %v1190 = vand.u32 2147483647, %v1062
          %v1191 = vand.u32 2147483647, %v1063
          %v1192 = vand.u32 2147483647, %v1064
          %v1193 = vand.u32 2147483647, %v1065
          %v1194 = vand.u32 2147483647, %v1066
          %v1195 = vand.u32 2147483647, %v1067
          %v1196 = vand.u32 2147483647, %v1068
          %v1197 = vand.u32 2147483647, %v1069
          %v1198 = vand.u32 2147483647, %v1070
          %v1199 = vand.u32 2147483647, %v1071
          %v1200 = vand.u32 2147483647, %v1072
          %v1201 = vand.u32 2147483647, %v1073
          %v1202 = vand.u32 2147483647, %v1074
          %v1203 = vand.u32 2147483647, %v1075
          %v1204 = vand.u32 2147483647, %v1076
          %v1205 = vand.u32 2147483647, %v1077
          %v1206 = vand.u32 2147483647, %v1078
          %v1207 = vand.u32 2147483647, %v1079
          %v1208 = vand.u32 2147483647, %v1080
          %v1209 = vand.u32 2147483647, %v1081
          %v1210 = vand.u32 2147483647, %v1082
          %v1211 = vand.u32 2147483647, %v1083
          %v1212 = vand.u32 2147483647, %v1084
          %v1213 = vand.u32 2147483647, %v1085
          %v1214 = vand.u32 2147483647, %v1086
          %v1215 = vand.u32 2147483647, %v1087
          %v1216 = vand.u32 2147483647, %v1088
          %v1217 = vand.u32 2147483647, %v1089
          %v1218 = vand.u32 2147483647, %v1090
          %v1219 = vand.u32 2147483647, %v1091
          %v1220 = vand.u32 2147483647, %v1092
          %v1221 = vand.u32 2147483647, %v1093
          %v1222 = vand.u32 2147483647, %v1094
          %v1223 = vand.u32 2147483647, %v1095
          %v1224 = vand.u32 2147483647, %v1096
          %v1225 = vand.u32 2147483647, %v1097
          %v1226 = vand.u32 2147483647, %v1098
          %v1227 = vand.u32 2147483647, %v1099
          %v1228 = vand.u32 2147483647, %v1100
          %v1229 = vand.u32 2147483647, %v1101
          %v1230 = vand.u32 2147483647, %v1102
          %v1231 = vand.u32 2147483647, %v1103
          %v1232 = vand.u32 2147483647, %v1104
          %v1233 = vand.u32 2147483647, %v1105
          %v1234 = vand.u32 2147483647, %v1106
          %v1235 = vand.u32 2147483647, %v1107
          %v1236 = vand.u32 2147483647, %v1108
          %v1237 = vand.u32 2147483647, %v1109
          %v1238 = vand.u32 2147483647, %v1110
          %v1239 = vand.u32 2147483647, %v1111
          %v1240 = vand.u32 2147483647, %v1112
          %v1241 = vand.u32 2147483647, %v1113
          %v1242 = vand.u32 2147483647, %v1114
          %v1243 = vand.u32 2147483647, %v1115
          %v1244 = vand.u32 2147483647, %v1116
          %v1245 = vand.u32 2147483647, %v1117
          %v1246 = vand.u32 2147483647, %v1118
          %v1247 = vand.u32 2147483647, %v1119
          %v1248 = vand.u32 2147483647, %v1120
          %v1249 = vand.u32 2147483647, %v1121
          %v1250 = vand.u32 2147483647, %v1122
          %v1251 = vand.u32 2147483647, %v1123
          %v1252 = vand.u32 2147483647, %v1124
          %v1253 = vand.u32 2147483647, %v1125
          %v1254 = vand.u32 2147483647, %v1126
          %v1255 = vand.u32 2147483647, %v1127
          %v1256 = vand.u32 2147483647, %v1128
          %v1257 = vand.u32 2147483647, %v1129
          %v1258 = vand.u32 2147483647, %v1130
          %v1259 = vand.u32 2147483647, %v1131
          %v1260 = vand.u32 2147483647, %v1132
          %v1261 = vand.u32 2147483647, %v1133
          %v1262 = vand.u32 2147483647, %v1134
          %v1263 = vand.u32 2147483647, %v1135
          %v1264 = vand.u32 2147483647, %v1136
          %v1265 = vand.u32 2147483647, %v1137
          %v1266 = vmin.f32 %v1138, 1.0
          %v1267 = vmin.f32 %v1139, 1.0
          %v1268 = vmin.f32 %v1140, 1.0
          %v1269 = vmin.f32 %v1141, 1.0
          %v1270 = vmin.f32 %v1142, 1.0
          %v1271 = vmin.f32 %v1143, 1.0
          %v1272 = vmin.f32 %v1144, 1.0
          %v1273 = vmin.f32 %v1145, 1.0
          %v1274 = vmin.f32 %v1146, 1.0
          %v1275 = vmin.f32 %v1147, 1.0
          %v1276 = vmin.f32 %v1148, 1.0
          %v1277 = vmin.f32 %v1149, 1.0
          %v1278 = vmin.f32 %v1150, 1.0
          %v1279 = vmin.f32 %v1151, 1.0
          %v1280 = vmin.f32 %v1152, 1.0
          %v1281 = vmin.f32 %v1153, 1.0
          %v1282 = vmin.f32 %v1154, 1.0
          %v1283 = vmin.f32 %v1155, 1.0
          %v1284 = vmin.f32 %v1156, 1.0
          %v1285 = vmin.f32 %v1157, 1.0
          %v1286 = vmin.f32 %v1158, 1.0
          %v1287 = vmin.f32 %v1159, 1.0
          %v1288 = vmin.f32 %v1160, 1.0
          %v1289 = vmin.f32 %v1161, 1.0
          %v1290 = vmin.f32 %v1162, 1.0
          %v1291 = vmin.f32 %v1163, 1.0
          %v1292 = vmin.f32 %v1164, 1.0
          %v1293 = vmin.f32 %v1165, 1.0
          %v1294 = vmin.f32 %v1166, 1.0
          %v1295 = vmin.f32 %v1167, 1.0
          %v1296 = vmin.f32 %v1168, 1.0
          %v1297 = vmin.f32 %v1169, 1.0
          %v1298 = vmin.f32 %v1170, 1.0
          %v1299 = vmin.f32 %v1171, 1.0
          %v1300 = vmin.f32 %v1172, 1.0
          %v1301 = vmin.f32 %v1173, 1.0
          %v1302 = vmin.f32 %v1174, 1.0
          %v1303 = vmin.f32 %v1175, 1.0
          %v1304 = vmin.f32 %v1176, 1.0
          %v1305 = vmin.f32 %v1177, 1.0
          %v1306 = vmin.f32 %v1178, 1.0
          %v1307 = vmin.f32 %v1179, 1.0
          %v1308 = vmin.f32 %v1180, 1.0
          %v1309 = vmin.f32 %v1181, 1.0
          %v1310 = vmin.f32 %v1182, 1.0
          %v1311 = vmin.f32 %v1183, 1.0
          %v1312 = vmin.f32 %v1184, 1.0
          %v1313 = vmin.f32 %v1185, 1.0
          %v1314 = vmin.f32 %v1186, 1.0
          %v1315 = vmin.f32 %v1187, 1.0
          %v1316 = vmin.f32 %v1188, 1.0
          %v1317 = vmin.f32 %v1189, 1.0
          %v1318 = vmin.f32 %v1190, 1.0
          %v1319 = vmin.f32 %v1191, 1.0
          %v1320 = vmin.f32 %v1192, 1.0
          %v1321 = vmin.f32 %v1193, 1.0
          %v1322 = vmin.f32 %v1194, 1.0
          %v1323 = vmin.f32 %v1195, 1.0
          %v1324 = vmin.f32 %v1196, 1.0
          %v1325 = vmin.f32 %v1197, 1.0
          %v1326 = vmin.f32 %v1198, 1.0
          %v1327 = vmin.f32 %v1199, 1.0
          %v1328 = vmin.f32 %v1200, 1.0
          %v1329 = vmin.f32 %v1201, 1.0
          %v1330 = vmin.f32 %v1202, 1.0
          %v1331 = vmin.f32 %v1203, 1.0
          %v1332 = vmin.f32 %v1204, 1.0
          %v1333 = vmin.f32 %v1205, 1.0
          %v1334 = vmin.f32 %v1206, 1.0
          %v1335 = vmin.f32 %v1207, 1.0
          %v1336 = vmin.f32 %v1208, 1.0
          %v1337 = vmin.f32 %v1209, 1.0
          %v1338 = vmin.f32 %v1210, 1.0
          %v1339 = vmin.f32 %v1211, 1.0
          %v1340 = vmin.f32 %v1212, 1.0
          %v1341 = vmin.f32 %v1213, 1.0
          %v1342 = vmin.f32 %v1214, 1.0
          %v1343 = vmin.f32 %v1215, 1.0
          %v1344 = vmin.f32 %v1216, 1.0
          %v1345 = vmin.f32 %v1217, 1.0
          %v1346 = vmin.f32 %v1218, 1.0
          %v1347 = vmin.f32 %v1219, 1.0
          %v1348 = vmin.f32 %v1220, 1.0
          %v1349 = vmin.f32 %v1221, 1.0
          %v1350 = vmin.f32 %v1222, 1.0
          %v1351 = vmin.f32 %v1223, 1.0
          %v1352 = vmin.f32 %v1224, 1.0
          %v1353 = vmin.f32 %v1225, 1.0
          %v1354 = vmin.f32 %v1226, 1.0
          %v1355 = vmin.f32 %v1227, 1.0
          %v1356 = vmin.f32 %v1228, 1.0
          %v1357 = vmin.f32 %v1229, 1.0
          %v1358 = vmin.f32 %v1230, 1.0
          %v1359 = vmin.f32 %v1231, 1.0
          %v1360 = vmin.f32 %v1232, 1.0
          %v1361 = vmin.f32 %v1233, 1.0
          %v1362 = vmin.f32 %v1234, 1.0
          %v1363 = vmin.f32 %v1235, 1.0
          %v1364 = vmin.f32 %v1236, 1.0
          %v1365 = vmin.f32 %v1237, 1.0
          %v1366 = vmin.f32 %v1238, 1.0
          %v1367 = vmin.f32 %v1239, 1.0
          %v1368 = vmin.f32 %v1240, 1.0
          %v1369 = vmin.f32 %v1241, 1.0
          %v1370 = vmin.f32 %v1242, 1.0
          %v1371 = vmin.f32 %v1243, 1.0
          %v1372 = vmin.f32 %v1244, 1.0
          %v1373 = vmin.f32 %v1245, 1.0
          %v1374 = vmin.f32 %v1246, 1.0
          %v1375 = vmin.f32 %v1247, 1.0
          %v1376 = vmin.f32 %v1248, 1.0
          %v1377 = vmin.f32 %v1249, 1.0
          %v1378 = vmin.f32 %v1250, 1.0
          %v1379 = vmin.f32 %v1251, 1.0
          %v1380 = vmin.f32 %v1252, 1.0
          %v1381 = vmin.f32 %v1253, 1.0
          %v1382 = vmin.f32 %v1254, 1.0
          %v1383 = vmin.f32 %v1255, 1.0
          %v1384 = vmin.f32 %v1256, 1.0
          %v1385 = vmin.f32 %v1257, 1.0
          %v1386 = vmin.f32 %v1258, 1.0
          %v1387 = vmin.f32 %v1259, 1.0
          %v1388 = vmin.f32 %v1260, 1.0
          %v1389 = vmin.f32 %v1261, 1.0
          %v1390 = vmin.f32 %v1262, 1.0
          %v1391 = vmin.f32 %v1263, 1.0
          %v1392 = vmin.f32 %v1264, 1.0
          %v1393 = vmin.f32 %v1265, 1.0
          %v1394 = vmul.f32 %v1266, 0.5
          %v1395 = vmul.f32 %v1267, 0.5
          %v1396 = vmul.f32 %v1268, 0.5
          %v1397 = vmul.f32 %v1269, 0.5
          %v1398 = vmul.f32 %v1270, 0.5
          %v1399 = vmul.f32 %v1271, 0.5
          %v1400 = vmul.f32 %v1272, 0.5
          %v1401 = vmul.f32 %v1273, 0.5
          %v1402 = vmul.f32 %v1274, 0.5
          %v1403 = vmul.f32 %v1275, 0.5
          %v1404 = vmul.f32 %v1276, 0.5
          %v1405 = vmul.f32 %v1277, 0.5
          %v1406 = vmul.f32 %v1278, 0.5
          %v1407 = vmul.f32 %v1279, 0.5
          %v1408 = vmul.f32 %v1280, 0.5
          %v1409 = vmul.f32 %v1281, 0.5
          %v1410 = vmul.f32 %v1282, 0.5
          %v1411 = vmul.f32 %v1283, 0.5
          %v1412 = vmul.f32 %v1284, 0.5
          %v1413 = vmul.f32 %v1285, 0.5
          %v1414 = vmul.f32 %v1286, 0.5
          %v1415 = vmul.f32 %v1287, 0.5
          %v1416 = vmul.f32 %v1288, 0.5
          %v1417 = vmul.f32 %v1289, 0.5
          %v1418 = vmul.f32 %v1290, 0.5
          %v1419 = vmul.f32 %v1291, 0.5
          %v1420 = vmul.f32 %v1292, 0.5
          %v1421 = vmul.f32 %v1293, 0.5
          %v1422 = vmul.f32 %v1294, 0.5
          %v1423 = vmul.f32 %v1295, 0.5
          %v1424 = vmul.f32 %v1296, 0.5
          %v1425 = vmul.f32 %v1297, 0.5
          %v1426 = vmul.f32 %v1298, 0.5
          %v1427 = vmul.f32 %v1299, 0.5
          %v1428 = vmul.f32 %v1300, 0.5
          %v1429 = vmul.f32 %v1301, 0.5
          %v1430 = vmul.f32 %v1302, 0.5
          %v1431 = vmul.f32 %v1303, 0.5
          %v1432 = vmul.f32 %v1304, 0.5
          %v1433 = vmul.f32 %v1305, 0.5
          %v1434 = vmul.f32 %v1306, 0.5
          %v1435 = vmul.f32 %v1307, 0.5
          %v1436 = vmul.f32 %v1308, 0.5
          %v1437 = vmul.f32 %v1309, 0.5
          %v1438 = vmul.f32 %v1310, 0.5
          %v1439 = vmul.f32 %v1311, 0.5
          %v1440 = vmul.f32 %v1312, 0.5
          %v1441 = vmul.f32 %v1313, 0.5
          %v1442 = vmul.f32 %v1314, 0.5
          %v1443 = vmul.f32 %v1315, 0.5
          %v1444 = vmul.f32 %v1316, 0.5
          %v1445 = vmul.f32 %v1317, 0.5
          %v1446 = vmul.f32 %v1318, 0.5
          %v1447 = vmul.f32 %v1319, 0.5
          %v1448 = vmul.f32 %v1320, 0.5
          %v1449 = vmul.f32 %v1321, 0.5
          %v1450 = vmul.f32 %v1322, 0.5
          %v1451 = vmul.f32 %v1323, 0.5
          %v1452 = vmul.f32 %v1324, 0.5
          %v1453 = vmul.f32 %v1325, 0.5
          %v1454 = vmul.f32 %v1326, 0.5
          %v1455 = vmul.f32 %v1327, 0.5
          %v1456 = vmul.f32 %v1328, 0.5
          %v1457 = vmul.f32 %v1329, 0.5
          %v1458 = vmul.f32 %v1330, 0.5
          %v1459 = vmul.f32 %v1331, 0.5
          %v1460 = vmul.f32 %v1332, 0.5
          %v1461 = vmul.f32 %v1333, 0.5
          %v1462 = vmul.f32 %v1334, 0.5
          %v1463 = vmul.f32 %v1335, 0.5
          %v1464 = vmul.f32 %v1336, 0.5
          %v1465 = vmul.f32 %v1337, 0.5
          %v1466 = vmul.f32 %v1338, 0.5
          %v1467 = vmul.f32 %v1339, 0.5
          %v1468 = vmul.f32 %v1340, 0.5
          %v1469 = vmul.f32 %v1341, 0.5
          %v1470 = vmul.f32 %v1342, 0.5
          %v1471 = vmul.f32 %v1343, 0.5
          %v1472 = vmul.f32 %v1344, 0.5
          %v1473 = vmul.f32 %v1345, 0.5
          %v1474 = vmul.f32 %v1346, 0.5
          %v1475 = vmul.f32 %v1347, 0.5
          %v1476 = vmul.f32 %v1348, 0.5
          %v1477 = vmul.f32 %v1349, 0.5
          %v1478 = vmul.f32 %v1350, 0.5
          %v1479 = vmul.f32 %v1351, 0.5
          %v1480 = vmul.f32 %v1352, 0.5
          %v1481 = vmul.f32 %v1353, 0.5
          %v1482 = vmul.f32 %v1354, 0.5
          %v1483 = vmul.f32 %v1355, 0.5
          %v1484 = vmul.f32 %v1356, 0.5
          %v1485 = vmul.f32 %v1357, 0.5
          %v1486 = vmul.f32 %v1358, 0.5
          %v1487 = vmul.f32 %v1359, 0.5
          %v1488 = vmul.f32 %v1360, 0.5
          %v1489 = vmul.f32 %v1361, 0.5
          %v1490 = vmul.f32 %v1362, 0.5
          %v1491 = vmul.f32 %v1363, 0.5
          %v1492 = vmul.f32 %v1364, 0.5
          %v1493 = vmul.f32 %v1365, 0.5
          %v1494 = vmul.f32 %v1366, 0.5
          %v1495 = vmul.f32 %v1367, 0.5
          %v1496 = vmul.f32 %v1368, 0.5
          %v1497 = vmul.f32 %v1369, 0.5
          %v1498 = vmul.f32 %v1370, 0.5
          %v1499 = vmul.f32 %v1371, 0.5
          %v1500 = vmul.f32 %v1372, 0.5
          %v1501 = vmul.f32 %v1373, 0.5
          %v1502 = vmul.f32 %v1374, 0.5
          %v1503 = vmul.f32 %v1375, 0.5
          %v1504 = vmul.f32 %v1376, 0.5
          %v1505 = vmul.f32 %v1377, 0.5
          %v1506 = vmul.f32 %v1378, 0.5
          %v1507 = vmul.f32 %v1379, 0.5
          %v1508 = vmul.f32 %v1380, 0.5
          %v1509 = vmul.f32 %v1381, 0.5
          %v1510 = vmul.f32 %v1382, 0.5
          %v1511 = vmul.f32 %v1383, 0.5
          %v1512 = vmul.f32 %v1384, 0.5
          %v1513 = vmul.f32 %v1385, 0.5
          %v1514 = vmul.f32 %v1386, 0.5
          %v1515 = vmul.f32 %v1387, 0.5
          %v1516 = vmul.f32 %v1388, 0.5
          %v1517 = vmul.f32 %v1389, 0.5
          %v1518 = vmul.f32 %v1390, 0.5
          %v1519 = vmul.f32 %v1391, 0.5
          %v1520 = vmul.f32 %v1392, 0.5
          %v1521 = vmul.f32 %v1393, 0.5
          %v1522 = vsub.f32 %v1138, %v1394
          %v1523 = vsub.f32 %v1139, %v1395
          %v1524 = vsub.f32 %v1140, %v1396
          %v1525 = vsub.f32 %v1141, %v1397
          %v1526 = vsub.f32 %v1142, %v1398
          %v1527 = vsub.f32 %v1143, %v1399
          %v1528 = vsub.f32 %v1144, %v1400
          %v1529 = vsub.f32 %v1145, %v1401
          %v1530 = vsub.f32 %v1146, %v1402
          %v1531 = vsub.f32 %v1147, %v1403
          %v1532 = vsub.f32 %v1148, %v1404
          %v1533 = vsub.f32 %v1149, %v1405
          %v1534 = vsub.f32 %v1150, %v1406
          %v1535 = vsub.f32 %v1151, %v1407
          %v1536 = vsub.f32 %v1152, %v1408
          %v1537 = vsub.f32 %v1153, %v1409
          %v1538 = vsub.f32 %v1154, %v1410
          %v1539 = vsub.f32 %v1155, %v1411
          %v1540 = vsub.f32 %v1156, %v1412
          %v1541 = vsub.f32 %v1157, %v1413
          %v1542 = vsub.f32 %v1158, %v1414
          %v1543 = vsub.f32 %v1159, %v1415
          %v1544 = vsub.f32 %v1160, %v1416
          %v1545 = vsub.f32 %v1161, %v1417
          %v1546 = vsub.f32 %v1162, %v1418
          %v1547 = vsub.f32 %v1163, %v1419
          %v1548 = vsub.f32 %v1164, %v1420
          %v1549 = vsub.f32 %v1165, %v1421
          %v1550 = vsub.f32 %v1166, %v1422
          %v1551 = vsub.f32 %v1167, %v1423
          %v1552 = vsub.f32 %v1168, %v1424
          %v1553 = vsub.f32 %v1169, %v1425
          %v1554 = vsub.f32 %v1170, %v1426
          %v1555 = vsub.f32 %v1171, %v1427
          %v1556 = vsub.f32 %v1172, %v1428
          %v1557 = vsub.f32 %v1173, %v1429
          %v1558 = vsub.f32 %v1174, %v1430
          %v1559 = vsub.f32 %v1175, %v1431
          %v1560 = vsub.f32 %v1176, %v1432
          %v1561 = vsub.f32 %v1177, %v1433
          %v1562 = vsub.f32 %v1178, %v1434
          %v1563 = vsub.f32 %v1179, %v1435
          %v1564 = vsub.f32 %v1180, %v1436
          %v1565 = vsub.f32 %v1181, %v1437
          %v1566 = vsub.f32 %v1182, %v1438
          %v1567 = vsub.f32 %v1183, %v1439
          %v1568 = vsub.f32 %v1184, %v1440
          %v1569 = vsub.f32 %v1185, %v1441
          %v1570 = vsub.f32 %v1186, %v1442
          %v1571 = vsub.f32 %v1187, %v1443
          %v1572 = vsub.f32 %v1188, %v1444
          %v1573 = vsub.f32 %v1189, %v1445
          %v1574 = vsub.f32 %v1190, %v1446
          %v1575 = vsub.f32 %v1191, %v1447
          %v1576 = vsub.f32 %v1192, %v1448
          %v1577 = vsub.f32 %v1193, %v1449
          %v1578 = vsub.f32 %v1194, %v1450
          %v1579 = vsub.f32 %v1195, %v1451
          %v1580 = vsub.f32 %v1196, %v1452
          %v1581 = vsub.f32 %v1197, %v1453
          %v1582 = vsub.f32 %v1198, %v1454
          %v1583 = vsub.f32 %v1199, %v1455
          %v1584 = vsub.f32 %v1200, %v1456
          %v1585 = vsub.f32 %v1201, %v1457
          %v1586 = vsub.f32 %v1202, %v1458
          %v1587 = vsub.f32 %v1203, %v1459
          %v1588 = vsub.f32 %v1204, %v1460
          %v1589 = vsub.f32 %v1205, %v1461
          %v1590 = vsub.f32 %v1206, %v1462
          %v1591 = vsub.f32 %v1207, %v1463
          %v1592 = vsub.f32 %v1208, %v1464
          %v1593 = vsub.f32 %v1209, %v1465
          %v1594 = vsub.f32 %v1210, %v1466
          %v1595 = vsub.f32 %v1211, %v1467
          %v1596 = vsub.f32 %v1212, %v1468
          %v1597 = vsub.f32 %v1213, %v1469
          %v1598 = vsub.f32 %v1214, %v1470
          %v1599 = vsub.f32 %v1215, %v1471
          %v1600 = vsub.f32 %v1216, %v1472
          %v1601 = vsub.f32 %v1217, %v1473
          %v1602 = vsub.f32 %v1218, %v1474
          %v1603 = vsub.f32 %v1219, %v1475
          %v1604 = vsub.f32 %v1220, %v1476
          %v1605 = vsub.f32 %v1221, %v1477
          %v1606 = vsub.f32 %v1222, %v1478
          %v1607 = vsub.f32 %v1223, %v1479
          %v1608 = vsub.f32 %v1224, %v1480
          %v1609 = vsub.f32 %v1225, %v1481
          %v1610 = vsub.f32 %v1226, %v1482
          %v1611 = vsub.f32 %v1227, %v1483
          %v1612 = vsub.f32 %v1228, %v1484
          %v1613 = vsub.f32 %v1229, %v1485
          %v1614 = vsub.f32 %v1230, %v1486
          %v1615 = vsub.f32 %v1231, %v1487
          %v1616 = vsub.f32 %v1232, %v1488
          %v1617 = vsub.f32 %v1233, %v1489
          %v1618 = vsub.f32 %v1234, %v1490
          %v1619 = vsub.f32 %v1235, %v1491
          %v1620 = vsub.f32 %v1236, %v1492
          %v1621 = vsub.f32 %v1237, %v1493
          %v1622 = vsub.f32 %v1238, %v1494
          %v1623 = vsub.f32 %v1239, %v1495
          %v1624 = vsub.f32 %v1240, %v1496
          %v1625 = vsub.f32 %v1241, %v1497
          %v1626 = vsub.f32 %v1242, %v1498
          %v1627 = vsub.f32 %v1243, %v1499
          %v1628 = vsub.f32 %v1244, %v1500
          %v1629 = vsub.f32 %v1245, %v1501
          %v1630 = vsub.f32 %v1246, %v1502
          %v1631 = vsub.f32 %v1247, %v1503
          %v1632 = vsub.f32 %v1248, %v1504
          %v1633 = vsub.f32 %v1249, %v1505
          %v1634 = vsub.f32 %v1250, %v1506
          %v1635 = vsub.f32 %v1251, %v1507
          %v1636 = vsub.f32 %v1252, %v1508
          %v1637 = vsub.f32 %v1253, %v1509
          %v1638 = vsub.f32 %v1254, %v1510
          %v1639 = vsub.f32 %v1255, %v1511
          %v1640 = vsub.f32 %v1256, %v1512
          %v1641 = vsub.f32 %v1257, %v1513
          %v1642 = vsub.f32 %v1258, %v1514
          %v1643 = vsub.f32 %v1259, %v1515
          %v1644 = vsub.f32 %v1260, %v1516
          %v1645 = vsub.f32 %v1261, %v1517
          %v1646 = vsub.f32 %v1262, %v1518
          %v1647 = vsub.f32 %v1263, %v1519
          %v1648 = vsub.f32 %v1264, %v1520
          %v1649 = vsub.f32 %v1265, %v1521
          %v1650 = vmul.f32 %v1266, %v1522
          %v1651 = vmul.f32 %v1267, %v1523
          %v1652 = vmul.f32 %v1268, %v1524
          %v1653 = vmul.f32 %v1269, %v1525
          %v1654 = vmul.f32 %v1270, %v1526
          %v1655 = vmul.f32 %v1271, %v1527
          %v1656 = vmul.f32 %v1272, %v1528
          %v1657 = vmul.f32 %v1273, %v1529
          %v1658 = vmul.f32 %v1274, %v1530
          %v1659 = vmul.f32 %v1275, %v1531
          %v1660 = vmul.f32 %v1276, %v1532
          %v1661 = vmul.f32 %v1277, %v1533
          %v1662 = vmul.f32 %v1278, %v1534
          %v1663 = vmul.f32 %v1279, %v1535
          %v1664 = vmul.f32 %v1280, %v1536
          %v1665 = vmul.f32 %v1281, %v1537
          %v1666 = vmul.f32 %v1282, %v1538
          %v1667 = vmul.f32 %v1283, %v1539
          %v1668 = vmul.f32 %v1284, %v1540
          %v1669 = vmul.f32 %v1285, %v1541
          %v1670 = vmul.f32 %v1286, %v1542
          %v1671 = vmul.f32 %v1287, %v1543
          %v1672 = vmul.f32 %v1288, %v1544
          %v1673 = vmul.f32 %v1289, %v1545
          %v1674 = vmul.f32 %v1290, %v1546
          %v1675 = vmul.f32 %v1291, %v1547
          %v1676 = vmul.f32 %v1292, %v1548
          %v1677 = vmul.f32 %v1293, %v1549
          %v1678 = vmul.f32 %v1294, %v1550
          %v1679 = vmul.f32 %v1295, %v1551
          %v1680 = vmul.f32 %v1296, %v1552
          %v1681 = vmul.f32 %v1297, %v1553
          %v1682 = vmul.f32 %v1298, %v1554
          %v1683 = vmul.f32 %v1299, %v1555
          %v1684 = vmul.f32 %v1300, %v1556
          %v1685 = vmul.f32 %v1301, %v1557
          %v1686 = vmul.f32 %v1302, %v1558
          %v1687 = vmul.f32 %v1303, %v1559
          %v1688 = vmul.f32 %v1304, %v1560
          %v1689 = vmul.f32 %v1305, %v1561
          %v1690 = vmul.f32 %v1306, %v1562
          %v1691 = vmul.f32 %v1307, %v1563
          %v1692 = vmul.f32 %v1308, %v1564
          %v1693 = vmul.f32 %v1309, %v1565
          %v1694 = vmul.f32 %v1310, %v1566
          %v1695 = vmul.f32 %v1311, %v1567
          %v1696 = vmul.f32 %v1312, %v1568
          %v1697 = vmul.f32 %v1313, %v1569
          %v1698 = vmul.f32 %v1314, %v1570
          %v1699 = vmul.f32 %v1315, %v1571
          %v1700 = vmul.f32 %v1316, %v1572
          %v1701 = vmul.f32 %v1317, %v1573
          %v1702 = vmul.f32 %v1318, %v1574
          %v1703 = vmul.f32 %v1319, %v1575
          %v1704 = vmul.f32 %v1320, %v1576
          %v1705 = vmul.f32 %v1321, %v1577
          %v1706 = vmul.f32 %v1322, %v1578
          %v1707 = vmul.f32 %v1323, %v1579
          %v1708 = vmul.f32 %v1324, %v1580
          %v1709 = vmul.f32 %v1325, %v1581
          %v1710 = vmul.f32 %v1326, %v1582
          %v1711 = vmul.f32 %v1327, %v1583
          %v1712 = vmul.f32 %v1328, %v1584
          %v1713 = vmul.f32 %v1329, %v1585
          %v1714 = vmul.f32 %v1330, %v1586
          %v1715 = vmul.f32 %v1331, %v1587
          %v1716 = vmul.f32 %v1332, %v1588
          %v1717 = vmul.f32 %v1333, %v1589
          %v1718 = vmul.f32 %v1334, %v1590
          %v1719 = vmul.f32 %v1335, %v1591
          %v1720 = vmul.f32 %v1336, %v1592
          %v1721 = vmul.f32 %v1337, %v1593
          %v1722 = vmul.f32 %v1338, %v1594
          %v1723 = vmul.f32 %v1339, %v1595
          %v1724 = vmul.f32 %v1340, %v1596
          %v1725 = vmul.f32 %v1341, %v1597
          %v1726 = vmul.f32 %v1342, %v1598
          %v1727 = vmul.f32 %v1343, %v1599
          %v1728 = vmul.f32 %v1344, %v1600
          %v1729 = vmul.f32 %v1345, %v1601
          %v1730 = vmul.f32 %v1346, %v1602
          %v1731 = vmul.f32 %v1347, %v1603
          %v1732 = vmul.f32 %v1348, %v1604
          %v1733 = vmul.f32 %v1349, %v1605
          %v1734 = vmul.f32 %v1350, %v1606
          %v1735 = vmul.f32 %v1351, %v1607
          %v1736 = vmul.f32 %v1352, %v1608
          %v1737 = vmul.f32 %v1353, %v1609
          %v1738 = vmul.f32 %v1354, %v1610
          %v1739 = vmul.f32 %v1355, %v1611
          %v1740 = vmul.f32 %v1356, %v1612
          %v1741 = vmul.f32 %v1357, %v1613
          %v1742 = vmul.f32 %v1358, %v1614
          %v1743 = vmul.f32 %v1359, %v1615
          %v1744 = vmul.f32 %v1360, %v1616
          %v1745 = vmul.f32 %v1361, %v1617
          %v1746 = vmul.f32 %v1362, %v1618
          %v1747 = vmul.f32 %v1363, %v1619
          %v1748 = vmul.f32 %v1364, %v1620
          %v1749 = vmul.f32 %v1365, %v1621
          %v1750 = vmul.f32 %v1366, %v1622
          %v1751 = vmul.f32 %v1367, %v1623
          %v1752 = vmul.f32 %v1368, %v1624
          %v1753 = vmul.f32 %v1369, %v1625
          %v1754 = vmul.f32 %v1370, %v1626
          %v1755 = vmul.f32 %v1371, %v1627
          %v1756 = vmul.f32 %v1372, %v1628
          %v1757 = vmul.f32 %v1373, %v1629
          %v1758 = vmul.f32 %v1374, %v1630
          %v1759 = vmul.f32 %v1375, %v1631
          %v1760 = vmul.f32 %v1376, %v1632
          %v1761 = vmul.f32 %v1377, %v1633
          %v1762 = vmul.f32 %v1378, %v1634
          %v1763 = vmul.f32 %v1379, %v1635
          %v1764 = vmul.f32 %v1380, %v1636
          %v1765 = vmul.f32 %v1381, %v1637
          %v1766 = vmul.f32 %v1382, %v1638
          %v1767 = vmul.f32 %v1383, %v1639
          %v1768 = vmul.f32 %v1384, %v1640
          %v1769 = vmul.f32 %v1385, %v1641
          %v1770 = vmul.f32 %v1386, %v1642
          %v1771 = vmul.f32 %v1387, %v1643
          %v1772 = vmul.f32 %v1388, %v1644
          %v1773 = vmul.f32 %v1389, %v1645
          %v1774 = vmul.f32 %v1390, %v1646
          %v1775 = vmul.f32 %v1391, %v1647
          %v1776 = vmul.f32 %v1392, %v1648
          %v1777 = vmul.f32 %v1393, %v1649
          %v1778 = vadd.f32 %v1650, %v1651
          %v1779 = vadd.f32 %v1778, %v1652
          %v1780 = vadd.f32 %v1779, %v1653
          %v1781 = vadd.f32 %v1780, %v1654
          %v1782 = vadd.f32 %v1781, %v1655
          %v1783 = vadd.f32 %v1782, %v1656
          %v1784 = vadd.f32 %v1783, %v1657
          %v1785 = vadd.f32 %v1784, %v1658
          %v1786 = vadd.f32 %v1785, %v1659
          %v1787 = vadd.f32 %v1786, %v1660
          %v1788 = vadd.f32 %v1787, %v1661
          %v1789 = vadd.f32 %v1788, %v1662
          %v1790 = vadd.f32 %v1789, %v1663
          %v1791 = vadd.f32 %v1790, %v1664
          %v1792 = vadd.f32 %v1791, %v1665
          %v1793 = vadd.f32 %v1792, %v1666
          %v1794 = vadd.f32 %v1793, %v1667
          %v1795 = vadd.f32 %v1794, %v1668
          %v1796 = vadd.f32 %v1795, %v1669
          %v1797 = vadd.f32 %v1796, %v1670
          %v1798 = vadd.f32 %v1797, %v1671
          %v1799 = vadd.f32 %v1798, %v1672
          %v1800 = vadd.f32 %v1799, %v1673
          %v1801 = vadd.f32 %v1800, %v1674
          %v1802 = vadd.f32 %v1801, %v1675
          %v1803 = vadd.f32 %v1802, %v1676
          %v1804 = vadd.f32 %v1803, %v1677
          %v1805 = vadd.f32 %v1804, %v1678
          %v1806 = vadd.f32 %v1805, %v1679
          %v1807 = vadd.f32 %v1806, %v1680
          %v1808 = vadd.f32 %v1807, %v1681
          %v1809 = vadd.f32 %v1808, %v1682
          %v1810 = vadd.f32 %v1809, %v1683
          %v1811 = vadd.f32 %v1810, %v1684
          %v1812 = vadd.f32 %v1811, %v1685
          %v1813 = vadd.f32 %v1812, %v1686
          %v1814 = vadd.f32 %v1813, %v1687
          %v1815 = vadd.f32 %v1814, %v1688
          %v1816 = vadd.f32 %v1815, %v1689
          %v1817 = vadd.f32 %v1816, %v1690
          %v1818 = vadd.f32 %v1817, %v1691
          %v1819 = vadd.f32 %v1818, %v1692
          %v1820 = vadd.f32 %v1819, %v1693
          %v1821 = vadd.f32 %v1820, %v1694
          %v1822 = vadd.f32 %v1821, %v1695
          %v1823 = vadd.f32 %v1822, %v1696
          %v1824 = vadd.f32 %v1823, %v1697
          %v1825 = vadd.f32 %v1824, %v1698
          %v1826 = vadd.f32 %v1825, %v1699
          %v1827 = vadd.f32 %v1826, %v1700
          %v1828 = vadd.f32 %v1827, %v1701
          %v1829 = vadd.f32 %v1828, %v1702
          %v1830 = vadd.f32 %v1829, %v1703
          %v1831 = vadd.f32 %v1830, %v1704
          %v1832 = vadd.f32 %v1831, %v1705
          %v1833 = vadd.f32 %v1832, %v1706
          %v1834 = vadd.f32 %v1833, %v1707
          %v1835 = vadd.f32 %v1834, %v1708
          %v1836 = vadd.f32 %v1835, %v1709
          %v1837 = vadd.f32 %v1836, %v1710
          %v1838 = vadd.f32 %v1837, %v1711
          %v1839 = vadd.f32 %v1838, %v1712
          %v1840 = vadd.f32 %v1839, %v1713
          %v1841 = vadd.f32 %v1840, %v1714
          %v1842 = vadd.f32 %v1841, %v1715
          %v1843 = vadd.f32 %v1842, %v1716
          %v1844 = vadd.f32 %v1843, %v1717
          %v1845 = vadd.f32 %v1844, %v1718
          %v1846 = vadd.f32 %v1845, %v1719
          %v1847 = vadd.f32 %v1846, %v1720
          %v1848 = vadd.f32 %v1847, %v1721
          %v1849 = vadd.f32 %v1848, %v1722
          %v1850 = vadd.f32 %v1849, %v1723
          %v1851 = vadd.f32 %v1850, %v1724
          %v1852 = vadd.f32 %v1851, %v1725
          %v1853 = vadd.f32 %v1852, %v1726
          %v1854 = vadd.f32 %v1853, %v1727
          %v1855 = vadd.f32 %v1854, %v1728
          %v1856 = vadd.f32 %v1855, %v1729
          %v1857 = vadd.f32 %v1856, %v1730
          %v1858 = vadd.f32 %v1857, %v1731
          %v1859 = vadd.f32 %v1858, %v1732
          %v1860 = vadd.f32 %v1859, %v1733
          %v1861 = vadd.f32 %v1860, %v1734
          %v1862 = vadd.f32 %v1861, %v1735
          %v1863 = vadd.f32 %v1862, %v1736
          %v1864 = vadd.f32 %v1863, %v1737
          %v1865 = vadd.f32 %v1864, %v1738
          %v1866 = vadd.f32 %v1865, %v1739
          %v1867 = vadd.f32 %v1866, %v1740
          %v1868 = vadd.f32 %v1867, %v1741
          %v1869 = vadd.f32 %v1868, %v1742
          %v1870 = vadd.f32 %v1869, %v1743
          %v1871 = vadd.f32 %v1870, %v1744
          %v1872 = vadd.f32 %v1871, %v1745
          %v1873 = vadd.f32 %v1872, %v1746
          %v1874 = vadd.f32 %v1873, %v1747
          %v1875 = vadd.f32 %v1874, %v1748
          %v1876 = vadd.f32 %v1875, %v1749
          %v1877 = vadd.f32 %v1876, %v1750
          %v1878 = vadd.f32 %v1877, %v1751
          %v1879 = vadd.f32 %v1878, %v1752
          %v1880 = vadd.f32 %v1879, %v1753
          %v1881 = vadd.f32 %v1880, %v1754
          %v1882 = vadd.f32 %v1881, %v1755
          %v1883 = vadd.f32 %v1882, %v1756
          %v1884 = vadd.f32 %v1883, %v1757
          %v1885 = vadd.f32 %v1884, %v1758
          %v1886 = vadd.f32 %v1885, %v1759
          %v1887 = vadd.f32 %v1886, %v1760
          %v1888 = vadd.f32 %v1887, %v1761
          %v1889 = vadd.f32 %v1888, %v1762
          %v1890 = vadd.f32 %v1889, %v1763
          %v1891 = vadd.f32 %v1890, %v1764
          %v1892 = vadd.f32 %v1891, %v1765
          %v1893 = vadd.f32 %v1892, %v1766
          %v1894 = vadd.f32 %v1893, %v1767
          %v1895 = vadd.f32 %v1894, %v1768
          %v1896 = vadd.f32 %v1895, %v1769
          %v1897 = vadd.f32 %v1896, %v1770
          %v1898 = vadd.f32 %v1897, %v1771
          %v1899 = vadd.f32 %v1898, %v1772
          %v1900 = vadd.f32 %v1899, %v1773
          %v1901 = vadd.f32 %v1900, %v1774
          %v1902 = vadd.f32 %v1901, %v1775
          %v1903 = vadd.f32 %v1902, %v1776
          %v1904 = vadd.f32 %v1903, %v1777
          %v1905 = vld [vmem:[#allocation2] sm:$0xff]
          %v1906 = vmul.f32 %v1904, 7.6293945e-06
          %v1907 = vadd.f32 %v1905, %v1906
          %1908 = vst [vmem:[#allocation2] sm:$0xff] %v1907
        $region92: #{tpu_custom_call.1} parent=51 // pred_fallthru
          _
        %p1909 = scmp.ge.s32.totalorder %s35, 1
        %p1910 = scmp.lt.s32.totalorder %s35, 2
        %p1911 = pnand %p1909, %p1910
        %p1912 = pneg %p1911
        // Predicated region
        $region93: #{tpu_custom_call.1} parent=51 // pred_check
          _
        $region94: #{tpu_custom_call.1} parent=51 // pred_check_branch
          %1914 = sbr.rel (%p1911) target = $region96
        $region95: #{tpu_custom_call.1} parent=51 // pred_region
          %v1915 = vld [vmem:[%s589] sm:$0xff]
          %v1916 = vld [vmem:[%s589 + $0x8] sm:$0xff]
          %v1917 = vld [vmem:[%s589 + $0x10] sm:$0xff]
          %v1918 = vld [vmem:[%s589 + $0x18] sm:$0xff]
          %v1919 = vld [vmem:[%s589 + $0x20] sm:$0xff]
          %v1920 = vld [vmem:[%s589 + $0x28] sm:$0xff]
          %v1921 = vld [vmem:[%s589 + $0x30] sm:$0xff]
          %v1922 = vld [vmem:[%s589 + $0x38] sm:$0xff]
          %v1923 = vld [vmem:[%s589 + $0x40] sm:$0xff]
          %v1924 = vld [vmem:[%s589 + $0x48] sm:$0xff]
          %v1925 = vld [vmem:[%s589 + $0x50] sm:$0xff]
          %v1926 = vld [vmem:[%s589 + $0x58] sm:$0xff]
          %v1927 = vld [vmem:[%s589 + $0x60] sm:$0xff]
          %v1928 = vld [vmem:[%s589 + $0x68] sm:$0xff]
          %v1929 = vld [vmem:[%s589 + $0x70] sm:$0xff]
          %v1930 = vld [vmem:[%s589 + $0x78] sm:$0xff]
          %v1931 = vld [vmem:[%s589 + $0x80] sm:$0xff]
          %v1932 = vld [vmem:[%s589 + $0x88] sm:$0xff]
          %v1933 = vld [vmem:[%s589 + $0x90] sm:$0xff]
          %v1934 = vld [vmem:[%s589 + $0x98] sm:$0xff]
          %v1935 = vld [vmem:[%s589 + $0xa0] sm:$0xff]
          %v1936 = vld [vmem:[%s589 + $0xa8] sm:$0xff]
          %v1937 = vld [vmem:[%s589 + $0xb0] sm:$0xff]
          %v1938 = vld [vmem:[%s589 + $0xb8] sm:$0xff]
          %v1939 = vld [vmem:[%s589 + $0xc0] sm:$0xff]
          %v1940 = vld [vmem:[%s589 + $0xc8] sm:$0xff]
          %v1941 = vld [vmem:[%s589 + $0xd0] sm:$0xff]
          %v1942 = vld [vmem:[%s589 + $0xd8] sm:$0xff]
          %v1943 = vld [vmem:[%s589 + $0xe0] sm:$0xff]
          %v1944 = vld [vmem:[%s589 + $0xe8] sm:$0xff]
          %v1945 = vld [vmem:[%s589 + $0xf0] sm:$0xff]
          %v1946 = vld [vmem:[%s589 + $0xf8] sm:$0xff]
          %v1947 = vld [vmem:[%s589 + $0x100] sm:$0xff]
          %v1948 = vld [vmem:[%s589 + $0x108] sm:$0xff]
          %v1949 = vld [vmem:[%s589 + $0x110] sm:$0xff]
          %v1950 = vld [vmem:[%s589 + $0x118] sm:$0xff]
          %v1951 = vld [vmem:[%s589 + $0x120] sm:$0xff]
          %v1952 = vld [vmem:[%s589 + $0x128] sm:$0xff]
          %v1953 = vld [vmem:[%s589 + $0x130] sm:$0xff]
          %v1954 = vld [vmem:[%s589 + $0x138] sm:$0xff]
          %v1955 = vld [vmem:[%s589 + $0x140] sm:$0xff]
          %v1956 = vld [vmem:[%s589 + $0x148] sm:$0xff]
          %v1957 = vld [vmem:[%s589 + $0x150] sm:$0xff]
          %v1958 = vld [vmem:[%s589 + $0x158] sm:$0xff]
          %v1959 = vld [vmem:[%s589 + $0x160] sm:$0xff]
          %v1960 = vld [vmem:[%s589 + $0x168] sm:$0xff]
          %v1961 = vld [vmem:[%s589 + $0x170] sm:$0xff]
          %v1962 = vld [vmem:[%s589 + $0x178] sm:$0xff]
          %v1963 = vld [vmem:[%s589 + $0x180] sm:$0xff]
          %v1964 = vld [vmem:[%s589 + $0x188] sm:$0xff]
          %v1965 = vld [vmem:[%s589 + $0x190] sm:$0xff]
          %v1966 = vld [vmem:[%s589 + $0x198] sm:$0xff]
          %v1967 = vld [vmem:[%s589 + $0x1a0] sm:$0xff]
          %v1968 = vld [vmem:[%s589 + $0x1a8] sm:$0xff]
          %v1969 = vld [vmem:[%s589 + $0x1b0] sm:$0xff]
          %v1970 = vld [vmem:[%s589 + $0x1b8] sm:$0xff]
          %v1971 = vld [vmem:[%s589 + $0x1c0] sm:$0xff]
          %v1972 = vld [vmem:[%s589 + $0x1c8] sm:$0xff]
          %v1973 = vld [vmem:[%s589 + $0x1d0] sm:$0xff]
          %v1974 = vld [vmem:[%s589 + $0x1d8] sm:$0xff]
          %v1975 = vld [vmem:[%s589 + $0x1e0] sm:$0xff]
          %v1976 = vld [vmem:[%s589 + $0x1e8] sm:$0xff]
          %v1977 = vld [vmem:[%s589 + $0x1f0] sm:$0xff]
          %v1978 = vld [vmem:[%s589 + $0x1f8] sm:$0xff]
          %v1979 = vld [vmem:[%s598] sm:$0xff]
          %v1980 = vld [vmem:[%s598 + $0x8] sm:$0xff]
          %v1981 = vld [vmem:[%s598 + $0x10] sm:$0xff]
          %v1982 = vld [vmem:[%s598 + $0x18] sm:$0xff]
          %v1983 = vld [vmem:[%s598 + $0x20] sm:$0xff]
          %v1984 = vld [vmem:[%s598 + $0x28] sm:$0xff]
          %v1985 = vld [vmem:[%s598 + $0x30] sm:$0xff]
          %v1986 = vld [vmem:[%s598 + $0x38] sm:$0xff]
          %v1987 = vld [vmem:[%s598 + $0x40] sm:$0xff]
          %v1988 = vld [vmem:[%s598 + $0x48] sm:$0xff]
          %v1989 = vld [vmem:[%s598 + $0x50] sm:$0xff]
          %v1990 = vld [vmem:[%s598 + $0x58] sm:$0xff]
          %v1991 = vld [vmem:[%s598 + $0x60] sm:$0xff]
          %v1992 = vld [vmem:[%s598 + $0x68] sm:$0xff]
          %v1993 = vld [vmem:[%s598 + $0x70] sm:$0xff]
          %v1994 = vld [vmem:[%s598 + $0x78] sm:$0xff]
          %v1995 = vld [vmem:[%s598 + $0x80] sm:$0xff]
          %v1996 = vld [vmem:[%s598 + $0x88] sm:$0xff]
          %v1997 = vld [vmem:[%s598 + $0x90] sm:$0xff]
          %v1998 = vld [vmem:[%s598 + $0x98] sm:$0xff]
          %v1999 = vld [vmem:[%s598 + $0xa0] sm:$0xff]
          %v2000 = vld [vmem:[%s598 + $0xa8] sm:$0xff]
          %v2001 = vld [vmem:[%s598 + $0xb0] sm:$0xff]
          %v2002 = vld [vmem:[%s598 + $0xb8] sm:$0xff]
          %v2003 = vld [vmem:[%s598 + $0xc0] sm:$0xff]
          %v2004 = vld [vmem:[%s598 + $0xc8] sm:$0xff]
          %v2005 = vld [vmem:[%s598 + $0xd0] sm:$0xff]
          %v2006 = vld [vmem:[%s598 + $0xd8] sm:$0xff]
          %v2007 = vld [vmem:[%s598 + $0xe0] sm:$0xff]
          %v2008 = vld [vmem:[%s598 + $0xe8] sm:$0xff]
          %v2009 = vld [vmem:[%s598 + $0xf0] sm:$0xff]
          %v2010 = vld [vmem:[%s598 + $0xf8] sm:$0xff]
          %v2011 = vld [vmem:[%s598 + $0x100] sm:$0xff]
          %v2012 = vld [vmem:[%s598 + $0x108] sm:$0xff]
          %v2013 = vld [vmem:[%s598 + $0x110] sm:$0xff]
          %v2014 = vld [vmem:[%s598 + $0x118] sm:$0xff]
          %v2015 = vld [vmem:[%s598 + $0x120] sm:$0xff]
          %v2016 = vld [vmem:[%s598 + $0x128] sm:$0xff]
          %v2017 = vld [vmem:[%s598 + $0x130] sm:$0xff]
          %v2018 = vld [vmem:[%s598 + $0x138] sm:$0xff]
          %v2019 = vld [vmem:[%s598 + $0x140] sm:$0xff]
          %v2020 = vld [vmem:[%s598 + $0x148] sm:$0xff]
          %v2021 = vld [vmem:[%s598 + $0x150] sm:$0xff]
          %v2022 = vld [vmem:[%s598 + $0x158] sm:$0xff]
          %v2023 = vld [vmem:[%s598 + $0x160] sm:$0xff]
          %v2024 = vld [vmem:[%s598 + $0x168] sm:$0xff]
          %v2025 = vld [vmem:[%s598 + $0x170] sm:$0xff]
          %v2026 = vld [vmem:[%s598 + $0x178] sm:$0xff]
          %v2027 = vld [vmem:[%s598 + $0x180] sm:$0xff]
          %v2028 = vld [vmem:[%s598 + $0x188] sm:$0xff]
          %v2029 = vld [vmem:[%s598 + $0x190] sm:$0xff]
          %v2030 = vld [vmem:[%s598 + $0x198] sm:$0xff]
          %v2031 = vld [vmem:[%s598 + $0x1a0] sm:$0xff]
          %v2032 = vld [vmem:[%s598 + $0x1a8] sm:$0xff]
          %v2033 = vld [vmem:[%s598 + $0x1b0] sm:$0xff]
          %v2034 = vld [vmem:[%s598 + $0x1b8] sm:$0xff]
          %v2035 = vld [vmem:[%s598 + $0x1c0] sm:$0xff]
          %v2036 = vld [vmem:[%s598 + $0x1c8] sm:$0xff]
          %v2037 = vld [vmem:[%s598 + $0x1d0] sm:$0xff]
          %v2038 = vld [vmem:[%s598 + $0x1d8] sm:$0xff]
          %v2039 = vld [vmem:[%s598 + $0x1e0] sm:$0xff]
          %v2040 = vld [vmem:[%s598 + $0x1e8] sm:$0xff]
          %v2041 = vld [vmem:[%s598 + $0x1f0] sm:$0xff]
          %v2042 = vld [vmem:[%s598 + $0x1f8] sm:$0xff]
          %v2043 = vsub.f32 %v1915, %v1979
          %v2044 = vsub.f32 %v1916, %v1980
          %v2045 = vsub.f32 %v1917, %v1981
          %v2046 = vsub.f32 %v1918, %v1982
          %v2047 = vsub.f32 %v1919, %v1983
          %v2048 = vsub.f32 %v1920, %v1984
          %v2049 = vsub.f32 %v1921, %v1985
          %v2050 = vsub.f32 %v1922, %v1986
          %v2051 = vsub.f32 %v1923, %v1987
          %v2052 = vsub.f32 %v1924, %v1988
          %v2053 = vsub.f32 %v1925, %v1989
          %v2054 = vsub.f32 %v1926, %v1990
          %v2055 = vsub.f32 %v1927, %v1991
          %v2056 = vsub.f32 %v1928, %v1992
          %v2057 = vsub.f32 %v1929, %v1993
          %v2058 = vsub.f32 %v1930, %v1994
          %v2059 = vsub.f32 %v1931, %v1995
          %v2060 = vsub.f32 %v1932, %v1996
          %v2061 = vsub.f32 %v1933, %v1997
          %v2062 = vsub.f32 %v1934, %v1998
          %v2063 = vsub.f32 %v1935, %v1999
          %v2064 = vsub.f32 %v1936, %v2000
          %v2065 = vsub.f32 %v1937, %v2001
          %v2066 = vsub.f32 %v1938, %v2002
          %v2067 = vsub.f32 %v1939, %v2003
          %v2068 = vsub.f32 %v1940, %v2004
          %v2069 = vsub.f32 %v1941, %v2005
          %v2070 = vsub.f32 %v1942, %v2006
          %v2071 = vsub.f32 %v1943, %v2007
          %v2072 = vsub.f32 %v1944, %v2008
          %v2073 = vsub.f32 %v1945, %v2009
          %v2074 = vsub.f32 %v1946, %v2010
          %v2075 = vsub.f32 %v1947, %v2011
          %v2076 = vsub.f32 %v1948, %v2012
          %v2077 = vsub.f32 %v1949, %v2013
          %v2078 = vsub.f32 %v1950, %v2014
          %v2079 = vsub.f32 %v1951, %v2015
          %v2080 = vsub.f32 %v1952, %v2016
          %v2081 = vsub.f32 %v1953, %v2017
          %v2082 = vsub.f32 %v1954, %v2018
          %v2083 = vsub.f32 %v1955, %v2019
          %v2084 = vsub.f32 %v1956, %v2020
          %v2085 = vsub.f32 %v1957, %v2021
          %v2086 = vsub.f32 %v1958, %v2022
          %v2087 = vsub.f32 %v1959, %v2023
          %v2088 = vsub.f32 %v1960, %v2024
          %v2089 = vsub.f32 %v1961, %v2025
          %v2090 = vsub.f32 %v1962, %v2026
          %v2091 = vsub.f32 %v1963, %v2027
          %v2092 = vsub.f32 %v1964, %v2028
          %v2093 = vsub.f32 %v1965, %v2029
          %v2094 = vsub.f32 %v1966, %v2030
          %v2095 = vsub.f32 %v1967, %v2031
          %v2096 = vsub.f32 %v1968, %v2032
          %v2097 = vsub.f32 %v1969, %v2033
          %v2098 = vsub.f32 %v1970, %v2034
          %v2099 = vsub.f32 %v1971, %v2035
          %v2100 = vsub.f32 %v1972, %v2036
          %v2101 = vsub.f32 %v1973, %v2037
          %v2102 = vsub.f32 %v1974, %v2038
          %v2103 = vsub.f32 %v1975, %v2039
          %v2104 = vsub.f32 %v1976, %v2040
          %v2105 = vsub.f32 %v1977, %v2041
          %v2106 = vsub.f32 %v1978, %v2042
          %v2107 = vand.u32 2147483647, %v2043
          %v2108 = vand.u32 2147483647, %v2044
          %v2109 = vand.u32 2147483647, %v2045
          %v2110 = vand.u32 2147483647, %v2046
          %v2111 = vand.u32 2147483647, %v2047
          %v2112 = vand.u32 2147483647, %v2048
          %v2113 = vand.u32 2147483647, %v2049
          %v2114 = vand.u32 2147483647, %v2050
          %v2115 = vand.u32 2147483647, %v2051
          %v2116 = vand.u32 2147483647, %v2052
          %v2117 = vand.u32 2147483647, %v2053
          %v2118 = vand.u32 2147483647, %v2054
          %v2119 = vand.u32 2147483647, %v2055
          %v2120 = vand.u32 2147483647, %v2056
          %v2121 = vand.u32 2147483647, %v2057
          %v2122 = vand.u32 2147483647, %v2058
          %v2123 = vand.u32 2147483647, %v2059
          %v2124 = vand.u32 2147483647, %v2060
          %v2125 = vand.u32 2147483647, %v2061
          %v2126 = vand.u32 2147483647, %v2062
          %v2127 = vand.u32 2147483647, %v2063
          %v2128 = vand.u32 2147483647, %v2064
          %v2129 = vand.u32 2147483647, %v2065
          %v2130 = vand.u32 2147483647, %v2066
          %v2131 = vand.u32 2147483647, %v2067
          %v2132 = vand.u32 2147483647, %v2068
          %v2133 = vand.u32 2147483647, %v2069
          %v2134 = vand.u32 2147483647, %v2070
          %v2135 = vand.u32 2147483647, %v2071
          %v2136 = vand.u32 2147483647, %v2072
          %v2137 = vand.u32 2147483647, %v2073
          %v2138 = vand.u32 2147483647, %v2074
          %v2139 = vand.u32 2147483647, %v2075
          %v2140 = vand.u32 2147483647, %v2076
          %v2141 = vand.u32 2147483647, %v2077
          %v2142 = vand.u32 2147483647, %v2078
          %v2143 = vand.u32 2147483647, %v2079
          %v2144 = vand.u32 2147483647, %v2080
          %v2145 = vand.u32 2147483647, %v2081
          %v2146 = vand.u32 2147483647, %v2082
          %v2147 = vand.u32 2147483647, %v2083
          %v2148 = vand.u32 2147483647, %v2084
          %v2149 = vand.u32 2147483647, %v2085
          %v2150 = vand.u32 2147483647, %v2086
          %v2151 = vand.u32 2147483647, %v2087
          %v2152 = vand.u32 2147483647, %v2088
          %v2153 = vand.u32 2147483647, %v2089
          %v2154 = vand.u32 2147483647, %v2090
          %v2155 = vand.u32 2147483647, %v2091
          %v2156 = vand.u32 2147483647, %v2092
          %v2157 = vand.u32 2147483647, %v2093
          %v2158 = vand.u32 2147483647, %v2094
          %v2159 = vand.u32 2147483647, %v2095
          %v2160 = vand.u32 2147483647, %v2096
          %v2161 = vand.u32 2147483647, %v2097
          %v2162 = vand.u32 2147483647, %v2098
          %v2163 = vand.u32 2147483647, %v2099
          %v2164 = vand.u32 2147483647, %v2100
          %v2165 = vand.u32 2147483647, %v2101
          %v2166 = vand.u32 2147483647, %v2102
          %v2167 = vand.u32 2147483647, %v2103
          %v2168 = vand.u32 2147483647, %v2104
          %v2169 = vand.u32 2147483647, %v2105
          %v2170 = vand.u32 2147483647, %v2106
          %v2171 = vmin.f32 %v2107, 1.0
          %v2172 = vmin.f32 %v2108, 1.0
          %v2173 = vmin.f32 %v2109, 1.0
          %v2174 = vmin.f32 %v2110, 1.0
          %v2175 = vmin.f32 %v2111, 1.0
          %v2176 = vmin.f32 %v2112, 1.0
          %v2177 = vmin.f32 %v2113, 1.0
          %v2178 = vmin.f32 %v2114, 1.0
          %v2179 = vmin.f32 %v2115, 1.0
          %v2180 = vmin.f32 %v2116, 1.0
          %v2181 = vmin.f32 %v2117, 1.0
          %v2182 = vmin.f32 %v2118, 1.0
          %v2183 = vmin.f32 %v2119, 1.0
          %v2184 = vmin.f32 %v2120, 1.0
          %v2185 = vmin.f32 %v2121, 1.0
          %v2186 = vmin.f32 %v2122, 1.0
          %v2187 = vmin.f32 %v2123, 1.0
          %v2188 = vmin.f32 %v2124, 1.0
          %v2189 = vmin.f32 %v2125, 1.0
          %v2190 = vmin.f32 %v2126, 1.0
          %v2191 = vmin.f32 %v2127, 1.0
          %v2192 = vmin.f32 %v2128, 1.0
          %v2193 = vmin.f32 %v2129, 1.0
          %v2194 = vmin.f32 %v2130, 1.0
          %v2195 = vmin.f32 %v2131, 1.0
          %v2196 = vmin.f32 %v2132, 1.0
          %v2197 = vmin.f32 %v2133, 1.0
          %v2198 = vmin.f32 %v2134, 1.0
          %v2199 = vmin.f32 %v2135, 1.0
          %v2200 = vmin.f32 %v2136, 1.0
          %v2201 = vmin.f32 %v2137, 1.0
          %v2202 = vmin.f32 %v2138, 1.0
          %v2203 = vmin.f32 %v2139, 1.0
          %v2204 = vmin.f32 %v2140, 1.0
          %v2205 = vmin.f32 %v2141, 1.0
          %v2206 = vmin.f32 %v2142, 1.0
          %v2207 = vmin.f32 %v2143, 1.0
          %v2208 = vmin.f32 %v2144, 1.0
          %v2209 = vmin.f32 %v2145, 1.0
          %v2210 = vmin.f32 %v2146, 1.0
          %v2211 = vmin.f32 %v2147, 1.0
          %v2212 = vmin.f32 %v2148, 1.0
          %v2213 = vmin.f32 %v2149, 1.0
          %v2214 = vmin.f32 %v2150, 1.0
          %v2215 = vmin.f32 %v2151, 1.0
          %v2216 = vmin.f32 %v2152, 1.0
          %v2217 = vmin.f32 %v2153, 1.0
          %v2218 = vmin.f32 %v2154, 1.0
          %v2219 = vmin.f32 %v2155, 1.0
          %v2220 = vmin.f32 %v2156, 1.0
          %v2221 = vmin.f32 %v2157, 1.0
          %v2222 = vmin.f32 %v2158, 1.0
          %v2223 = vmin.f32 %v2159, 1.0
          %v2224 = vmin.f32 %v2160, 1.0
          %v2225 = vmin.f32 %v2161, 1.0
          %v2226 = vmin.f32 %v2162, 1.0
          %v2227 = vmin.f32 %v2163, 1.0
          %v2228 = vmin.f32 %v2164, 1.0
          %v2229 = vmin.f32 %v2165, 1.0
          %v2230 = vmin.f32 %v2166, 1.0
          %v2231 = vmin.f32 %v2167, 1.0
          %v2232 = vmin.f32 %v2168, 1.0
          %v2233 = vmin.f32 %v2169, 1.0
          %v2234 = vmin.f32 %v2170, 1.0
          %v2235 = vmul.f32 %v2171, 0.5
          %v2236 = vmul.f32 %v2172, 0.5
          %v2237 = vmul.f32 %v2173, 0.5
          %v2238 = vmul.f32 %v2174, 0.5
          %v2239 = vmul.f32 %v2175, 0.5
          %v2240 = vmul.f32 %v2176, 0.5
          %v2241 = vmul.f32 %v2177, 0.5
          %v2242 = vmul.f32 %v2178, 0.5
          %v2243 = vmul.f32 %v2179, 0.5
          %v2244 = vmul.f32 %v2180, 0.5
          %v2245 = vmul.f32 %v2181, 0.5
          %v2246 = vmul.f32 %v2182, 0.5
          %v2247 = vmul.f32 %v2183, 0.5
          %v2248 = vmul.f32 %v2184, 0.5
          %v2249 = vmul.f32 %v2185, 0.5
          %v2250 = vmul.f32 %v2186, 0.5
          %v2251 = vmul.f32 %v2187, 0.5
          %v2252 = vmul.f32 %v2188, 0.5
          %v2253 = vmul.f32 %v2189, 0.5
          %v2254 = vmul.f32 %v2190, 0.5
          %v2255 = vmul.f32 %v2191, 0.5
          %v2256 = vmul.f32 %v2192, 0.5
          %v2257 = vmul.f32 %v2193, 0.5
          %v2258 = vmul.f32 %v2194, 0.5
          %v2259 = vmul.f32 %v2195, 0.5
          %v2260 = vmul.f32 %v2196, 0.5
          %v2261 = vmul.f32 %v2197, 0.5
          %v2262 = vmul.f32 %v2198, 0.5
          %v2263 = vmul.f32 %v2199, 0.5
          %v2264 = vmul.f32 %v2200, 0.5
          %v2265 = vmul.f32 %v2201, 0.5
          %v2266 = vmul.f32 %v2202, 0.5
          %v2267 = vmul.f32 %v2203, 0.5
          %v2268 = vmul.f32 %v2204, 0.5
          %v2269 = vmul.f32 %v2205, 0.5
          %v2270 = vmul.f32 %v2206, 0.5
          %v2271 = vmul.f32 %v2207, 0.5
          %v2272 = vmul.f32 %v2208, 0.5
          %v2273 = vmul.f32 %v2209, 0.5
          %v2274 = vmul.f32 %v2210, 0.5
          %v2275 = vmul.f32 %v2211, 0.5
          %v2276 = vmul.f32 %v2212, 0.5
          %v2277 = vmul.f32 %v2213, 0.5
          %v2278 = vmul.f32 %v2214, 0.5
          %v2279 = vmul.f32 %v2215, 0.5
          %v2280 = vmul.f32 %v2216, 0.5
          %v2281 = vmul.f32 %v2217, 0.5
          %v2282 = vmul.f32 %v2218, 0.5
          %v2283 = vmul.f32 %v2219, 0.5
          %v2284 = vmul.f32 %v2220, 0.5
          %v2285 = vmul.f32 %v2221, 0.5
          %v2286 = vmul.f32 %v2222, 0.5
          %v2287 = vmul.f32 %v2223, 0.5
          %v2288 = vmul.f32 %v2224, 0.5
          %v2289 = vmul.f32 %v2225, 0.5
          %v2290 = vmul.f32 %v2226, 0.5
          %v2291 = vmul.f32 %v2227, 0.5
          %v2292 = vmul.f32 %v2228, 0.5
          %v2293 = vmul.f32 %v2229, 0.5
          %v2294 = vmul.f32 %v2230, 0.5
          %v2295 = vmul.f32 %v2231, 0.5
          %v2296 = vmul.f32 %v2232, 0.5
          %v2297 = vmul.f32 %v2233, 0.5
          %v2298 = vmul.f32 %v2234, 0.5
          %v2299 = vsub.f32 %v2107, %v2235
          %v2300 = vsub.f32 %v2108, %v2236
          %v2301 = vsub.f32 %v2109, %v2237
          %v2302 = vsub.f32 %v2110, %v2238
          %v2303 = vsub.f32 %v2111, %v2239
          %v2304 = vsub.f32 %v2112, %v2240
          %v2305 = vsub.f32 %v2113, %v2241
          %v2306 = vsub.f32 %v2114, %v2242
          %v2307 = vsub.f32 %v2115, %v2243
          %v2308 = vsub.f32 %v2116, %v2244
          %v2309 = vsub.f32 %v2117, %v2245
          %v2310 = vsub.f32 %v2118, %v2246
          %v2311 = vsub.f32 %v2119, %v2247
          %v2312 = vsub.f32 %v2120, %v2248
          %v2313 = vsub.f32 %v2121, %v2249
          %v2314 = vsub.f32 %v2122, %v2250
          %v2315 = vsub.f32 %v2123, %v2251
          %v2316 = vsub.f32 %v2124, %v2252
          %v2317 = vsub.f32 %v2125, %v2253
          %v2318 = vsub.f32 %v2126, %v2254
          %v2319 = vsub.f32 %v2127, %v2255
          %v2320 = vsub.f32 %v2128, %v2256
          %v2321 = vsub.f32 %v2129, %v2257
          %v2322 = vsub.f32 %v2130, %v2258
          %v2323 = vsub.f32 %v2131, %v2259
          %v2324 = vsub.f32 %v2132, %v2260
          %v2325 = vsub.f32 %v2133, %v2261
          %v2326 = vsub.f32 %v2134, %v2262
          %v2327 = vsub.f32 %v2135, %v2263
          %v2328 = vsub.f32 %v2136, %v2264
          %v2329 = vsub.f32 %v2137, %v2265
          %v2330 = vsub.f32 %v2138, %v2266
          %v2331 = vsub.f32 %v2139, %v2267
          %v2332 = vsub.f32 %v2140, %v2268
          %v2333 = vsub.f32 %v2141, %v2269
          %v2334 = vsub.f32 %v2142, %v2270
          %v2335 = vsub.f32 %v2143, %v2271
          %v2336 = vsub.f32 %v2144, %v2272
          %v2337 = vsub.f32 %v2145, %v2273
          %v2338 = vsub.f32 %v2146, %v2274
          %v2339 = vsub.f32 %v2147, %v2275
          %v2340 = vsub.f32 %v2148, %v2276
          %v2341 = vsub.f32 %v2149, %v2277
          %v2342 = vsub.f32 %v2150, %v2278
          %v2343 = vsub.f32 %v2151, %v2279
          %v2344 = vsub.f32 %v2152, %v2280
          %v2345 = vsub.f32 %v2153, %v2281
          %v2346 = vsub.f32 %v2154, %v2282
          %v2347 = vsub.f32 %v2155, %v2283
          %v2348 = vsub.f32 %v2156, %v2284
          %v2349 = vsub.f32 %v2157, %v2285
          %v2350 = vsub.f32 %v2158, %v2286
          %v2351 = vsub.f32 %v2159, %v2287
          %v2352 = vsub.f32 %v2160, %v2288
          %v2353 = vsub.f32 %v2161, %v2289
          %v2354 = vsub.f32 %v2162, %v2290
          %v2355 = vsub.f32 %v2163, %v2291
          %v2356 = vsub.f32 %v2164, %v2292
          %v2357 = vsub.f32 %v2165, %v2293
          %v2358 = vsub.f32 %v2166, %v2294
          %v2359 = vsub.f32 %v2167, %v2295
          %v2360 = vsub.f32 %v2168, %v2296
          %v2361 = vsub.f32 %v2169, %v2297
          %v2362 = vsub.f32 %v2170, %v2298
          %v2363 = vmul.f32 %v2171, %v2299
          %v2364 = vmul.f32 %v2172, %v2300
          %v2365 = vmul.f32 %v2173, %v2301
          %v2366 = vmul.f32 %v2174, %v2302
          %v2367 = vmul.f32 %v2175, %v2303
          %v2368 = vmul.f32 %v2176, %v2304
          %v2369 = vmul.f32 %v2177, %v2305
          %v2370 = vmul.f32 %v2178, %v2306
          %v2371 = vmul.f32 %v2179, %v2307
          %v2372 = vmul.f32 %v2180, %v2308
          %v2373 = vmul.f32 %v2181, %v2309
          %v2374 = vmul.f32 %v2182, %v2310
          %v2375 = vmul.f32 %v2183, %v2311
          %v2376 = vmul.f32 %v2184, %v2312
          %v2377 = vmul.f32 %v2185, %v2313
          %v2378 = vmul.f32 %v2186, %v2314
          %v2379 = vmul.f32 %v2187, %v2315
          %v2380 = vmul.f32 %v2188, %v2316
          %v2381 = vmul.f32 %v2189, %v2317
          %v2382 = vmul.f32 %v2190, %v2318
          %v2383 = vmul.f32 %v2191, %v2319
          %v2384 = vmul.f32 %v2192, %v2320
          %v2385 = vmul.f32 %v2193, %v2321
          %v2386 = vmul.f32 %v2194, %v2322
          %v2387 = vmul.f32 %v2195, %v2323
          %v2388 = vmul.f32 %v2196, %v2324
          %v2389 = vmul.f32 %v2197, %v2325
          %v2390 = vmul.f32 %v2198, %v2326
          %v2391 = vmul.f32 %v2199, %v2327
          %v2392 = vmul.f32 %v2200, %v2328
          %v2393 = vmul.f32 %v2201, %v2329
          %v2394 = vmul.f32 %v2202, %v2330
          %v2395 = vmul.f32 %v2203, %v2331
          %v2396 = vmul.f32 %v2204, %v2332
          %v2397 = vmul.f32 %v2205, %v2333
          %v2398 = vmul.f32 %v2206, %v2334
          %v2399 = vmul.f32 %v2207, %v2335
          %v2400 = vmul.f32 %v2208, %v2336
          %v2401 = vmul.f32 %v2209, %v2337
          %v2402 = vmul.f32 %v2210, %v2338
          %v2403 = vmul.f32 %v2211, %v2339
          %v2404 = vmul.f32 %v2212, %v2340
          %v2405 = vmul.f32 %v2213, %v2341
          %v2406 = vmul.f32 %v2214, %v2342
          %v2407 = vmul.f32 %v2215, %v2343
          %v2408 = vmul.f32 %v2216, %v2344
          %v2409 = vmul.f32 %v2217, %v2345
          %v2410 = vmul.f32 %v2218, %v2346
          %v2411 = vmul.f32 %v2219, %v2347
          %v2412 = vmul.f32 %v2220, %v2348
          %v2413 = vmul.f32 %v2221, %v2349
          %v2414 = vmul.f32 %v2222, %v2350
          %v2415 = vmul.f32 %v2223, %v2351
          %v2416 = vmul.f32 %v2224, %v2352
          %v2417 = vmul.f32 %v2225, %v2353
          %v2418 = vmul.f32 %v2226, %v2354
          %v2419 = vmul.f32 %v2227, %v2355
          %v2420 = vmul.f32 %v2228, %v2356
          %v2421 = vmul.f32 %v2229, %v2357
          %v2422 = vmul.f32 %v2230, %v2358
          %v2423 = vmul.f32 %v2231, %v2359
          %v2424 = vmul.f32 %v2232, %v2360
          %v2425 = vmul.f32 %v2233, %v2361
          %v2426 = vmul.f32 %v2234, %v2362
          %v2427 = vadd.f32 %v2363, %v2364
          %v2428 = vadd.f32 %v2427, %v2365
          %v2429 = vadd.f32 %v2428, %v2366
          %v2430 = vadd.f32 %v2429, %v2367
          %v2431 = vadd.f32 %v2430, %v2368
          %v2432 = vadd.f32 %v2431, %v2369
          %v2433 = vadd.f32 %v2432, %v2370
          %v2434 = vadd.f32 %v2433, %v2371
          %v2435 = vadd.f32 %v2434, %v2372
          %v2436 = vadd.f32 %v2435, %v2373
          %v2437 = vadd.f32 %v2436, %v2374
          %v2438 = vadd.f32 %v2437, %v2375
          %v2439 = vadd.f32 %v2438, %v2376
          %v2440 = vadd.f32 %v2439, %v2377
          %v2441 = vadd.f32 %v2440, %v2378
          %v2442 = vadd.f32 %v2441, %v2379
          %v2443 = vadd.f32 %v2442, %v2380
          %v2444 = vadd.f32 %v2443, %v2381
          %v2445 = vadd.f32 %v2444, %v2382
          %v2446 = vadd.f32 %v2445, %v2383
          %v2447 = vadd.f32 %v2446, %v2384
          %v2448 = vadd.f32 %v2447, %v2385
          %v2449 = vadd.f32 %v2448, %v2386
          %v2450 = vadd.f32 %v2449, %v2387
          %v2451 = vadd.f32 %v2450, %v2388
          %v2452 = vadd.f32 %v2451, %v2389
          %v2453 = vadd.f32 %v2452, %v2390
          %v2454 = vadd.f32 %v2453, %v2391
          %v2455 = vadd.f32 %v2454, %v2392
          %v2456 = vadd.f32 %v2455, %v2393
          %v2457 = vadd.f32 %v2456, %v2394
          %v2458 = vadd.f32 %v2457, %v2395
          %v2459 = vadd.f32 %v2458, %v2396
          %v2460 = vadd.f32 %v2459, %v2397
          %v2461 = vadd.f32 %v2460, %v2398
          %v2462 = vadd.f32 %v2461, %v2399
          %v2463 = vadd.f32 %v2462, %v2400
          %v2464 = vadd.f32 %v2463, %v2401
          %v2465 = vadd.f32 %v2464, %v2402
          %v2466 = vadd.f32 %v2465, %v2403
          %v2467 = vadd.f32 %v2466, %v2404
          %v2468 = vadd.f32 %v2467, %v2405
          %v2469 = vadd.f32 %v2468, %v2406
          %v2470 = vadd.f32 %v2469, %v2407
          %v2471 = vadd.f32 %v2470, %v2408
          %v2472 = vadd.f32 %v2471, %v2409
          %v2473 = vadd.f32 %v2472, %v2410
          %v2474 = vadd.f32 %v2473, %v2411
          %v2475 = vadd.f32 %v2474, %v2412
          %v2476 = vadd.f32 %v2475, %v2413
          %v2477 = vadd.f32 %v2476, %v2414
          %v2478 = vadd.f32 %v2477, %v2415
          %v2479 = vadd.f32 %v2478, %v2416
          %v2480 = vadd.f32 %v2479, %v2417
          %v2481 = vadd.f32 %v2480, %v2418
          %v2482 = vadd.f32 %v2481, %v2419
          %v2483 = vadd.f32 %v2482, %v2420
          %v2484 = vadd.f32 %v2483, %v2421
          %v2485 = vadd.f32 %v2484, %v2422
          %v2486 = vadd.f32 %v2485, %v2423
          %v2487 = vadd.f32 %v2486, %v2424
          %v2488 = vadd.f32 %v2487, %v2425
          %v2489 = vadd.f32 %v2488, %v2426
          %v2490 = vld [vmem:[#allocation2] sm:$0xff]
          %v2491 = vmul.f32 %v2489, 1.5258789e-05
          %v2492 = vadd.f32 %v2490, %v2491
          %2493 = vst [vmem:[#allocation2] sm:$0xff] %v2492
        $region96: #{tpu_custom_call.1} parent=51 // pred_fallthru
          _
        %p2494 = scmp.ge.s32.totalorder %s35, 2
        %p2495 = scmp.lt.s32.totalorder %s35, 3
        %p2496 = pnand %p2494, %p2495
        %p2497 = pneg %p2496
        // Predicated region
        $region97: #{tpu_custom_call.1} parent=51 // pred_check
          _
        $region98: #{tpu_custom_call.1} parent=51 // pred_check_branch
          %2499 = sbr.rel (%p2496) target = $region100
        $region99: #{tpu_custom_call.1} parent=51 // pred_region
          %v2500 = vld [vmem:[%s607] sm:$0xff]
          %v2501 = vld [vmem:[%s607 + $0x8] sm:$0xff]
          %v2502 = vld [vmem:[%s607 + $0x10] sm:$0xff]
          %v2503 = vld [vmem:[%s607 + $0x18] sm:$0xff]
          %v2504 = vld [vmem:[%s607 + $0x20] sm:$0xff]
          %v2505 = vld [vmem:[%s607 + $0x28] sm:$0xff]
          %v2506 = vld [vmem:[%s607 + $0x30] sm:$0xff]
          %v2507 = vld [vmem:[%s607 + $0x38] sm:$0xff]
          %v2508 = vld [vmem:[%s607 + $0x40] sm:$0xff]
          %v2509 = vld [vmem:[%s607 + $0x48] sm:$0xff]
          %v2510 = vld [vmem:[%s607 + $0x50] sm:$0xff]
          %v2511 = vld [vmem:[%s607 + $0x58] sm:$0xff]
          %v2512 = vld [vmem:[%s607 + $0x60] sm:$0xff]
          %v2513 = vld [vmem:[%s607 + $0x68] sm:$0xff]
          %v2514 = vld [vmem:[%s607 + $0x70] sm:$0xff]
          %v2515 = vld [vmem:[%s607 + $0x78] sm:$0xff]
          %v2516 = vld [vmem:[%s607 + $0x80] sm:$0xff]
          %v2517 = vld [vmem:[%s607 + $0x88] sm:$0xff]
          %v2518 = vld [vmem:[%s607 + $0x90] sm:$0xff]
          %v2519 = vld [vmem:[%s607 + $0x98] sm:$0xff]
          %v2520 = vld [vmem:[%s607 + $0xa0] sm:$0xff]
          %v2521 = vld [vmem:[%s607 + $0xa8] sm:$0xff]
          %v2522 = vld [vmem:[%s607 + $0xb0] sm:$0xff]
          %v2523 = vld [vmem:[%s607 + $0xb8] sm:$0xff]
          %v2524 = vld [vmem:[%s607 + $0xc0] sm:$0xff]
          %v2525 = vld [vmem:[%s607 + $0xc8] sm:$0xff]
          %v2526 = vld [vmem:[%s607 + $0xd0] sm:$0xff]
          %v2527 = vld [vmem:[%s607 + $0xd8] sm:$0xff]
          %v2528 = vld [vmem:[%s607 + $0xe0] sm:$0xff]
          %v2529 = vld [vmem:[%s607 + $0xe8] sm:$0xff]
          %v2530 = vld [vmem:[%s607 + $0xf0] sm:$0xff]
          %v2531 = vld [vmem:[%s607 + $0xf8] sm:$0xff]
          %v2532 = vld [vmem:[%s616] sm:$0xff]
          %v2533 = vld [vmem:[%s616 + $0x8] sm:$0xff]
          %v2534 = vld [vmem:[%s616 + $0x10] sm:$0xff]
          %v2535 = vld [vmem:[%s616 + $0x18] sm:$0xff]
          %v2536 = vld [vmem:[%s616 + $0x20] sm:$0xff]
          %v2537 = vld [vmem:[%s616 + $0x28] sm:$0xff]
          %v2538 = vld [vmem:[%s616 + $0x30] sm:$0xff]
          %v2539 = vld [vmem:[%s616 + $0x38] sm:$0xff]
          %v2540 = vld [vmem:[%s616 + $0x40] sm:$0xff]
          %v2541 = vld [vmem:[%s616 + $0x48] sm:$0xff]
          %v2542 = vld [vmem:[%s616 + $0x50] sm:$0xff]
          %v2543 = vld [vmem:[%s616 + $0x58] sm:$0xff]
          %v2544 = vld [vmem:[%s616 + $0x60] sm:$0xff]
          %v2545 = vld [vmem:[%s616 + $0x68] sm:$0xff]
          %v2546 = vld [vmem:[%s616 + $0x70] sm:$0xff]
          %v2547 = vld [vmem:[%s616 + $0x78] sm:$0xff]
          %v2548 = vld [vmem:[%s616 + $0x80] sm:$0xff]
          %v2549 = vld [vmem:[%s616 + $0x88] sm:$0xff]
          %v2550 = vld [vmem:[%s616 + $0x90] sm:$0xff]
          %v2551 = vld [vmem:[%s616 + $0x98] sm:$0xff]
          %v2552 = vld [vmem:[%s616 + $0xa0] sm:$0xff]
          %v2553 = vld [vmem:[%s616 + $0xa8] sm:$0xff]
          %v2554 = vld [vmem:[%s616 + $0xb0] sm:$0xff]
          %v2555 = vld [vmem:[%s616 + $0xb8] sm:$0xff]
          %v2556 = vld [vmem:[%s616 + $0xc0] sm:$0xff]
          %v2557 = vld [vmem:[%s616 + $0xc8] sm:$0xff]
          %v2558 = vld [vmem:[%s616 + $0xd0] sm:$0xff]
          %v2559 = vld [vmem:[%s616 + $0xd8] sm:$0xff]
          %v2560 = vld [vmem:[%s616 + $0xe0] sm:$0xff]
          %v2561 = vld [vmem:[%s616 + $0xe8] sm:$0xff]
          %v2562 = vld [vmem:[%s616 + $0xf0] sm:$0xff]
          %v2563 = vld [vmem:[%s616 + $0xf8] sm:$0xff]
          %v2564 = vsub.f32 %v2500, %v2532
          %v2565 = vsub.f32 %v2501, %v2533
          %v2566 = vsub.f32 %v2502, %v2534
          %v2567 = vsub.f32 %v2503, %v2535
          %v2568 = vsub.f32 %v2504, %v2536
          %v2569 = vsub.f32 %v2505, %v2537
          %v2570 = vsub.f32 %v2506, %v2538
          %v2571 = vsub.f32 %v2507, %v2539
          %v2572 = vsub.f32 %v2508, %v2540
          %v2573 = vsub.f32 %v2509, %v2541
          %v2574 = vsub.f32 %v2510, %v2542
          %v2575 = vsub.f32 %v2511, %v2543
          %v2576 = vsub.f32 %v2512, %v2544
          %v2577 = vsub.f32 %v2513, %v2545
          %v2578 = vsub.f32 %v2514, %v2546
          %v2579 = vsub.f32 %v2515, %v2547
          %v2580 = vsub.f32 %v2516, %v2548
          %v2581 = vsub.f32 %v2517, %v2549
          %v2582 = vsub.f32 %v2518, %v2550
          %v2583 = vsub.f32 %v2519, %v2551
          %v2584 = vsub.f32 %v2520, %v2552
          %v2585 = vsub.f32 %v2521, %v2553
          %v2586 = vsub.f32 %v2522, %v2554
          %v2587 = vsub.f32 %v2523, %v2555
          %v2588 = vsub.f32 %v2524, %v2556
          %v2589 = vsub.f32 %v2525, %v2557
          %v2590 = vsub.f32 %v2526, %v2558
          %v2591 = vsub.f32 %v2527, %v2559
          %v2592 = vsub.f32 %v2528, %v2560
          %v2593 = vsub.f32 %v2529, %v2561
          %v2594 = vsub.f32 %v2530, %v2562
          %v2595 = vsub.f32 %v2531, %v2563
          %v2596 = vand.u32 2147483647, %v2564
          %v2597 = vand.u32 2147483647, %v2565
          %v2598 = vand.u32 2147483647, %v2566
          %v2599 = vand.u32 2147483647, %v2567
          %v2600 = vand.u32 2147483647, %v2568
          %v2601 = vand.u32 2147483647, %v2569
          %v2602 = vand.u32 2147483647, %v2570
          %v2603 = vand.u32 2147483647, %v2571
          %v2604 = vand.u32 2147483647, %v2572
          %v2605 = vand.u32 2147483647, %v2573
          %v2606 = vand.u32 2147483647, %v2574
          %v2607 = vand.u32 2147483647, %v2575
          %v2608 = vand.u32 2147483647, %v2576
          %v2609 = vand.u32 2147483647, %v2577
          %v2610 = vand.u32 2147483647, %v2578
          %v2611 = vand.u32 2147483647, %v2579
          %v2612 = vand.u32 2147483647, %v2580
          %v2613 = vand.u32 2147483647, %v2581
          %v2614 = vand.u32 2147483647, %v2582
          %v2615 = vand.u32 2147483647, %v2583
          %v2616 = vand.u32 2147483647, %v2584
          %v2617 = vand.u32 2147483647, %v2585
          %v2618 = vand.u32 2147483647, %v2586
          %v2619 = vand.u32 2147483647, %v2587
          %v2620 = vand.u32 2147483647, %v2588
          %v2621 = vand.u32 2147483647, %v2589
          %v2622 = vand.u32 2147483647, %v2590
          %v2623 = vand.u32 2147483647, %v2591
          %v2624 = vand.u32 2147483647, %v2592
          %v2625 = vand.u32 2147483647, %v2593
          %v2626 = vand.u32 2147483647, %v2594
          %v2627 = vand.u32 2147483647, %v2595
          %v2628 = vmin.f32 %v2596, 1.0
          %v2629 = vmin.f32 %v2597, 1.0
          %v2630 = vmin.f32 %v2598, 1.0
          %v2631 = vmin.f32 %v2599, 1.0
          %v2632 = vmin.f32 %v2600, 1.0
          %v2633 = vmin.f32 %v2601, 1.0
          %v2634 = vmin.f32 %v2602, 1.0
          %v2635 = vmin.f32 %v2603, 1.0
          %v2636 = vmin.f32 %v2604, 1.0
          %v2637 = vmin.f32 %v2605, 1.0
          %v2638 = vmin.f32 %v2606, 1.0
          %v2639 = vmin.f32 %v2607, 1.0
          %v2640 = vmin.f32 %v2608, 1.0
          %v2641 = vmin.f32 %v2609, 1.0
          %v2642 = vmin.f32 %v2610, 1.0
          %v2643 = vmin.f32 %v2611, 1.0
          %v2644 = vmin.f32 %v2612, 1.0
          %v2645 = vmin.f32 %v2613, 1.0
          %v2646 = vmin.f32 %v2614, 1.0
          %v2647 = vmin.f32 %v2615, 1.0
          %v2648 = vmin.f32 %v2616, 1.0
          %v2649 = vmin.f32 %v2617, 1.0
          %v2650 = vmin.f32 %v2618, 1.0
          %v2651 = vmin.f32 %v2619, 1.0
          %v2652 = vmin.f32 %v2620, 1.0
          %v2653 = vmin.f32 %v2621, 1.0
          %v2654 = vmin.f32 %v2622, 1.0
          %v2655 = vmin.f32 %v2623, 1.0
          %v2656 = vmin.f32 %v2624, 1.0
          %v2657 = vmin.f32 %v2625, 1.0
          %v2658 = vmin.f32 %v2626, 1.0
          %v2659 = vmin.f32 %v2627, 1.0
          %v2660 = vmul.f32 %v2628, 0.5
          %v2661 = vmul.f32 %v2629, 0.5
          %v2662 = vmul.f32 %v2630, 0.5
          %v2663 = vmul.f32 %v2631, 0.5
          %v2664 = vmul.f32 %v2632, 0.5
          %v2665 = vmul.f32 %v2633, 0.5
          %v2666 = vmul.f32 %v2634, 0.5
          %v2667 = vmul.f32 %v2635, 0.5
          %v2668 = vmul.f32 %v2636, 0.5
          %v2669 = vmul.f32 %v2637, 0.5
          %v2670 = vmul.f32 %v2638, 0.5
          %v2671 = vmul.f32 %v2639, 0.5
          %v2672 = vmul.f32 %v2640, 0.5
          %v2673 = vmul.f32 %v2641, 0.5
          %v2674 = vmul.f32 %v2642, 0.5
          %v2675 = vmul.f32 %v2643, 0.5
          %v2676 = vmul.f32 %v2644, 0.5
          %v2677 = vmul.f32 %v2645, 0.5
          %v2678 = vmul.f32 %v2646, 0.5
          %v2679 = vmul.f32 %v2647, 0.5
          %v2680 = vmul.f32 %v2648, 0.5
          %v2681 = vmul.f32 %v2649, 0.5
          %v2682 = vmul.f32 %v2650, 0.5
          %v2683 = vmul.f32 %v2651, 0.5
          %v2684 = vmul.f32 %v2652, 0.5
          %v2685 = vmul.f32 %v2653, 0.5
          %v2686 = vmul.f32 %v2654, 0.5
          %v2687 = vmul.f32 %v2655, 0.5
          %v2688 = vmul.f32 %v2656, 0.5
          %v2689 = vmul.f32 %v2657, 0.5
          %v2690 = vmul.f32 %v2658, 0.5
          %v2691 = vmul.f32 %v2659, 0.5
          %v2692 = vsub.f32 %v2596, %v2660
          %v2693 = vsub.f32 %v2597, %v2661
          %v2694 = vsub.f32 %v2598, %v2662
          %v2695 = vsub.f32 %v2599, %v2663
          %v2696 = vsub.f32 %v2600, %v2664
          %v2697 = vsub.f32 %v2601, %v2665
          %v2698 = vsub.f32 %v2602, %v2666
          %v2699 = vsub.f32 %v2603, %v2667
          %v2700 = vsub.f32 %v2604, %v2668
          %v2701 = vsub.f32 %v2605, %v2669
          %v2702 = vsub.f32 %v2606, %v2670
          %v2703 = vsub.f32 %v2607, %v2671
          %v2704 = vsub.f32 %v2608, %v2672
          %v2705 = vsub.f32 %v2609, %v2673
          %v2706 = vsub.f32 %v2610, %v2674
          %v2707 = vsub.f32 %v2611, %v2675
          %v2708 = vsub.f32 %v2612, %v2676
          %v2709 = vsub.f32 %v2613, %v2677
          %v2710 = vsub.f32 %v2614, %v2678
          %v2711 = vsub.f32 %v2615, %v2679
          %v2712 = vsub.f32 %v2616, %v2680
          %v2713 = vsub.f32 %v2617, %v2681
          %v2714 = vsub.f32 %v2618, %v2682
          %v2715 = vsub.f32 %v2619, %v2683
          %v2716 = vsub.f32 %v2620, %v2684
          %v2717 = vsub.f32 %v2621, %v2685
          %v2718 = vsub.f32 %v2622, %v2686
          %v2719 = vsub.f32 %v2623, %v2687
          %v2720 = vsub.f32 %v2624, %v2688
          %v2721 = vsub.f32 %v2625, %v2689
          %v2722 = vsub.f32 %v2626, %v2690
          %v2723 = vsub.f32 %v2627, %v2691
          %v2724 = vmul.f32 %v2628, %v2692
          %v2725 = vmul.f32 %v2629, %v2693
          %v2726 = vmul.f32 %v2630, %v2694
          %v2727 = vmul.f32 %v2631, %v2695
          %v2728 = vmul.f32 %v2632, %v2696
          %v2729 = vmul.f32 %v2633, %v2697
          %v2730 = vmul.f32 %v2634, %v2698
          %v2731 = vmul.f32 %v2635, %v2699
          %v2732 = vmul.f32 %v2636, %v2700
          %v2733 = vmul.f32 %v2637, %v2701
          %v2734 = vmul.f32 %v2638, %v2702
          %v2735 = vmul.f32 %v2639, %v2703
          %v2736 = vmul.f32 %v2640, %v2704
          %v2737 = vmul.f32 %v2641, %v2705
          %v2738 = vmul.f32 %v2642, %v2706
          %v2739 = vmul.f32 %v2643, %v2707
          %v2740 = vmul.f32 %v2644, %v2708
          %v2741 = vmul.f32 %v2645, %v2709
          %v2742 = vmul.f32 %v2646, %v2710
          %v2743 = vmul.f32 %v2647, %v2711
          %v2744 = vmul.f32 %v2648, %v2712
          %v2745 = vmul.f32 %v2649, %v2713
          %v2746 = vmul.f32 %v2650, %v2714
          %v2747 = vmul.f32 %v2651, %v2715
          %v2748 = vmul.f32 %v2652, %v2716
          %v2749 = vmul.f32 %v2653, %v2717
          %v2750 = vmul.f32 %v2654, %v2718
          %v2751 = vmul.f32 %v2655, %v2719
          %v2752 = vmul.f32 %v2656, %v2720
          %v2753 = vmul.f32 %v2657, %v2721
          %v2754 = vmul.f32 %v2658, %v2722
          %v2755 = vmul.f32 %v2659, %v2723
          %v2756 = vadd.f32 %v2724, %v2725
          %v2757 = vadd.f32 %v2756, %v2726
          %v2758 = vadd.f32 %v2757, %v2727
          %v2759 = vadd.f32 %v2758, %v2728
          %v2760 = vadd.f32 %v2759, %v2729
          %v2761 = vadd.f32 %v2760, %v2730
          %v2762 = vadd.f32 %v2761, %v2731
          %v2763 = vadd.f32 %v2762, %v2732
          %v2764 = vadd.f32 %v2763, %v2733
          %v2765 = vadd.f32 %v2764, %v2734
          %v2766 = vadd.f32 %v2765, %v2735
          %v2767 = vadd.f32 %v2766, %v2736
          %v2768 = vadd.f32 %v2767, %v2737
          %v2769 = vadd.f32 %v2768, %v2738
          %v2770 = vadd.f32 %v2769, %v2739
          %v2771 = vadd.f32 %v2770, %v2740
          %v2772 = vadd.f32 %v2771, %v2741
          %v2773 = vadd.f32 %v2772, %v2742
          %v2774 = vadd.f32 %v2773, %v2743
          %v2775 = vadd.f32 %v2774, %v2744
          %v2776 = vadd.f32 %v2775, %v2745
          %v2777 = vadd.f32 %v2776, %v2746
          %v2778 = vadd.f32 %v2777, %v2747
          %v2779 = vadd.f32 %v2778, %v2748
          %v2780 = vadd.f32 %v2779, %v2749
          %v2781 = vadd.f32 %v2780, %v2750
          %v2782 = vadd.f32 %v2781, %v2751
          %v2783 = vadd.f32 %v2782, %v2752
          %v2784 = vadd.f32 %v2783, %v2753
          %v2785 = vadd.f32 %v2784, %v2754
          %v2786 = vadd.f32 %v2785, %v2755
          %v2787 = vld [vmem:[#allocation2] sm:$0xff]
          %v2788 = vmul.f32 %v2786, 3.0517578e-05
          %v2789 = vadd.f32 %v2787, %v2788
          %2790 = vst [vmem:[#allocation2] sm:$0xff] %v2789
        $region100: #{tpu_custom_call.1} parent=51 // pred_fallthru
          _
        %p2791 = scmp.ge.s32.totalorder %s35, 3
        %p2792 = scmp.lt.s32.totalorder %s35, 4
        %p2793 = pnand %p2791, %p2792
        %p2794 = pneg %p2793
        // Predicated region
        $region101: #{tpu_custom_call.1} parent=51 // pred_check
          _
        $region102: #{tpu_custom_call.1} parent=51 // pred_check_branch
          %2796 = sbr.rel (%p2793) target = $region104
        $region103: #{tpu_custom_call.1} parent=51 // pred_region
          %v2797 = vld [vmem:[%s625] sm:$0xff]
          %v2798 = vld [vmem:[%s625 + $0x8] sm:$0xff]
          %v2799 = vld [vmem:[%s625 + $0x10] sm:$0xff]
          %v2800 = vld [vmem:[%s625 + $0x18] sm:$0xff]
          %v2801 = vld [vmem:[%s625 + $0x20] sm:$0xff]
          %v2802 = vld [vmem:[%s625 + $0x28] sm:$0xff]
          %v2803 = vld [vmem:[%s625 + $0x30] sm:$0xff]
          %v2804 = vld [vmem:[%s625 + $0x38] sm:$0xff]
          %v2805 = vld [vmem:[%s625 + $0x40] sm:$0xff]
          %v2806 = vld [vmem:[%s625 + $0x48] sm:$0xff]
          %v2807 = vld [vmem:[%s625 + $0x50] sm:$0xff]
          %v2808 = vld [vmem:[%s625 + $0x58] sm:$0xff]
          %v2809 = vld [vmem:[%s625 + $0x60] sm:$0xff]
          %v2810 = vld [vmem:[%s625 + $0x68] sm:$0xff]
          %v2811 = vld [vmem:[%s625 + $0x70] sm:$0xff]
          %v2812 = vld [vmem:[%s625 + $0x78] sm:$0xff]
          %v2813 = vld [vmem:[%s634] sm:$0xff]
          %v2814 = vld [vmem:[%s634 + $0x8] sm:$0xff]
          %v2815 = vld [vmem:[%s634 + $0x10] sm:$0xff]
          %v2816 = vld [vmem:[%s634 + $0x18] sm:$0xff]
          %v2817 = vld [vmem:[%s634 + $0x20] sm:$0xff]
          %v2818 = vld [vmem:[%s634 + $0x28] sm:$0xff]
          %v2819 = vld [vmem:[%s634 + $0x30] sm:$0xff]
          %v2820 = vld [vmem:[%s634 + $0x38] sm:$0xff]
          %v2821 = vld [vmem:[%s634 + $0x40] sm:$0xff]
          %v2822 = vld [vmem:[%s634 + $0x48] sm:$0xff]
          %v2823 = vld [vmem:[%s634 + $0x50] sm:$0xff]
          %v2824 = vld [vmem:[%s634 + $0x58] sm:$0xff]
          %v2825 = vld [vmem:[%s634 + $0x60] sm:$0xff]
          %v2826 = vld [vmem:[%s634 + $0x68] sm:$0xff]
          %v2827 = vld [vmem:[%s634 + $0x70] sm:$0xff]
          %v2828 = vld [vmem:[%s634 + $0x78] sm:$0xff]
          %v2829 = vsub.f32 %v2797, %v2813
          %v2830 = vsub.f32 %v2798, %v2814
          %v2831 = vsub.f32 %v2799, %v2815
          %v2832 = vsub.f32 %v2800, %v2816
          %v2833 = vsub.f32 %v2801, %v2817
          %v2834 = vsub.f32 %v2802, %v2818
          %v2835 = vsub.f32 %v2803, %v2819
          %v2836 = vsub.f32 %v2804, %v2820
          %v2837 = vsub.f32 %v2805, %v2821
          %v2838 = vsub.f32 %v2806, %v2822
          %v2839 = vsub.f32 %v2807, %v2823
          %v2840 = vsub.f32 %v2808, %v2824
          %v2841 = vsub.f32 %v2809, %v2825
          %v2842 = vsub.f32 %v2810, %v2826
          %v2843 = vsub.f32 %v2811, %v2827
          %v2844 = vsub.f32 %v2812, %v2828
          %v2845 = vand.u32 2147483647, %v2829
          %v2846 = vand.u32 2147483647, %v2830
          %v2847 = vand.u32 2147483647, %v2831
          %v2848 = vand.u32 2147483647, %v2832
          %v2849 = vand.u32 2147483647, %v2833
          %v2850 = vand.u32 2147483647, %v2834
          %v2851 = vand.u32 2147483647, %v2835
          %v2852 = vand.u32 2147483647, %v2836
          %v2853 = vand.u32 2147483647, %v2837
          %v2854 = vand.u32 2147483647, %v2838
          %v2855 = vand.u32 2147483647, %v2839
          %v2856 = vand.u32 2147483647, %v2840
          %v2857 = vand.u32 2147483647, %v2841
          %v2858 = vand.u32 2147483647, %v2842
          %v2859 = vand.u32 2147483647, %v2843
          %v2860 = vand.u32 2147483647, %v2844
          %v2861 = vmin.f32 %v2845, 1.0
          %v2862 = vmin.f32 %v2846, 1.0
          %v2863 = vmin.f32 %v2847, 1.0
          %v2864 = vmin.f32 %v2848, 1.0
          %v2865 = vmin.f32 %v2849, 1.0
          %v2866 = vmin.f32 %v2850, 1.0
          %v2867 = vmin.f32 %v2851, 1.0
          %v2868 = vmin.f32 %v2852, 1.0
          %v2869 = vmin.f32 %v2853, 1.0
          %v2870 = vmin.f32 %v2854, 1.0
          %v2871 = vmin.f32 %v2855, 1.0
          %v2872 = vmin.f32 %v2856, 1.0
          %v2873 = vmin.f32 %v2857, 1.0
          %v2874 = vmin.f32 %v2858, 1.0
          %v2875 = vmin.f32 %v2859, 1.0
          %v2876 = vmin.f32 %v2860, 1.0
          %v2877 = vmul.f32 %v2861, 0.5
          %v2878 = vmul.f32 %v2862, 0.5
          %v2879 = vmul.f32 %v2863, 0.5
          %v2880 = vmul.f32 %v2864, 0.5
          %v2881 = vmul.f32 %v2865, 0.5
          %v2882 = vmul.f32 %v2866, 0.5
          %v2883 = vmul.f32 %v2867, 0.5
          %v2884 = vmul.f32 %v2868, 0.5
          %v2885 = vmul.f32 %v2869, 0.5
          %v2886 = vmul.f32 %v2870, 0.5
          %v2887 = vmul.f32 %v2871, 0.5
          %v2888 = vmul.f32 %v2872, 0.5
          %v2889 = vmul.f32 %v2873, 0.5
          %v2890 = vmul.f32 %v2874, 0.5
          %v2891 = vmul.f32 %v2875, 0.5
          %v2892 = vmul.f32 %v2876, 0.5
          %v2893 = vsub.f32 %v2845, %v2877
          %v2894 = vsub.f32 %v2846, %v2878
          %v2895 = vsub.f32 %v2847, %v2879
          %v2896 = vsub.f32 %v2848, %v2880
          %v2897 = vsub.f32 %v2849, %v2881
          %v2898 = vsub.f32 %v2850, %v2882
          %v2899 = vsub.f32 %v2851, %v2883
          %v2900 = vsub.f32 %v2852, %v2884
          %v2901 = vsub.f32 %v2853, %v2885
          %v2902 = vsub.f32 %v2854, %v2886
          %v2903 = vsub.f32 %v2855, %v2887
          %v2904 = vsub.f32 %v2856, %v2888
          %v2905 = vsub.f32 %v2857, %v2889
          %v2906 = vsub.f32 %v2858, %v2890
          %v2907 = vsub.f32 %v2859, %v2891
          %v2908 = vsub.f32 %v2860, %v2892
          %v2909 = vmul.f32 %v2861, %v2893
          %v2910 = vmul.f32 %v2862, %v2894
          %v2911 = vmul.f32 %v2863, %v2895
          %v2912 = vmul.f32 %v2864, %v2896
          %v2913 = vmul.f32 %v2865, %v2897
          %v2914 = vmul.f32 %v2866, %v2898
          %v2915 = vmul.f32 %v2867, %v2899
          %v2916 = vmul.f32 %v2868, %v2900
          %v2917 = vmul.f32 %v2869, %v2901
          %v2918 = vmul.f32 %v2870, %v2902
          %v2919 = vmul.f32 %v2871, %v2903
          %v2920 = vmul.f32 %v2872, %v2904
          %v2921 = vmul.f32 %v2873, %v2905
          %v2922 = vmul.f32 %v2874, %v2906
          %v2923 = vmul.f32 %v2875, %v2907
          %v2924 = vmul.f32 %v2876, %v2908
          %v2925 = vadd.f32 %v2909, %v2910
          %v2926 = vadd.f32 %v2925, %v2911
          %v2927 = vadd.f32 %v2926, %v2912
          %v2928 = vadd.f32 %v2927, %v2913
          %v2929 = vadd.f32 %v2928, %v2914
          %v2930 = vadd.f32 %v2929, %v2915
          %v2931 = vadd.f32 %v2930, %v2916
          %v2932 = vadd.f32 %v2931, %v2917
          %v2933 = vadd.f32 %v2932, %v2918
          %v2934 = vadd.f32 %v2933, %v2919
          %v2935 = vadd.f32 %v2934, %v2920
          %v2936 = vadd.f32 %v2935, %v2921
          %v2937 = vadd.f32 %v2936, %v2922
          %v2938 = vadd.f32 %v2937, %v2923
          %v2939 = vadd.f32 %v2938, %v2924
          %v2940 = vld [vmem:[#allocation2] sm:$0xff]
          %v2941 = vmul.f32 %v2939, 6.1035156e-05
          %v2942 = vadd.f32 %v2940, %v2941
          %2943 = vst [vmem:[#allocation2] sm:$0xff] %v2942
        $region104: #{tpu_custom_call.1} parent=51 // pred_fallthru
          _
        %p2944 = scmp.eq.s32.totalorder %s35, 3
        // Predicated region
        $region105: #{tpu_custom_call.1} parent=51 // pred_check
          %p2945 = pneg %p2944
        $region106: #{tpu_custom_call.1} parent=51 // pred_check_branch
          %2947 = sbr.rel (%p2945) target = $region108
        $region107: #{tpu_custom_call.1} parent=51 // pred_region
          %v2948 = vld [vmem:[#allocation2] sm:$0xff]
          %2949 = vadd.xlane.f32.xlu0 %v2948
          %v2950 = vpop.xlane.xlu0 %2949
          %v2951 = vrot.slane %v2950, 4
          %v2952 = vadd.f32 %v2950, %v2951
          %v2953 = vrot.slane %v2952, 2
          %v2954 = vadd.f32 %v2952, %v2953
          %v2955 = vrot.slane %v2954, 1
          %v2956 = vadd.f32 %v2954, %v2955
          %s2957 = vtos %v2956
          %s2958 = scalar_lea.smem [#allocation17], 0
          %2959 = sst [smem:[%s2958]] %s2957
        $region108: #{tpu_custom_call.1} parent=51 // pred_fallthru
          _
        // Predicated region
        $region109: #{tpu_custom_call.1} parent=51 // pred_check
          %p2960 = pneg %p332
        $region110: #{tpu_custom_call.1} parent=51 // pred_check_branch
          %2962 = sbr.rel (%p2960) target = $region112
        $region111: #{tpu_custom_call.1} parent=51 // pred_region
          %s2964 = ssub.s32 16, 16
          %2965 = vsyncadd [#allocation5], %s2964
          %2968 = dma.smem_to_hbm [#allocation17], 16, %s8, [#allocation5]
        $region112: #{tpu_custom_call.1} parent=51 // pred_fallthru
          _
        // Predicated region
        $region113: #{tpu_custom_call.1} parent=51 // pred_check
          %p2969 = pneg %p332
        $region114: #{tpu_custom_call.1} parent=51 // pred_check_branch
          %2971 = sbr.rel (%p2969) target = $region116
        $region115: #{tpu_custom_call.1} parent=51 // pred_region
          %2972 = dma.done [#allocation5], 16
        $region116: #{tpu_custom_call.1} parent=51 // pred_fallthru
          _
        %2973 = sfence
      $region52: #{tpu_custom_call.1} parent=5 // pred_fallthru
        _
      %p2974 = scmp.le.s32.totalorder 2, %s30
      // Predicated region
      $region117: #{tpu_custom_call.1} parent=5 // pred_check
        %p2975 = pneg %p2974
      $region118: #{tpu_custom_call.1} parent=5 // pred_check_branch
        %2977 = sbr.rel (%p2975) target = $region120
      $region119: #{tpu_custom_call.1} parent=5 // pred_region
        %s2978 = ssub.s32 %s30, 2
      $region120: #{tpu_custom_call.1} parent=5 // pred_fallthru
        _
    $region6: #{tpu_custom_call.1} parent=1 // loop_footer
      %s34 = sadd.s32 1, %s30
    $region7: #{tpu_custom_call.1} parent=1 // loop_footer_branch
      %29 = sbr.rel target = $region3
    $region8: #{tpu_custom_call.1} parent=1 // loop_exit
      _
    %2979 = vsyncpa [#allocation4], 1
    %s2980 = scalar_lea.sflag [#allocation4], 1
    %2981 = vsyncpa %s2980, 1
    %2982 = vsyncpa [#allocation7], 1
    %s2983 = scalar_lea.sflag [#allocation7], 1
    %2984 = vsyncpa %s2983, 1
    %2985 = vsyncpa [#allocation10], 1
    %s2986 = scalar_lea.sflag [#allocation10], 1
    %2987 = vsyncpa %s2986, 1
    %2988 = vsyncpa [#allocation13], 1
    %s2989 = scalar_lea.sflag [#allocation13], 1
    %2990 = vsyncpa %s2989, 1
    %2991 = vsyncpa [#allocation16], 1
    %s2992 = scalar_lea.sflag [#allocation16], 1
    %2993 = vsyncpa %s2992, 1
    %2994 = vsyncpa [#allocation5], 1
    %s2995 = scalar_lea.sflag [#allocation5], 1
    %2996 = vsyncpa %s2995, 1

</llo_original>
